<compile_context>
chip_gen: v7x
topology: tpu7x:2x2x1
jax: 0.10.0
libtpu: 0.0.40
codegen_flags: <defaults>
</compile_context>

<pallas_src>
import functools
import math

import jax
import jax.numpy as jnp
from jax.experimental import pallas as pl
from jax.experimental.pallas import tpu as pltpu


# ----------------------------- in-kernel helpers -----------------------------

def _layernorm(x, gamma, beta, eps=1e-5):
    # PyTorch nn.LayerNorm: biased variance over the last axis. f32 math.
    mean = jnp.mean(x, axis=-1, keepdims=True)
    var = jnp.mean((x - mean) * (x - mean), axis=-1, keepdims=True)
    inv = jax.lax.rsqrt(var + eps)
    return (x - mean) * inv * gamma + beta


def _erf(x):
    # lax.erf has no Mosaic lowering; Abramowitz&Stegun 7.1.26 rational
    # approximation (|err| <= 1.5e-7) so GELU matches PyTorch's exact form.
    a1, a2, a3, a4, a5 = (0.254829592, -0.284496736, 1.421413741,
                          -1.453152027, 1.061405429)
    p = 0.3275911
    sign = jnp.where(x >= 0.0, 1.0, -1.0)
    ax = jnp.abs(x)
    # divide -> EUP approx reciprocal (keeps VALU slot free in the MLP phase)
    t = pl.reciprocal(1.0 + p * ax, approx=True)
    poly = ((((a5 * t + a4) * t + a3) * t + a2) * t + a1) * t
    return sign * (1.0 - poly * jnp.exp(-ax * ax))


def _gelu_exact(x):
    # PyTorch nn.GELU() default: 0.5 * x * (1 + erf(x / sqrt(2)))
    return 0.5 * x * (1.0 + _erf(x * 0.7071067811865476))


def _softmax_lastdim(s):
    s = s - jnp.max(s, axis=-1, keepdims=True)
    e = jnp.exp(s)
    return e * pl.reciprocal(jnp.sum(e, axis=-1, keepdims=True), approx=True)


# ------------------------------- Pallas kernel -------------------------------

def encoder_block_kernel(x_ref,
                         ln1_g_ref, ln1_b_ref,
                         wqkv_ref, bqkv_ref,
                         wo_ref, bo_ref,
                         ln2_g_ref, ln2_b_ref,
                         w1_ref, b1_ref,
                         w2_ref, b2_ref,
                         out_ref,
                         qkv_sc, att_sc,
                         *, num_heads, seq_len, seq_valid, mlp_chunk):
    Mrows, E = x_ref.shape          # (block_b * S_pad, E)
    S = seq_len
    Bb = Mrows // S
    Dh = E // num_heads
    M = w1_ref.shape[1]

    # Head grouping so q/k/v slab loads and att_sc stores are (up to) 128 lanes
    # wide: lane-dense, unmasked vst (biggest measured lever for Dh=64 ViT).
    hpg = max(1, min(num_heads, 128 // max(Dh, 1)))
    while num_heads % hpg:
        hpg -= 1
    n_groups = num_heads // hpg
    GW = hpg * Dh

    x = x_ref[...]                                          # (Mrows, E) f32

    # ---- y = LN1(x) ---- (f32)
    y = _layernorm(x, ln1_g_ref[0], ln1_b_ref[0])

    # ---- QKV projection: one bf16 matmul, f32 accumulation ----
    # (the 1/sqrt(Dh) attention scale is folded into Wqkv/bqkv host-side)
    qkv = jnp.dot(y.astype(jnp.bfloat16), wqkv_ref[...],
                  preferred_element_type=jnp.float32) + bqkv_ref[0]
    qkv_sc[...] = qkv.astype(jnp.bfloat16)                  # single bf16 cast

    # Key-padding mask (only built when the host padded S).
    if seq_valid < S:
        kmask = jax.lax.broadcasted_iota(jnp.int32, (S, S), 1) < seq_valid
    else:
        kmask = None

    # ---- attention: fori over batch rows, static loop over head groups ----
    def attn_body(b, carry):
        row = pl.multiple_of(b * S, 8)                      # S is padded to %8
        for g in range(n_groups):
            col = g * GW
            q_slab = qkv_sc[pl.ds(row, S), pl.ds(col, GW)]          # (S,GW) bf16
            k_slab = qkv_sc[pl.ds(row, S), pl.ds(E + col, GW)]
            v_slab = qkv_sc[pl.ds(row, S), pl.ds(2 * E + col, GW)]
            outs = []
            for h in range(hpg):
                c0 = h * Dh
                qh = q_slab[:, c0:c0 + Dh]
                kh = k_slab[:, c0:c0 + Dh]
                vh = v_slab[:, c0:c0 + Dh]
                # scores = qh @ kh^T (contract head dim; no explicit transpose)
                s = jax.lax.dot_general(qh, kh, (((1,), (1,)), ((), ())),
                                        preferred_element_type=jnp.float32)
                if kmask is not None:
                    s = jnp.where(kmask, s, -1e30)
                p = _softmax_lastdim(s)                     # (S, S) f32
                oh = jnp.dot(p.astype(jnp.bfloat16), vh,
                             preferred_element_type=jnp.float32)
                outs.append(oh.astype(jnp.bfloat16))
            slab = outs[0] if hpg == 1 else jnp.concatenate(outs, axis=1)
            # one lane-dense store per group
            att_sc[pl.ds(row, S), pl.ds(col, GW)] = slab
        return carry

    jax.lax.fori_loop(0, Bb, attn_body, 0, unroll=max(1, min(2, Bb)))

    # ---- single full-K output projection + residual 1 ----
    att = jnp.dot(att_sc[...], wo_ref[...],
                  preferred_element_type=jnp.float32) + bo_ref[0]
    y1 = x + att

    # ---- z = LN2(y1); MLP chunked along the hidden dim (bounds h1 temp) ----
    z = _layernorm(y1, ln2_g_ref[0], ln2_b_ref[0]).astype(jnp.bfloat16)
    acc = y1
    for c in range(M // mlp_chunk):
        c0 = c * mlp_chunk
        h1 = jnp.dot(z, w1_ref[:, c0:c0 + mlp_chunk],
                     preferred_element_type=jnp.float32) + b1_ref[0, c0:c0 + mlp_chunk]
        h1 = _gelu_exact(h1)                                # f32 elementwise
        acc = acc + jnp.dot(h1.astype(jnp.bfloat16),
                            w2_ref[c0:c0 + mlp_chunk, :],
                            preferred_element_type=jnp.float32)
    acc = acc + b2_ref[0]

    # Zero padded rows so they never contaminate later blocks.
    if seq_valid < S:
        rid = jax.lax.broadcasted_iota(jnp.int32, (Mrows, 1), 0)
        acc = jnp.where((rid % S) < seq_valid, acc, 0.0)

    out_ref[...] = acc.astype(out_ref.dtype)


# ------------------------------- host wrapper --------------------------------

def _const_spec(shape, single_buffer):
    index_map = lambda b: tuple(0 for _ in shape)
    if single_buffer:
        # constant index_map across the grid -> one VMEM copy is enough
        return pl.BlockSpec(shape, index_map, pipeline_mode=pl.Buffered(1))
    return pl.BlockSpec(shape, index_map)


def _pick_block_b(B, S_pad, max_rows=1024):
    """Largest divisor of B keeping block_b*S_pad reasonable; >=2 grid steps."""
    bb = max(1, min(B, max_rows // max(S_pad, 1)))
    if B >= 2:
        bb = min(bb, max(1, B // 2))   # >=2 grid steps: v7x 2-TC megacore
    while B % bb:
        bb -= 1
    return bb


def _pick_mlp_chunk(M, target=512):
    """Divisor of M, <= target, preferring multiples of 128."""
    if M <= target:
        return M
    best = None
    for c in range(target, 0, -1):
        if M % c == 0:
            if c % 128 == 0:
                return c
            if best is None:
                best = c
    return best or M


def _vmem_limit_bytes():
    cap = 128 * 1024 * 1024
    try:
        cap = int(pltpu.get_tpu_info().vmem_capacity_bytes)
    except Exception:
        pass
    # ~25% headroom for compiler scratch / double buffers; cap at ~100 MiB.
    return int(min(cap - cap // 4, 100 * 1024 * 1024))


def _block_call(x2d, p, num_heads, seq_len, seq_valid, block_b, single_buffer):
    R, E = x2d.shape                    # R = B * seq_len (padded)
    B = R // seq_len
    M = p["w1_t"].shape[1]
    H = num_heads
    Dh = E // H
    block_rows = block_b * seq_len
    mlp_chunk = _pick_mlp_chunk(M)

    # Fold 1/sqrt(Dh) into the q-columns of Wqkv / bqkv; bf16 weights for MXU.
    scale = 1.0 / math.sqrt(Dh)
    wqkv = p["wqkv_t"].at[:, :E].multiply(scale).astype(jnp.bfloat16)
    bqkv = p["bqkv"].at[:, :E].multiply(scale)
    wo = p["wo_t"].astype(jnp.bfloat16)
    w1 = p["w1_t"].astype(jnp.bfloat16)
    w2 = p["w2_t"].astype(jnp.bfloat16)

    in_specs = [
        pl.BlockSpec((block_rows, E), lambda b: (b, 0)),            # x
        _const_spec((1, E), single_buffer),                         # ln1 gamma
        _const_spec((1, E), single_buffer),                         # ln1 beta
        _const_spec((E, 3 * E), single_buffer),                     # Wqkv^T
        _const_spec((1, 3 * E), single_buffer),                     # bqkv
        _const_spec((E, E), single_buffer),                         # Wo^T
        _const_spec((1, E), single_buffer),                         # bo
        _const_spec((1, E), single_buffer),                         # ln2 gamma
        _const_spec((1, E), single_buffer),                         # ln2 beta
        _const_spec((E, M), single_buffer),                         # W1^T
        _const_spec((1, M), single_buffer),                         # b1
        _const_spec((M, E), single_buffer),                         # W2^T
        _const_spec((1, E), single_buffer),                         # b2
    ]

    flops = (2 * R * E * 3 * E
             + 4 * B * H * seq_len * seq_len * Dh
             + 2 * R * E * E
             + 4 * R * E * M)
    transcendentals = B * H * seq_len * seq_len + 2 * R * M
    bytes_accessed = (2 * 4 * R * E
                      + 2 * (wqkv.size + wo.size + w1.size + w2.size)
                      + 4 * (6 * E + 3 * E + M + E))

    return pl.pallas_call(
        functools.partial(encoder_block_kernel, num_heads=num_heads,
                          seq_len=seq_len, seq_valid=seq_valid,
                          mlp_chunk=mlp_chunk),
        out_shape=jax.ShapeDtypeStruct((R, E), x2d.dtype),
        grid_spec=pltpu.PrefetchScalarGridSpec(
            num_scalar_prefetch=0,
            grid=(B // block_b,),
            in_specs=in_specs,
            out_specs=pl.BlockSpec((block_rows, E), lambda b: (b, 0)),
            scratch_shapes=[
                pltpu.VMEM((block_rows, 3 * E), jnp.bfloat16),   # qkv (bf16)
                pltpu.VMEM((block_rows, E), jnp.bfloat16),       # head outputs
            ],
        ),
        compiler_params=pltpu.CompilerParams(
            dimension_semantics=("parallel",),
            vmem_limit_bytes=_vmem_limit_bytes(),
        ),
        cost_estimate=pl.CostEstimate(
            flops=flops,
            transcendentals=transcendentals,
            bytes_accessed=bytes_accessed),
    )(x2d, p["ln1_g"], p["ln1_b"], wqkv, bqkv, wo, p["bo"],
      p["ln2_g"], p["ln2_b"], w1, p["b1"], w2, p["b2"])


_SINGLE_BUFFER_WEIGHTS = True   # flipped off if this JAX rejects pipeline_mode


def encoder_block_forward(x2d, p, num_heads, seq_len, seq_valid, block_b):
    global _SINGLE_BUFFER_WEIGHTS
    if _SINGLE_BUFFER_WEIGHTS:
        try:
            return _block_call(x2d, p, num_heads, seq_len, seq_valid, block_b,
                               single_buffer=True)
        except Exception:
            _SINGLE_BUFFER_WEIGHTS = False
    return _block_call(x2d, p, num_heads, seq_len, seq_valid, block_b,
                       single_buffer=False)


def encoder_forward(x, params, num_heads):
    """Full Encoder: sequential stack of encoder blocks. x: (B, S, E) f32."""
    B, S, E = x.shape
    S_pad = -(-S // 8) * 8
    xp = x if S_pad == S else jnp.pad(x, ((0, 0), (0, S_pad - S), (0, 0)))
    x2 = xp.reshape(B * S_pad, E)           # host-side flatten (free reshape)
    block_b = _pick_block_b(B, S_pad)
    for p in params:
        x2 = encoder_block_forward(x2, p, num_heads, S_pad, S, block_b)
    out = x2.reshape(B, S_pad, E)
    return out if S_pad == S else out[:, :S, :]


# -------------------------- deterministic param init -------------------------

def init_block_params(key, embed_dim, mlp_dim):
    E, M = embed_dim, mlp_dim
    ks = jax.random.split(key, 4)
    scale = 0.02
    wqkv = scale * jax.random.normal(ks[0], (3 * E, E), jnp.float32)  # torch (out,in)
    wo = scale * jax.random.normal(ks[1], (E, E), jnp.float32)
    w1 = scale * jax.random.normal(ks[2], (M, E), jnp.float32)
    w2 = scale * jax.random.normal(ks[3], (E, M), jnp.float32)
    return {
        "ln1_g": jnp.ones((1, E), jnp.float32),
        "ln1_b": jnp.zeros((1, E), jnp.float32),
        "wqkv_t": wqkv.T,                         # (E, 3E)
        "bqkv": jnp.zeros((1, 3 * E), jnp.float32),
        "wo_t": wo.T,                             # (E, E)
        "bo": jnp.zeros((1, E), jnp.float32),
        "ln2_g": jnp.ones((1, E), jnp.float32),
        "ln2_b": jnp.zeros((1, E), jnp.float32),
        "w1_t": w1.T,                             # (E, M)
        "b1": jnp.zeros((1, M), jnp.float32),
        "w2_t": w2.T,                             # (M, E)
        "b2": jnp.zeros((1, E), jnp.float32),
    }


# ---------------------------- pure-JAX reference ------------------------------

def _ref_block(x, p, num_heads):
    E = x.shape[-1]
    Dh = E // num_heads

    def ln(v, g, b):
        m = jnp.mean(v, axis=-1, keepdims=True)
        var = jnp.mean((v - m) ** 2, axis=-1, keepdims=True)
        return (v - m) / jnp.sqrt(var + 1e-5) * g[0] + b[0]

    y = ln(x, p["ln1_g"], p["ln1_b"])
    qkv = y @ p["wqkv_t"] + p["bqkv"][0]
    q, k, v = jnp.split(qkv, 3, axis=-1)
    B, S, _ = x.shape
    q = q.reshape(B, S, num_heads, Dh).transpose(0, 2, 1, 3) / math.sqrt(Dh)
    k = k.reshape(B, S, num_heads, Dh).transpose(0, 2, 1, 3)
    v = v.reshape(B, S, num_heads, Dh).transpose(0, 2, 1, 3)
    s = jnp.einsum("bhqd,bhkd->bhqk", q, k)
    a = jax.nn.softmax(s, axis=-1)
    o = jnp.einsum("bhqk,bhkd->bhqd", a, v).transpose(0, 2, 1, 3).reshape(B, S, E)
    att = o @ p["wo_t"] + p["bo"][0]
    y = x + att
    z = ln(y, p["ln2_g"], p["ln2_b"])
    h1 = jax.nn.gelu(z @ p["w1_t"] + p["b1"][0], approximate=False)
    h2 = h1 @ p["w2_t"] + p["b2"][0]
    return y + h2


def _ref_encoder(x, params, num_heads):
    for p in params:
        x = _ref_block(x, p, num_heads)
    return x


# ------------------------------------ main ------------------------------------

if __name__ == "__main__":
    # TODO(synk): dropout (mlp_dropout) and return_weights are not implemented;
    # this is the inference forward (dropout = identity), matching eval mode.
    B, S, E, H, M, L = 2, 8, 32, 4, 64, 2   # batch, seq, embed, heads, mlp, blocks

    root = jax.random.PRNGKey(0)
    kx, kp = jax.random.split(root)
    x = jax.random.normal(kx, (B, S, E), jnp.float32)

    block_keys = jax.random.split(kp, L)
    params = [init_block_params(block_keys[i], E, M) for i in range(L)]

    out = jax.block_until_ready(encoder_forward(x, params, num_heads=H))
    ref = _ref_encoder(x, params, num_heads=H)
    err = float(jnp.max(jnp.abs(out - ref)))
    assert out.shape == (B, S, E)
    # bf16 matmul operands (f32 accumulation) + approx reciprocals vs the f32
    # reference: ~1e-3-level deviation at these scales.
    assert err < 5e-3, f"mismatch vs reference: {err}"

    # Exercise the padded-S path (S=6 -> padded to 8, key mask + row zeroing).
    S2 = 6
    x2 = jax.random.normal(jax.random.PRNGKey(1), (B, S2, E), jnp.float32)
    out2 = jax.block_until_ready(encoder_forward(x2, params, num_heads=H))
    ref2 = _ref_encoder(x2, params, num_heads=H)
    err2 = float(jnp.max(jnp.abs(out2 - ref2)))
    assert out2.shape == (B, S2, E)
    assert err2 < 5e-3, f"padded-path mismatch vs reference: {err2}"

    print("KERNEL_OK")
</pallas_src>

<mosaic_0001>
module attributes {stable_mosaic.version = 11 : i64} {
  func.func @encoder_block_kernel(%arg0: i32, %arg1: memref<8x32xf32, #tpu.memory_space<vmem>>, %arg2: memref<1x32xf32, #tpu.memory_space<vmem>>, %arg3: memref<1x32xf32, #tpu.memory_space<vmem>>, %arg4: memref<32x96xbf16, #tpu.memory_space<vmem>>, %arg5: memref<1x96xf32, #tpu.memory_space<vmem>>, %arg6: memref<32x32xbf16, #tpu.memory_space<vmem>>, %arg7: memref<1x32xf32, #tpu.memory_space<vmem>>, %arg8: memref<1x32xf32, #tpu.memory_space<vmem>>, %arg9: memref<1x32xf32, #tpu.memory_space<vmem>>, %arg10: memref<32x64xbf16, #tpu.memory_space<vmem>>, %arg11: memref<1x64xf32, #tpu.memory_space<vmem>>, %arg12: memref<64x32xbf16, #tpu.memory_space<vmem>>, %arg13: memref<1x32xf32, #tpu.memory_space<vmem>>, %arg14: memref<8x32xf32, #tpu.memory_space<vmem>>, %arg15: memref<8x96xbf16, #tpu.memory_space<vmem>>, %arg16: memref<8x32xbf16, #tpu.memory_space<vmem>>) attributes {dimension_semantics = [#tpu.dimension_semantics<parallel>], iteration_bounds = array<i64: 2>, scalar_prefetch = 0 : i64, scratch_operands = 2 : i64, tpu.core_type = #tpu.core_type<tc>, window_params = [{transform_indices = @transform_0, window_bounds = array<i64: 8, 32>}, {pipeline_mode = #tpu.pipeline_mode<synchronous>, transform_indices = @transform_1, window_bounds = array<i64: 1, 32>}, {pipeline_mode = #tpu.pipeline_mode<synchronous>, transform_indices = @transform_2, window_bounds = array<i64: 1, 32>}, {pipeline_mode = #tpu.pipeline_mode<synchronous>, transform_indices = @transform_3, window_bounds = array<i64: 32, 96>}, {pipeline_mode = #tpu.pipeline_mode<synchronous>, transform_indices = @transform_4, window_bounds = array<i64: 1, 96>}, {pipeline_mode = #tpu.pipeline_mode<synchronous>, transform_indices = @transform_5, window_bounds = array<i64: 32, 32>}, {pipeline_mode = #tpu.pipeline_mode<synchronous>, transform_indices = @transform_6, window_bounds = array<i64: 1, 32>}, {pipeline_mode = #tpu.pipeline_mode<synchronous>, transform_indices = @transform_7, window_bounds = array<i64: 1, 32>}, {pipeline_mode = #tpu.pipeline_mode<synchronous>, transform_indices = @transform_8, window_bounds = array<i64: 1, 32>}, {pipeline_mode = #tpu.pipeline_mode<synchronous>, transform_indices = @transform_9, window_bounds = array<i64: 32, 64>}, {pipeline_mode = #tpu.pipeline_mode<synchronous>, transform_indices = @transform_10, window_bounds = array<i64: 1, 64>}, {pipeline_mode = #tpu.pipeline_mode<synchronous>, transform_indices = @transform_11, window_bounds = array<i64: 64, 32>}, {pipeline_mode = #tpu.pipeline_mode<synchronous>, transform_indices = @transform_12, window_bounds = array<i64: 1, 32>}, {transform_indices = @transform_13, window_bounds = array<i64: 8, 32>}]} {
    %c0 = arith.constant 0 : index
    %c0_0 = arith.constant 0 : index
    %0 = vector.load %arg1[%c0, %c0_0] : memref<8x32xf32, #tpu.memory_space<vmem>>, vector<8x32xf32>
    %c0_1 = arith.constant 0 : index
    %c0_2 = arith.constant 0 : index
    %1 = vector.load %arg2[%c0_1, %c0_2] : memref<1x32xf32, #tpu.memory_space<vmem>>, vector<1x32xf32>
    %2 = vector.shape_cast %1 : vector<1x32xf32> to vector<32xf32>
    %c0_3 = arith.constant 0 : index
    %c0_4 = arith.constant 0 : index
    %3 = vector.load %arg3[%c0_3, %c0_4] : memref<1x32xf32, #tpu.memory_space<vmem>>, vector<1x32xf32>
    %4 = vector.shape_cast %3 : vector<1x32xf32> to vector<32xf32>
    %cst = arith.constant dense<0.000000e+00> : vector<8xf32>
    %5 = vector.multi_reduction <add>, %0, %cst [1] : vector<8x32xf32> to vector<8xf32>
    %6 = vector.shape_cast %5 : vector<8xf32> to vector<8x1xf32>
    %cst_5 = arith.constant 3.200000e+01 : f32
    %7 = vector.broadcast %cst_5 : f32 to vector<8x1xf32>
    %8 = arith.divf %6, %7 : vector<8x1xf32>
    %9 = vector.broadcast %8 : vector<8x1xf32> to vector<8x32xf32>
    %10 = arith.subf %0, %9 : vector<8x32xf32>
    %11 = vector.broadcast %8 : vector<8x1xf32> to vector<8x32xf32>
    %12 = arith.subf %0, %11 : vector<8x32xf32>
    %13 = arith.mulf %10, %12 : vector<8x32xf32>
    %cst_6 = arith.constant dense<0.000000e+00> : vector<8xf32>
    %14 = vector.multi_reduction <add>, %13, %cst_6 [1] : vector<8x32xf32> to vector<8xf32>
    %15 = vector.shape_cast %14 : vector<8xf32> to vector<8x1xf32>
    %cst_7 = arith.constant 3.200000e+01 : f32
    %16 = vector.broadcast %cst_7 : f32 to vector<8x1xf32>
    %17 = arith.divf %15, %16 : vector<8x1xf32>
    %cst_8 = arith.constant 9.99999974E-6 : f32
    %18 = vector.broadcast %cst_8 : f32 to vector<8x1xf32>
    %19 = arith.addf %17, %18 : vector<8x1xf32>
    %20 = math.rsqrt %19 : vector<8x1xf32>
    %21 = vector.broadcast %8 : vector<8x1xf32> to vector<8x32xf32>
    %22 = arith.subf %0, %21 : vector<8x32xf32>
    %23 = vector.broadcast %20 : vector<8x1xf32> to vector<8x32xf32>
    %24 = arith.mulf %22, %23 : vector<8x32xf32>
    %25 = vector.shape_cast %2 : vector<32xf32> to vector<1x32xf32>
    %26 = vector.broadcast %25 : vector<1x32xf32> to vector<8x32xf32>
    %27 = arith.mulf %24, %26 : vector<8x32xf32>
    %28 = vector.shape_cast %4 : vector<32xf32> to vector<1x32xf32>
    %29 = vector.broadcast %28 : vector<1x32xf32> to vector<8x32xf32>
    %30 = arith.addf %27, %29 : vector<8x32xf32>
    %31 = arith.truncf %30 : vector<8x32xf32> to vector<8x32xbf16>
    %c0_9 = arith.constant 0 : index
    %c0_10 = arith.constant 0 : index
    %32 = vector.load %arg4[%c0_9, %c0_10] : memref<32x96xbf16, #tpu.memory_space<vmem>>, vector<32x96xbf16>
    %cst_11 = arith.constant dense<0.000000e+00> : vector<8x96xf32>
    %33 = tpu.matmul %31, %32, %cst_11 {dimension_numbers = #tpu.dot_dimension_numbers<[1], [0], [0], [1], [0, 0, 1, 1], [], []>} : vector<8x32xbf16>, vector<32x96xbf16>, vector<8x96xf32> -> vector<8x96xf32>
    %c0_12 = arith.constant 0 : index
    %c0_13 = arith.constant 0 : index
    %34 = vector.load %arg5[%c0_12, %c0_13] : memref<1x96xf32, #tpu.memory_space<vmem>>, vector<1x96xf32>
    %35 = vector.shape_cast %34 : vector<1x96xf32> to vector<96xf32>
    %36 = vector.shape_cast %35 : vector<96xf32> to vector<1x96xf32>
    %37 = vector.broadcast %36 : vector<1x96xf32> to vector<8x96xf32>
    %38 = arith.addf %33, %37 : vector<8x96xf32>
    %39 = arith.truncf %38 : vector<8x96xf32> to vector<8x96xbf16>
    %c0_14 = arith.constant 0 : index
    %c0_15 = arith.constant 0 : index
    %40 = vector.load %arg15[%c0_14, %c0_15] : memref<8x96xbf16, #tpu.memory_space<vmem>>, vector<8x96xbf16>
    tpu.vector_store %arg15[%c0_14, %c0_15], %39 {strides = array<i32>} : memref<8x96xbf16, #tpu.memory_space<vmem>>, vector<8x96xbf16>,
    %c0_i32 = arith.constant 0 : i32
    %c8_i32 = arith.constant 8 : i32
    %41 = arith.muli %c0_i32, %c8_i32 : i32
    %42 = tpu.assume_multiple %41, 8 : i32
    %43 = arith.index_cast %42 : i32 to index
    %c0_16 = arith.constant 0 : index
    %44 = vector.load %arg15[%43, %c0_16] : memref<8x96xbf16, #tpu.memory_space<vmem>>, vector<8x32xbf16>
    %45 = arith.index_cast %42 : i32 to index
    %c32 = arith.constant 32 : index
    %46 = vector.load %arg15[%45, %c32] : memref<8x96xbf16, #tpu.memory_space<vmem>>, vector<8x32xbf16>
    %47 = arith.index_cast %42 : i32 to index
    %c64 = arith.constant 64 : index
    %48 = vector.load %arg15[%47, %c64] : memref<8x96xbf16, #tpu.memory_space<vmem>>, vector<8x32xbf16>
    %49 = vector.extract_strided_slice %44 {offsets = [0, 0], sizes = [8, 8], strides = [1, 1]} : vector<8x32xbf16> to vector<8x8xbf16>
    %50 = vector.extract_strided_slice %46 {offsets = [0, 0], sizes = [8, 8], strides = [1, 1]} : vector<8x32xbf16> to vector<8x8xbf16>
    %51 = vector.extract_strided_slice %48 {offsets = [0, 0], sizes = [8, 8], strides = [1, 1]} : vector<8x32xbf16> to vector<8x8xbf16>
    %cst_17 = arith.constant dense<0.000000e+00> : vector<8x8xf32>
    %52 = tpu.matmul %49, %50, %cst_17 {dimension_numbers = #tpu.dot_dimension_numbers<[1], [1], [0], [0], [0, 0, 1, 0], [], []>} : vector<8x8xbf16>, vector<8x8xbf16>, vector<8x8xf32> -> vector<8x8xf32>
    %cst_18 = arith.constant dense<0xFF800000> : vector<8xf32>
    %53 = vector.multi_reduction <maximumf>, %52, %cst_18 [1] : vector<8x8xf32> to vector<8xf32>
    %54 = vector.shape_cast %53 : vector<8xf32> to vector<8x1xf32>
    %55 = vector.broadcast %54 : vector<8x1xf32> to vector<8x8xf32>
    %56 = arith.subf %52, %55 : vector<8x8xf32>
    %57 = math.exp %56 : vector<8x8xf32>
    %cst_19 = arith.constant dense<0.000000e+00> : vector<8xf32>
    %58 = vector.multi_reduction <add>, %57, %cst_19 [1] : vector<8x8xf32> to vector<8xf32>
    %59 = vector.shape_cast %58 : vector<8xf32> to vector<8x1xf32>
    %60 = tpu.reciprocal %59 {approx = true} : vector<8x1xf32> -> vector<8x1xf32>
    %61 = vector.broadcast %60 : vector<8x1xf32> to vector<8x8xf32>
    %62 = arith.mulf %57, %61 : vector<8x8xf32>
    %63 = arith.truncf %62 : vector<8x8xf32> to vector<8x8xbf16>
    %cst_20 = arith.constant dense<0.000000e+00> : vector<8x8xf32>
    %64 = tpu.matmul %63, %51, %cst_20 {dimension_numbers = #tpu.dot_dimension_numbers<[1], [0], [0], [1], [0, 0, 1, 1], [], []>} : vector<8x8xbf16>, vector<8x8xbf16>, vector<8x8xf32> -> vector<8x8xf32>
    %65 = arith.truncf %64 : vector<8x8xf32> to vector<8x8xbf16>
    %66 = vector.extract_strided_slice %44 {offsets = [0, 8], sizes = [8, 8], strides = [1, 1]} : vector<8x32xbf16> to vector<8x8xbf16>
    %67 = vector.extract_strided_slice %46 {offsets = [0, 8], sizes = [8, 8], strides = [1, 1]} : vector<8x32xbf16> to vector<8x8xbf16>
    %68 = vector.extract_strided_slice %48 {offsets = [0, 8], sizes = [8, 8], strides = [1, 1]} : vector<8x32xbf16> to vector<8x8xbf16>
    %cst_21 = arith.constant dense<0.000000e+00> : vector<8x8xf32>
    %69 = tpu.matmul %66, %67, %cst_21 {dimension_numbers = #tpu.dot_dimension_numbers<[1], [1], [0], [0], [0, 0, 1, 0], [], []>} : vector<8x8xbf16>, vector<8x8xbf16>, vector<8x8xf32> -> vector<8x8xf32>
    %cst_22 = arith.constant dense<0xFF800000> : vector<8xf32>
    %70 = vector.multi_reduction <maximumf>, %69, %cst_22 [1] : vector<8x8xf32> to vector<8xf32>
    %71 = vector.shape_cast %70 : vector<8xf32> to vector<8x1xf32>
    %72 = vector.broadcast %71 : vector<8x1xf32> to vector<8x8xf32>
    %73 = arith.subf %69, %72 : vector<8x8xf32>
    %74 = math.exp %73 : vector<8x8xf32>
    %cst_23 = arith.constant dense<0.000000e+00> : vector<8xf32>
    %75 = vector.multi_reduction <add>, %74, %cst_23 [1] : vector<8x8xf32> to vector<8xf32>
    %76 = vector.shape_cast %75 : vector<8xf32> to vector<8x1xf32>
    %77 = tpu.reciprocal %76 {approx = true} : vector<8x1xf32> -> vector<8x1xf32>
    %78 = vector.broadcast %77 : vector<8x1xf32> to vector<8x8xf32>
    %79 = arith.mulf %74, %78 : vector<8x8xf32>
    %80 = arith.truncf %79 : vector<8x8xf32> to vector<8x8xbf16>
    %cst_24 = arith.constant dense<0.000000e+00> : vector<8x8xf32>
    %81 = tpu.matmul %80, %68, %cst_24 {dimension_numbers = #tpu.dot_dimension_numbers<[1], [0], [0], [1], [0, 0, 1, 1], [], []>} : vector<8x8xbf16>, vector<8x8xbf16>, vector<8x8xf32> -> vector<8x8xf32>
    %82 = arith.truncf %81 : vector<8x8xf32> to vector<8x8xbf16>
    %83 = vector.extract_strided_slice %44 {offsets = [0, 16], sizes = [8, 8], strides = [1, 1]} : vector<8x32xbf16> to vector<8x8xbf16>
    %84 = vector.extract_strided_slice %46 {offsets = [0, 16], sizes = [8, 8], strides = [1, 1]} : vector<8x32xbf16> to vector<8x8xbf16>
    %85 = vector.extract_strided_slice %48 {offsets = [0, 16], sizes = [8, 8], strides = [1, 1]} : vector<8x32xbf16> to vector<8x8xbf16>
    %cst_25 = arith.constant dense<0.000000e+00> : vector<8x8xf32>
    %86 = tpu.matmul %83, %84, %cst_25 {dimension_numbers = #tpu.dot_dimension_numbers<[1], [1], [0], [0], [0, 0, 1, 0], [], []>} : vector<8x8xbf16>, vector<8x8xbf16>, vector<8x8xf32> -> vector<8x8xf32>
    %cst_26 = arith.constant dense<0xFF800000> : vector<8xf32>
    %87 = vector.multi_reduction <maximumf>, %86, %cst_26 [1] : vector<8x8xf32> to vector<8xf32>
    %88 = vector.shape_cast %87 : vector<8xf32> to vector<8x1xf32>
    %89 = vector.broadcast %88 : vector<8x1xf32> to vector<8x8xf32>
    %90 = arith.subf %86, %89 : vector<8x8xf32>
    %91 = math.exp %90 : vector<8x8xf32>
    %cst_27 = arith.constant dense<0.000000e+00> : vector<8xf32>
    %92 = vector.multi_reduction <add>, %91, %cst_27 [1] : vector<8x8xf32> to vector<8xf32>
    %93 = vector.shape_cast %92 : vector<8xf32> to vector<8x1xf32>
    %94 = tpu.reciprocal %93 {approx = true} : vector<8x1xf32> -> vector<8x1xf32>
    %95 = vector.broadcast %94 : vector<8x1xf32> to vector<8x8xf32>
    %96 = arith.mulf %91, %95 : vector<8x8xf32>
    %97 = arith.truncf %96 : vector<8x8xf32> to vector<8x8xbf16>
    %cst_28 = arith.constant dense<0.000000e+00> : vector<8x8xf32>
    %98 = tpu.matmul %97, %85, %cst_28 {dimension_numbers = #tpu.dot_dimension_numbers<[1], [0], [0], [1], [0, 0, 1, 1], [], []>} : vector<8x8xbf16>, vector<8x8xbf16>, vector<8x8xf32> -> vector<8x8xf32>
    %99 = arith.truncf %98 : vector<8x8xf32> to vector<8x8xbf16>
    %100 = vector.extract_strided_slice %44 {offsets = [0, 24], sizes = [8, 8], strides = [1, 1]} : vector<8x32xbf16> to vector<8x8xbf16>
    %101 = vector.extract_strided_slice %46 {offsets = [0, 24], sizes = [8, 8], strides = [1, 1]} : vector<8x32xbf16> to vector<8x8xbf16>
    %102 = vector.extract_strided_slice %48 {offsets = [0, 24], sizes = [8, 8], strides = [1, 1]} : vector<8x32xbf16> to vector<8x8xbf16>
    %cst_29 = arith.constant dense<0.000000e+00> : vector<8x8xf32>
    %103 = tpu.matmul %100, %101, %cst_29 {dimension_numbers = #tpu.dot_dimension_numbers<[1], [1], [0], [0], [0, 0, 1, 0], [], []>} : vector<8x8xbf16>, vector<8x8xbf16>, vector<8x8xf32> -> vector<8x8xf32>
    %cst_30 = arith.constant dense<0xFF800000> : vector<8xf32>
    %104 = vector.multi_reduction <maximumf>, %103, %cst_30 [1] : vector<8x8xf32> to vector<8xf32>
    %105 = vector.shape_cast %104 : vector<8xf32> to vector<8x1xf32>
    %106 = vector.broadcast %105 : vector<8x1xf32> to vector<8x8xf32>
    %107 = arith.subf %103, %106 : vector<8x8xf32>
    %108 = math.exp %107 : vector<8x8xf32>
    %cst_31 = arith.constant dense<0.000000e+00> : vector<8xf32>
    %109 = vector.multi_reduction <add>, %108, %cst_31 [1] : vector<8x8xf32> to vector<8xf32>
    %110 = vector.shape_cast %109 : vector<8xf32> to vector<8x1xf32>
    %111 = tpu.reciprocal %110 {approx = true} : vector<8x1xf32> -> vector<8x1xf32>
    %112 = vector.broadcast %111 : vector<8x1xf32> to vector<8x8xf32>
    %113 = arith.mulf %108, %112 : vector<8x8xf32>
    %114 = arith.truncf %113 : vector<8x8xf32> to vector<8x8xbf16>
    %cst_32 = arith.constant dense<0.000000e+00> : vector<8x8xf32>
    %115 = tpu.matmul %114, %102, %cst_32 {dimension_numbers = #tpu.dot_dimension_numbers<[1], [0], [0], [1], [0, 0, 1, 1], [], []>} : vector<8x8xbf16>, vector<8x8xbf16>, vector<8x8xf32> -> vector<8x8xf32>
    %116 = arith.truncf %115 : vector<8x8xf32> to vector<8x8xbf16>
    %117 = tpu.concatenate %65, %82, %99, %116 in 1 : vector<8x8xbf16>, vector<8x8xbf16>, vector<8x8xbf16>, vector<8x8xbf16> -> vector<8x32xbf16>
    %118 = arith.index_cast %42 : i32 to index
    %c0_33 = arith.constant 0 : index
    %119 = vector.load %arg16[%118, %c0_33] : memref<8x32xbf16, #tpu.memory_space<vmem>>, vector<8x32xbf16>
    tpu.vector_store %arg16[%118, %c0_33], %117 {strides = array<i32>} : memref<8x32xbf16, #tpu.memory_space<vmem>>, vector<8x32xbf16>,
    %c1_i32 = arith.constant 1 : i32
    %c0_34 = arith.constant 0 : index
    %c0_35 = arith.constant 0 : index
    %120 = vector.load %arg16[%c0_34, %c0_35] : memref<8x32xbf16, #tpu.memory_space<vmem>>, vector<8x32xbf16>
    %c0_36 = arith.constant 0 : index
    %c0_37 = arith.constant 0 : index
    %121 = vector.load %arg6[%c0_36, %c0_37] : memref<32x32xbf16, #tpu.memory_space<vmem>>, vector<32x32xbf16>
    %cst_38 = arith.constant dense<0.000000e+00> : vector<8x32xf32>
    %122 = tpu.matmul %120, %121, %cst_38 {dimension_numbers = #tpu.dot_dimension_numbers<[1], [0], [0], [1], [0, 0, 1, 1], [], []>} : vector<8x32xbf16>, vector<32x32xbf16>, vector<8x32xf32> -> vector<8x32xf32>
    %c0_39 = arith.constant 0 : index
    %c0_40 = arith.constant 0 : index
    %123 = vector.load %arg7[%c0_39, %c0_40] : memref<1x32xf32, #tpu.memory_space<vmem>>, vector<1x32xf32>
    %124 = vector.shape_cast %123 : vector<1x32xf32> to vector<32xf32>
    %125 = vector.shape_cast %124 : vector<32xf32> to vector<1x32xf32>
    %126 = vector.broadcast %125 : vector<1x32xf32> to vector<8x32xf32>
    %127 = arith.addf %122, %126 : vector<8x32xf32>
    %128 = arith.addf %0, %127 : vector<8x32xf32>
    %c0_41 = arith.constant 0 : index
    %c0_42 = arith.constant 0 : index
    %129 = vector.load %arg8[%c0_41, %c0_42] : memref<1x32xf32, #tpu.memory_space<vmem>>, vector<1x32xf32>
    %130 = vector.shape_cast %129 : vector<1x32xf32> to vector<32xf32>
    %c0_43 = arith.constant 0 : index
    %c0_44 = arith.constant 0 : index
    %131 = vector.load %arg9[%c0_43, %c0_44] : memref<1x32xf32, #tpu.memory_space<vmem>>, vector<1x32xf32>
    %132 = vector.shape_cast %131 : vector<1x32xf32> to vector<32xf32>
    %cst_45 = arith.constant dense<0.000000e+00> : vector<8xf32>
    %133 = vector.multi_reduction <add>, %128, %cst_45 [1] : vector<8x32xf32> to vector<8xf32>
    %134 = vector.shape_cast %133 : vector<8xf32> to vector<8x1xf32>
    %cst_46 = arith.constant 3.200000e+01 : f32
    %135 = vector.broadcast %cst_46 : f32 to vector<8x1xf32>
    %136 = arith.divf %134, %135 : vector<8x1xf32>
    %137 = vector.broadcast %136 : vector<8x1xf32> to vector<8x32xf32>
    %138 = arith.subf %128, %137 : vector<8x32xf32>
    %139 = vector.broadcast %136 : vector<8x1xf32> to vector<8x32xf32>
    %140 = arith.subf %128, %139 : vector<8x32xf32>
    %141 = arith.mulf %138, %140 : vector<8x32xf32>
    %cst_47 = arith.constant dense<0.000000e+00> : vector<8xf32>
    %142 = vector.multi_reduction <add>, %141, %cst_47 [1] : vector<8x32xf32> to vector<8xf32>
    %143 = vector.shape_cast %142 : vector<8xf32> to vector<8x1xf32>
    %cst_48 = arith.constant 3.200000e+01 : f32
    %144 = vector.broadcast %cst_48 : f32 to vector<8x1xf32>
    %145 = arith.divf %143, %144 : vector<8x1xf32>
    %cst_49 = arith.constant 9.99999974E-6 : f32
    %146 = vector.broadcast %cst_49 : f32 to vector<8x1xf32>
    %147 = arith.addf %145, %146 : vector<8x1xf32>
    %148 = math.rsqrt %147 : vector<8x1xf32>
    %149 = vector.broadcast %136 : vector<8x1xf32> to vector<8x32xf32>
    %150 = arith.subf %128, %149 : vector<8x32xf32>
    %151 = vector.broadcast %148 : vector<8x1xf32> to vector<8x32xf32>
    %152 = arith.mulf %150, %151 : vector<8x32xf32>
    %153 = vector.shape_cast %130 : vector<32xf32> to vector<1x32xf32>
    %154 = vector.broadcast %153 : vector<1x32xf32> to vector<8x32xf32>
    %155 = arith.mulf %152, %154 : vector<8x32xf32>
    %156 = vector.shape_cast %132 : vector<32xf32> to vector<1x32xf32>
    %157 = vector.broadcast %156 : vector<1x32xf32> to vector<8x32xf32>
    %158 = arith.addf %155, %157 : vector<8x32xf32>
    %159 = arith.truncf %158 : vector<8x32xf32> to vector<8x32xbf16>
    %c0_50 = arith.constant 0 : index
    %c0_51 = arith.constant 0 : index
    %160 = vector.load %arg10[%c0_50, %c0_51] : memref<32x64xbf16, #tpu.memory_space<vmem>>, vector<32x64xbf16>
    %cst_52 = arith.constant dense<0.000000e+00> : vector<8x64xf32>
    %161 = tpu.matmul %159, %160, %cst_52 {dimension_numbers = #tpu.dot_dimension_numbers<[1], [0], [0], [1], [0, 0, 1, 1], [], []>} : vector<8x32xbf16>, vector<32x64xbf16>, vector<8x64xf32> -> vector<8x64xf32>
    %c0_53 = arith.constant 0 : index
    %c0_54 = arith.constant 0 : index
    %162 = vector.load %arg11[%c0_53, %c0_54] : memref<1x64xf32, #tpu.memory_space<vmem>>, vector<1x64xf32>
    %163 = vector.shape_cast %162 : vector<1x64xf32> to vector<64xf32>
    %164 = vector.shape_cast %163 : vector<64xf32> to vector<1x64xf32>
    %165 = vector.broadcast %164 : vector<1x64xf32> to vector<8x64xf32>
    %166 = arith.addf %161, %165 : vector<8x64xf32>
    %cst_55 = arith.constant 5.000000e-01 : f32
    %167 = vector.broadcast %cst_55 : f32 to vector<8x64xf32>
    %168 = arith.mulf %167, %166 : vector<8x64xf32>
    %cst_56 = arith.constant 0.707106769 : f32
    %169 = vector.broadcast %cst_56 : f32 to vector<8x64xf32>
    %170 = arith.mulf %166, %169 : vector<8x64xf32>
    %cst_57 = arith.constant 0.000000e+00 : f32
    %171 = vector.broadcast %cst_57 : f32 to vector<8x64xf32>
    %172 = arith.cmpf oge, %170, %171 : vector<8x64xf32>
    %cst_58 = arith.constant 1.000000e+00 : f32
    %cst_59 = arith.constant -1.000000e+00 : f32
    %173 = vector.broadcast %cst_58 : f32 to vector<8x64xf32>
    %174 = vector.broadcast %cst_59 : f32 to vector<8x64xf32>
    %175 = arith.select %172, %173, %174 : vector<8x64xi1>, vector<8x64xf32>
    %176 = math.absf %170 : vector<8x64xf32>
    %cst_60 = arith.constant 0.327591091 : f32
    %177 = vector.broadcast %cst_60 : f32 to vector<8x64xf32>
    %178 = arith.mulf %177, %176 : vector<8x64xf32>
    %cst_61 = arith.constant 1.000000e+00 : f32
    %179 = vector.broadcast %cst_61 : f32 to vector<8x64xf32>
    %180 = arith.addf %179, %178 : vector<8x64xf32>
    %181 = tpu.reciprocal %180 {approx = true} : vector<8x64xf32> -> vector<8x64xf32>
    %cst_62 = arith.constant 1.06140542 : f32
    %182 = vector.broadcast %cst_62 : f32 to vector<8x64xf32>
    %183 = arith.mulf %182, %181 : vector<8x64xf32>
    %cst_63 = arith.constant -1.45315206 : f32
    %184 = vector.broadcast %cst_63 : f32 to vector<8x64xf32>
    %185 = arith.addf %183, %184 : vector<8x64xf32>
    %186 = arith.mulf %185, %181 : vector<8x64xf32>
    %cst_64 = arith.constant 1.42141378 : f32
    %187 = vector.broadcast %cst_64 : f32 to vector<8x64xf32>
    %188 = arith.addf %186, %187 : vector<8x64xf32>
    %189 = arith.mulf %188, %181 : vector<8x64xf32>
    %cst_65 = arith.constant -0.284496725 : f32
    %190 = vector.broadcast %cst_65 : f32 to vector<8x64xf32>
    %191 = arith.addf %189, %190 : vector<8x64xf32>
    %192 = arith.mulf %191, %181 : vector<8x64xf32>
    %cst_66 = arith.constant 0.254829586 : f32
    %193 = vector.broadcast %cst_66 : f32 to vector<8x64xf32>
    %194 = arith.addf %192, %193 : vector<8x64xf32>
    %195 = arith.mulf %194, %181 : vector<8x64xf32>
    %cst_67 = arith.constant 0.000000e+00 : f32
    %196 = vector.broadcast %cst_67 : f32 to vector<8x64xf32>
    %197 = arith.subf %196, %176 : vector<8x64xf32>
    %198 = arith.mulf %197, %176 : vector<8x64xf32>
    %199 = math.exp %198 : vector<8x64xf32>
    %200 = arith.mulf %195, %199 : vector<8x64xf32>
    %cst_68 = arith.constant 1.000000e+00 : f32
    %201 = vector.broadcast %cst_68 : f32 to vector<8x64xf32>
    %202 = arith.subf %201, %200 : vector<8x64xf32>
    %203 = arith.mulf %175, %202 : vector<8x64xf32>
    %cst_69 = arith.constant 1.000000e+00 : f32
    %204 = vector.broadcast %cst_69 : f32 to vector<8x64xf32>
    %205 = arith.addf %204, %203 : vector<8x64xf32>
    %206 = arith.mulf %168, %205 : vector<8x64xf32>
    %207 = arith.truncf %206 : vector<8x64xf32> to vector<8x64xbf16>
    %c0_70 = arith.constant 0 : index
    %c0_71 = arith.constant 0 : index
    %208 = vector.load %arg12[%c0_70, %c0_71] : memref<64x32xbf16, #tpu.memory_space<vmem>>, vector<64x32xbf16>
    %cst_72 = arith.constant dense<0.000000e+00> : vector<8x32xf32>
    %209 = tpu.matmul %207, %208, %cst_72 {dimension_numbers = #tpu.dot_dimension_numbers<[1], [0], [0], [1], [0, 0, 1, 1], [], []>} : vector<8x64xbf16>, vector<64x32xbf16>, vector<8x32xf32> -> vector<8x32xf32>
    %210 = arith.addf %128, %209 : vector<8x32xf32>
    %c0_73 = arith.constant 0 : index
    %c0_74 = arith.constant 0 : index
    %211 = vector.load %arg13[%c0_73, %c0_74] : memref<1x32xf32, #tpu.memory_space<vmem>>, vector<1x32xf32>
    %212 = vector.shape_cast %211 : vector<1x32xf32> to vector<32xf32>
    %213 = vector.shape_cast %212 : vector<32xf32> to vector<1x32xf32>
    %214 = vector.broadcast %213 : vector<1x32xf32> to vector<8x32xf32>
    %215 = arith.addf %210, %214 : vector<8x32xf32>
    %c0_75 = arith.constant 0 : index
    %c0_76 = arith.constant 0 : index
    %216 = vector.load %arg14[%c0_75, %c0_76] : memref<8x32xf32, #tpu.memory_space<vmem>>, vector<8x32xf32>
    tpu.vector_store %arg14[%c0_75, %c0_76], %215 {strides = array<i32>} : memref<8x32xf32, #tpu.memory_space<vmem>>, vector<8x32xf32>,
    return
  }
  func.func @transform_0(%arg0: i32) -> (i32, i32) {
    %c0_i32 = arith.constant 0 : i32
    %c0_i32_0 = arith.constant 0 : i32
    return %arg0, %c0_i32 : i32, i32
  }
  func.func @transform_1(%arg0: i32) -> (i32, i32) {
    %c0_i32 = arith.constant 0 : i32
    %c0_i32_0 = arith.constant 0 : i32
    %c0_i32_1 = arith.constant 0 : i32
    return %c0_i32, %c0_i32_0 : i32, i32
  }
  func.func @transform_2(%arg0: i32) -> (i32, i32) {
    %c0_i32 = arith.constant 0 : i32
    %c0_i32_0 = arith.constant 0 : i32
    %c0_i32_1 = arith.constant 0 : i32
    return %c0_i32, %c0_i32_0 : i32, i32
  }
  func.func @transform_3(%arg0: i32) -> (i32, i32) {
    %c0_i32 = arith.constant 0 : i32
    %c0_i32_0 = arith.constant 0 : i32
    %c0_i32_1 = arith.constant 0 : i32
    return %c0_i32, %c0_i32_0 : i32, i32
  }
  func.func @transform_4(%arg0: i32) -> (i32, i32) {
    %c0_i32 = arith.constant 0 : i32
    %c0_i32_0 = arith.constant 0 : i32
    %c0_i32_1 = arith.constant 0 : i32
    return %c0_i32, %c0_i32_0 : i32, i32
  }
  func.func @transform_5(%arg0: i32) -> (i32, i32) {
    %c0_i32 = arith.constant 0 : i32
    %c0_i32_0 = arith.constant 0 : i32
    %c0_i32_1 = arith.constant 0 : i32
    return %c0_i32, %c0_i32_0 : i32, i32
  }
  func.func @transform_6(%arg0: i32) -> (i32, i32) {
    %c0_i32 = arith.constant 0 : i32
    %c0_i32_0 = arith.constant 0 : i32
    %c0_i32_1 = arith.constant 0 : i32
    return %c0_i32, %c0_i32_0 : i32, i32
  }
  func.func @transform_7(%arg0: i32) -> (i32, i32) {
    %c0_i32 = arith.constant 0 : i32
    %c0_i32_0 = arith.constant 0 : i32
    %c0_i32_1 = arith.constant 0 : i32
    return %c0_i32, %c0_i32_0 : i32, i32
  }
  func.func @transform_8(%arg0: i32) -> (i32, i32) {
    %c0_i32 = arith.constant 0 : i32
    %c0_i32_0 = arith.constant 0 : i32
    %c0_i32_1 = arith.constant 0 : i32
    return %c0_i32, %c0_i32_0 : i32, i32
  }
  func.func @transform_9(%arg0: i32) -> (i32, i32) {
    %c0_i32 = arith.constant 0 : i32
    %c0_i32_0 = arith.constant 0 : i32
    %c0_i32_1 = arith.constant 0 : i32
    return %c0_i32, %c0_i32_0 : i32, i32
  }
  func.func @transform_10(%arg0: i32) -> (i32, i32) {
    %c0_i32 = arith.constant 0 : i32
    %c0_i32_0 = arith.constant 0 : i32
    %c0_i32_1 = arith.constant 0 : i32
    return %c0_i32, %c0_i32_0 : i32, i32
  }
  func.func @transform_11(%arg0: i32) -> (i32, i32) {
    %c0_i32 = arith.constant 0 : i32
    %c0_i32_0 = arith.constant 0 : i32
    %c0_i32_1 = arith.constant 0 : i32
    return %c0_i32, %c0_i32_0 : i32, i32
  }
  func.func @transform_12(%arg0: i32) -> (i32, i32) {
    %c0_i32 = arith.constant 0 : i32
    %c0_i32_0 = arith.constant 0 : i32
    %c0_i32_1 = arith.constant 0 : i32
    return %c0_i32, %c0_i32_0 : i32, i32
  }
  func.func @transform_13(%arg0: i32) -> (i32, i32) {
    %c0_i32 = arith.constant 0 : i32
    %c0_i32_0 = arith.constant 0 : i32
    return %arg0, %c0_i32 : i32, i32
  }
}

module attributes {stable_mosaic.version = 11 : i64} {
  func.func @encoder_block_kernel(%arg0: i32, %arg1: memref<8x32xf32, #tpu.memory_space<vmem>>, %arg2: memref<1x32xf32, #tpu.memory_space<vmem>>, %arg3: memref<1x32xf32, #tpu.memory_space<vmem>>, %arg4: memref<32x96xbf16, #tpu.memory_space<vmem>>, %arg5: memref<1x96xf32, #tpu.memory_space<vmem>>, %arg6: memref<32x32xbf16, #tpu.memory_space<vmem>>, %arg7: memref<1x32xf32, #tpu.memory_space<vmem>>, %arg8: memref<1x32xf32, #tpu.memory_space<vmem>>, %arg9: memref<1x32xf32, #tpu.memory_space<vmem>>, %arg10: memref<32x64xbf16, #tpu.memory_space<vmem>>, %arg11: memref<1x64xf32, #tpu.memory_space<vmem>>, %arg12: memref<64x32xbf16, #tpu.memory_space<vmem>>, %arg13: memref<1x32xf32, #tpu.memory_space<vmem>>, %arg14: memref<8x32xf32, #tpu.memory_space<vmem>>, %arg15: memref<8x96xbf16, #tpu.memory_space<vmem>>, %arg16: memref<8x32xbf16, #tpu.memory_space<vmem>>) attributes {dimension_semantics = [#tpu.dimension_semantics<parallel>], iteration_bounds = array<i64: 2>, scalar_prefetch = 0 : i64, scratch_operands = 2 : i64, tpu.core_type = #tpu.core_type<tc>, window_params = [{transform_indices = @transform_0, window_bounds = array<i64: 8, 32>}, {pipeline_mode = #tpu.pipeline_mode<synchronous>, transform_indices = @transform_1, window_bounds = array<i64: 1, 32>}, {pipeline_mode = #tpu.pipeline_mode<synchronous>, transform_indices = @transform_2, window_bounds = array<i64: 1, 32>}, {pipeline_mode = #tpu.pipeline_mode<synchronous>, transform_indices = @transform_3, window_bounds = array<i64: 32, 96>}, {pipeline_mode = #tpu.pipeline_mode<synchronous>, transform_indices = @transform_4, window_bounds = array<i64: 1, 96>}, {pipeline_mode = #tpu.pipeline_mode<synchronous>, transform_indices = @transform_5, window_bounds = array<i64: 32, 32>}, {pipeline_mode = #tpu.pipeline_mode<synchronous>, transform_indices = @transform_6, window_bounds = array<i64: 1, 32>}, {pipeline_mode = #tpu.pipeline_mode<synchronous>, transform_indices = @transform_7, window_bounds = array<i64: 1, 32>}, {pipeline_mode = #tpu.pipeline_mode<synchronous>, transform_indices = @transform_8, window_bounds = array<i64: 1, 32>}, {pipeline_mode = #tpu.pipeline_mode<synchronous>, transform_indices = @transform_9, window_bounds = array<i64: 32, 64>}, {pipeline_mode = #tpu.pipeline_mode<synchronous>, transform_indices = @transform_10, window_bounds = array<i64: 1, 64>}, {pipeline_mode = #tpu.pipeline_mode<synchronous>, transform_indices = @transform_11, window_bounds = array<i64: 64, 32>}, {pipeline_mode = #tpu.pipeline_mode<synchronous>, transform_indices = @transform_12, window_bounds = array<i64: 1, 32>}, {transform_indices = @transform_13, window_bounds = array<i64: 8, 32>}]} {
    %c0 = arith.constant 0 : index
    %c0_0 = arith.constant 0 : index
    %0 = vector.load %arg1[%c0, %c0_0] : memref<8x32xf32, #tpu.memory_space<vmem>>, vector<8x32xf32>
    %c0_1 = arith.constant 0 : index
    %c0_2 = arith.constant 0 : index
    %1 = vector.load %arg2[%c0_1, %c0_2] : memref<1x32xf32, #tpu.memory_space<vmem>>, vector<1x32xf32>
    %2 = vector.shape_cast %1 : vector<1x32xf32> to vector<32xf32>
    %c0_3 = arith.constant 0 : index
    %c0_4 = arith.constant 0 : index
    %3 = vector.load %arg3[%c0_3, %c0_4] : memref<1x32xf32, #tpu.memory_space<vmem>>, vector<1x32xf32>
    %4 = vector.shape_cast %3 : vector<1x32xf32> to vector<32xf32>
    %cst = arith.constant dense<0.000000e+00> : vector<8xf32>
    %5 = vector.multi_reduction <add>, %0, %cst [1] : vector<8x32xf32> to vector<8xf32>
    %6 = vector.shape_cast %5 : vector<8xf32> to vector<8x1xf32>
    %cst_5 = arith.constant 3.200000e+01 : f32
    %7 = vector.broadcast %cst_5 : f32 to vector<8x1xf32>
    %8 = arith.divf %6, %7 : vector<8x1xf32>
    %9 = vector.broadcast %8 : vector<8x1xf32> to vector<8x32xf32>
    %10 = arith.subf %0, %9 : vector<8x32xf32>
    %11 = vector.broadcast %8 : vector<8x1xf32> to vector<8x32xf32>
    %12 = arith.subf %0, %11 : vector<8x32xf32>
    %13 = arith.mulf %10, %12 : vector<8x32xf32>
    %cst_6 = arith.constant dense<0.000000e+00> : vector<8xf32>
    %14 = vector.multi_reduction <add>, %13, %cst_6 [1] : vector<8x32xf32> to vector<8xf32>
    %15 = vector.shape_cast %14 : vector<8xf32> to vector<8x1xf32>
    %cst_7 = arith.constant 3.200000e+01 : f32
    %16 = vector.broadcast %cst_7 : f32 to vector<8x1xf32>
    %17 = arith.divf %15, %16 : vector<8x1xf32>
    %cst_8 = arith.constant 9.99999974E-6 : f32
    %18 = vector.broadcast %cst_8 : f32 to vector<8x1xf32>
    %19 = arith.addf %17, %18 : vector<8x1xf32>
    %20 = math.rsqrt %19 : vector<8x1xf32>
    %21 = vector.broadcast %8 : vector<8x1xf32> to vector<8x32xf32>
    %22 = arith.subf %0, %21 : vector<8x32xf32>
    %23 = vector.broadcast %20 : vector<8x1xf32> to vector<8x32xf32>
    %24 = arith.mulf %22, %23 : vector<8x32xf32>
    %25 = vector.shape_cast %2 : vector<32xf32> to vector<1x32xf32>
    %26 = vector.broadcast %25 : vector<1x32xf32> to vector<8x32xf32>
    %27 = arith.mulf %24, %26 : vector<8x32xf32>
    %28 = vector.shape_cast %4 : vector<32xf32> to vector<1x32xf32>
    %29 = vector.broadcast %28 : vector<1x32xf32> to vector<8x32xf32>
    %30 = arith.addf %27, %29 : vector<8x32xf32>
    %31 = arith.truncf %30 : vector<8x32xf32> to vector<8x32xbf16>
    %c0_9 = arith.constant 0 : index
    %c0_10 = arith.constant 0 : index
    %32 = vector.load %arg4[%c0_9, %c0_10] : memref<32x96xbf16, #tpu.memory_space<vmem>>, vector<32x96xbf16>
    %cst_11 = arith.constant dense<0.000000e+00> : vector<8x96xf32>
    %33 = tpu.matmul %31, %32, %cst_11 {dimension_numbers = #tpu.dot_dimension_numbers<[1], [0], [0], [1], [0, 0, 1, 1], [], []>} : vector<8x32xbf16>, vector<32x96xbf16>, vector<8x96xf32> -> vector<8x96xf32>
    %c0_12 = arith.constant 0 : index
    %c0_13 = arith.constant 0 : index
    %34 = vector.load %arg5[%c0_12, %c0_13] : memref<1x96xf32, #tpu.memory_space<vmem>>, vector<1x96xf32>
    %35 = vector.shape_cast %34 : vector<1x96xf32> to vector<96xf32>
    %36 = vector.shape_cast %35 : vector<96xf32> to vector<1x96xf32>
    %37 = vector.broadcast %36 : vector<1x96xf32> to vector<8x96xf32>
    %38 = arith.addf %33, %37 : vector<8x96xf32>
    %39 = arith.truncf %38 : vector<8x96xf32> to vector<8x96xbf16>
    %c0_14 = arith.constant 0 : index
    %c0_15 = arith.constant 0 : index
    %40 = vector.load %arg15[%c0_14, %c0_15] : memref<8x96xbf16, #tpu.memory_space<vmem>>, vector<8x96xbf16>
    tpu.vector_store %arg15[%c0_14, %c0_15], %39 {strides = array<i32>} : memref<8x96xbf16, #tpu.memory_space<vmem>>, vector<8x96xbf16>,
    %c0_i32 = arith.constant 0 : i32
    %c8_i32 = arith.constant 8 : i32
    %41 = arith.muli %c0_i32, %c8_i32 : i32
    %42 = tpu.assume_multiple %41, 8 : i32
    %43 = arith.index_cast %42 : i32 to index
    %c0_16 = arith.constant 0 : index
    %44 = vector.load %arg15[%43, %c0_16] : memref<8x96xbf16, #tpu.memory_space<vmem>>, vector<8x32xbf16>
    %45 = arith.index_cast %42 : i32 to index
    %c32 = arith.constant 32 : index
    %46 = vector.load %arg15[%45, %c32] : memref<8x96xbf16, #tpu.memory_space<vmem>>, vector<8x32xbf16>
    %47 = arith.index_cast %42 : i32 to index
    %c64 = arith.constant 64 : index
    %48 = vector.load %arg15[%47, %c64] : memref<8x96xbf16, #tpu.memory_space<vmem>>, vector<8x32xbf16>
    %49 = vector.extract_strided_slice %44 {offsets = [0, 0], sizes = [8, 8], strides = [1, 1]} : vector<8x32xbf16> to vector<8x8xbf16>
    %50 = vector.extract_strided_slice %46 {offsets = [0, 0], sizes = [8, 8], strides = [1, 1]} : vector<8x32xbf16> to vector<8x8xbf16>
    %51 = vector.extract_strided_slice %48 {offsets = [0, 0], sizes = [8, 8], strides = [1, 1]} : vector<8x32xbf16> to vector<8x8xbf16>
    %cst_17 = arith.constant dense<0.000000e+00> : vector<8x8xf32>
    %52 = tpu.matmul %49, %50, %cst_17 {dimension_numbers = #tpu.dot_dimension_numbers<[1], [1], [0], [0], [0, 0, 1, 0], [], []>} : vector<8x8xbf16>, vector<8x8xbf16>, vector<8x8xf32> -> vector<8x8xf32>
    %cst_18 = arith.constant dense<0xFF800000> : vector<8xf32>
    %53 = vector.multi_reduction <maximumf>, %52, %cst_18 [1] : vector<8x8xf32> to vector<8xf32>
    %54 = vector.shape_cast %53 : vector<8xf32> to vector<8x1xf32>
    %55 = vector.broadcast %54 : vector<8x1xf32> to vector<8x8xf32>
    %56 = arith.subf %52, %55 : vector<8x8xf32>
    %57 = math.exp %56 : vector<8x8xf32>
    %cst_19 = arith.constant dense<0.000000e+00> : vector<8xf32>
    %58 = vector.multi_reduction <add>, %57, %cst_19 [1] : vector<8x8xf32> to vector<8xf32>
    %59 = vector.shape_cast %58 : vector<8xf32> to vector<8x1xf32>
    %60 = tpu.reciprocal %59 {approx = true} : vector<8x1xf32> -> vector<8x1xf32>
    %61 = vector.broadcast %60 : vector<8x1xf32> to vector<8x8xf32>
    %62 = arith.mulf %57, %61 : vector<8x8xf32>
    %63 = arith.truncf %62 : vector<8x8xf32> to vector<8x8xbf16>
    %cst_20 = arith.constant dense<0.000000e+00> : vector<8x8xf32>
    %64 = tpu.matmul %63, %51, %cst_20 {dimension_numbers = #tpu.dot_dimension_numbers<[1], [0], [0], [1], [0, 0, 1, 1], [], []>} : vector<8x8xbf16>, vector<8x8xbf16>, vector<8x8xf32> -> vector<8x8xf32>
    %65 = arith.truncf %64 : vector<8x8xf32> to vector<8x8xbf16>
    %66 = vector.extract_strided_slice %44 {offsets = [0, 8], sizes = [8, 8], strides = [1, 1]} : vector<8x32xbf16> to vector<8x8xbf16>
    %67 = vector.extract_strided_slice %46 {offsets = [0, 8], sizes = [8, 8], strides = [1, 1]} : vector<8x32xbf16> to vector<8x8xbf16>
    %68 = vector.extract_strided_slice %48 {offsets = [0, 8], sizes = [8, 8], strides = [1, 1]} : vector<8x32xbf16> to vector<8x8xbf16>
    %cst_21 = arith.constant dense<0.000000e+00> : vector<8x8xf32>
    %69 = tpu.matmul %66, %67, %cst_21 {dimension_numbers = #tpu.dot_dimension_numbers<[1], [1], [0], [0], [0, 0, 1, 0], [], []>} : vector<8x8xbf16>, vector<8x8xbf16>, vector<8x8xf32> -> vector<8x8xf32>
    %cst_22 = arith.constant dense<0xFF800000> : vector<8xf32>
    %70 = vector.multi_reduction <maximumf>, %69, %cst_22 [1] : vector<8x8xf32> to vector<8xf32>
    %71 = vector.shape_cast %70 : vector<8xf32> to vector<8x1xf32>
    %72 = vector.broadcast %71 : vector<8x1xf32> to vector<8x8xf32>
    %73 = arith.subf %69, %72 : vector<8x8xf32>
    %74 = math.exp %73 : vector<8x8xf32>
    %cst_23 = arith.constant dense<0.000000e+00> : vector<8xf32>
    %75 = vector.multi_reduction <add>, %74, %cst_23 [1] : vector<8x8xf32> to vector<8xf32>
    %76 = vector.shape_cast %75 : vector<8xf32> to vector<8x1xf32>
    %77 = tpu.reciprocal %76 {approx = true} : vector<8x1xf32> -> vector<8x1xf32>
    %78 = vector.broadcast %77 : vector<8x1xf32> to vector<8x8xf32>
    %79 = arith.mulf %74, %78 : vector<8x8xf32>
    %80 = arith.truncf %79 : vector<8x8xf32> to vector<8x8xbf16>
    %cst_24 = arith.constant dense<0.000000e+00> : vector<8x8xf32>
    %81 = tpu.matmul %80, %68, %cst_24 {dimension_numbers = #tpu.dot_dimension_numbers<[1], [0], [0], [1], [0, 0, 1, 1], [], []>} : vector<8x8xbf16>, vector<8x8xbf16>, vector<8x8xf32> -> vector<8x8xf32>
    %82 = arith.truncf %81 : vector<8x8xf32> to vector<8x8xbf16>
    %83 = vector.extract_strided_slice %44 {offsets = [0, 16], sizes = [8, 8], strides = [1, 1]} : vector<8x32xbf16> to vector<8x8xbf16>
    %84 = vector.extract_strided_slice %46 {offsets = [0, 16], sizes = [8, 8], strides = [1, 1]} : vector<8x32xbf16> to vector<8x8xbf16>
    %85 = vector.extract_strided_slice %48 {offsets = [0, 16], sizes = [8, 8], strides = [1, 1]} : vector<8x32xbf16> to vector<8x8xbf16>
    %cst_25 = arith.constant dense<0.000000e+00> : vector<8x8xf32>
    %86 = tpu.matmul %83, %84, %cst_25 {dimension_numbers = #tpu.dot_dimension_numbers<[1], [1], [0], [0], [0, 0, 1, 0], [], []>} : vector<8x8xbf16>, vector<8x8xbf16>, vector<8x8xf32> -> vector<8x8xf32>
    %cst_26 = arith.constant dense<0xFF800000> : vector<8xf32>
    %87 = vector.multi_reduction <maximumf>, %86, %cst_26 [1] : vector<8x8xf32> to vector<8xf32>
    %88 = vector.shape_cast %87 : vector<8xf32> to vector<8x1xf32>
    %89 = vector.broadcast %88 : vector<8x1xf32> to vector<8x8xf32>
    %90 = arith.subf %86, %89 : vector<8x8xf32>
    %91 = math.exp %90 : vector<8x8xf32>
    %cst_27 = arith.constant dense<0.000000e+00> : vector<8xf32>
    %92 = vector.multi_reduction <add>, %91, %cst_27 [1] : vector<8x8xf32> to vector<8xf32>
    %93 = vector.shape_cast %92 : vector<8xf32> to vector<8x1xf32>
    %94 = tpu.reciprocal %93 {approx = true} : vector<8x1xf32> -> vector<8x1xf32>
    %95 = vector.broadcast %94 : vector<8x1xf32> to vector<8x8xf32>
    %96 = arith.mulf %91, %95 : vector<8x8xf32>
    %97 = arith.truncf %96 : vector<8x8xf32> to vector<8x8xbf16>
    %cst_28 = arith.constant dense<0.000000e+00> : vector<8x8xf32>
    %98 = tpu.matmul %97, %85, %cst_28 {dimension_numbers = #tpu.dot_dimension_numbers<[1], [0], [0], [1], [0, 0, 1, 1], [], []>} : vector<8x8xbf16>, vector<8x8xbf16>, vector<8x8xf32> -> vector<8x8xf32>
    %99 = arith.truncf %98 : vector<8x8xf32> to vector<8x8xbf16>
    %100 = vector.extract_strided_slice %44 {offsets = [0, 24], sizes = [8, 8], strides = [1, 1]} : vector<8x32xbf16> to vector<8x8xbf16>
    %101 = vector.extract_strided_slice %46 {offsets = [0, 24], sizes = [8, 8], strides = [1, 1]} : vector<8x32xbf16> to vector<8x8xbf16>
    %102 = vector.extract_strided_slice %48 {offsets = [0, 24], sizes = [8, 8], strides = [1, 1]} : vector<8x32xbf16> to vector<8x8xbf16>
    %cst_29 = arith.constant dense<0.000000e+00> : vector<8x8xf32>
    %103 = tpu.matmul %100, %101, %cst_29 {dimension_numbers = #tpu.dot_dimension_numbers<[1], [1], [0], [0], [0, 0, 1, 0], [], []>} : vector<8x8xbf16>, vector<8x8xbf16>, vector<8x8xf32> -> vector<8x8xf32>
    %cst_30 = arith.constant dense<0xFF800000> : vector<8xf32>
    %104 = vector.multi_reduction <maximumf>, %103, %cst_30 [1] : vector<8x8xf32> to vector<8xf32>
    %105 = vector.shape_cast %104 : vector<8xf32> to vector<8x1xf32>
    %106 = vector.broadcast %105 : vector<8x1xf32> to vector<8x8xf32>
    %107 = arith.subf %103, %106 : vector<8x8xf32>
    %108 = math.exp %107 : vector<8x8xf32>
    %cst_31 = arith.constant dense<0.000000e+00> : vector<8xf32>
    %109 = vector.multi_reduction <add>, %108, %cst_31 [1] : vector<8x8xf32> to vector<8xf32>
    %110 = vector.shape_cast %109 : vector<8xf32> to vector<8x1xf32>
    %111 = tpu.reciprocal %110 {approx = true} : vector<8x1xf32> -> vector<8x1xf32>
    %112 = vector.broadcast %111 : vector<8x1xf32> to vector<8x8xf32>
    %113 = arith.mulf %108, %112 : vector<8x8xf32>
    %114 = arith.truncf %113 : vector<8x8xf32> to vector<8x8xbf16>
    %cst_32 = arith.constant dense<0.000000e+00> : vector<8x8xf32>
    %115 = tpu.matmul %114, %102, %cst_32 {dimension_numbers = #tpu.dot_dimension_numbers<[1], [0], [0], [1], [0, 0, 1, 1], [], []>} : vector<8x8xbf16>, vector<8x8xbf16>, vector<8x8xf32> -> vector<8x8xf32>
    %116 = arith.truncf %115 : vector<8x8xf32> to vector<8x8xbf16>
    %117 = tpu.concatenate %65, %82, %99, %116 in 1 : vector<8x8xbf16>, vector<8x8xbf16>, vector<8x8xbf16>, vector<8x8xbf16> -> vector<8x32xbf16>
    %118 = arith.index_cast %42 : i32 to index
    %c0_33 = arith.constant 0 : index
    %119 = vector.load %arg16[%118, %c0_33] : memref<8x32xbf16, #tpu.memory_space<vmem>>, vector<8x32xbf16>
    tpu.vector_store %arg16[%118, %c0_33], %117 {strides = array<i32>} : memref<8x32xbf16, #tpu.memory_space<vmem>>, vector<8x32xbf16>,
    %c1_i32 = arith.constant 1 : i32
    %c0_34 = arith.constant 0 : index
    %c0_35 = arith.constant 0 : index
    %120 = vector.load %arg16[%c0_34, %c0_35] : memref<8x32xbf16, #tpu.memory_space<vmem>>, vector<8x32xbf16>
    %c0_36 = arith.constant 0 : index
    %c0_37 = arith.constant 0 : index
    %121 = vector.load %arg6[%c0_36, %c0_37] : memref<32x32xbf16, #tpu.memory_space<vmem>>, vector<32x32xbf16>
    %cst_38 = arith.constant dense<0.000000e+00> : vector<8x32xf32>
    %122 = tpu.matmul %120, %121, %cst_38 {dimension_numbers = #tpu.dot_dimension_numbers<[1], [0], [0], [1], [0, 0, 1, 1], [], []>} : vector<8x32xbf16>, vector<32x32xbf16>, vector<8x32xf32> -> vector<8x32xf32>
    %c0_39 = arith.constant 0 : index
    %c0_40 = arith.constant 0 : index
    %123 = vector.load %arg7[%c0_39, %c0_40] : memref<1x32xf32, #tpu.memory_space<vmem>>, vector<1x32xf32>
    %124 = vector.shape_cast %123 : vector<1x32xf32> to vector<32xf32>
    %125 = vector.shape_cast %124 : vector<32xf32> to vector<1x32xf32>
    %126 = vector.broadcast %125 : vector<1x32xf32> to vector<8x32xf32>
    %127 = arith.addf %122, %126 : vector<8x32xf32>
    %128 = arith.addf %0, %127 : vector<8x32xf32>
    %c0_41 = arith.constant 0 : index
    %c0_42 = arith.constant 0 : index
    %129 = vector.load %arg8[%c0_41, %c0_42] : memref<1x32xf32, #tpu.memory_space<vmem>>, vector<1x32xf32>
    %130 = vector.shape_cast %129 : vector<1x32xf32> to vector<32xf32>
    %c0_43 = arith.constant 0 : index
    %c0_44 = arith.constant 0 : index
    %131 = vector.load %arg9[%c0_43, %c0_44] : memref<1x32xf32, #tpu.memory_space<vmem>>, vector<1x32xf32>
    %132 = vector.shape_cast %131 : vector<1x32xf32> to vector<32xf32>
    %cst_45 = arith.constant dense<0.000000e+00> : vector<8xf32>
    %133 = vector.multi_reduction <add>, %128, %cst_45 [1] : vector<8x32xf32> to vector<8xf32>
    %134 = vector.shape_cast %133 : vector<8xf32> to vector<8x1xf32>
    %cst_46 = arith.constant 3.200000e+01 : f32
    %135 = vector.broadcast %cst_46 : f32 to vector<8x1xf32>
    %136 = arith.divf %134, %135 : vector<8x1xf32>
    %137 = vector.broadcast %136 : vector<8x1xf32> to vector<8x32xf32>
    %138 = arith.subf %128, %137 : vector<8x32xf32>
    %139 = vector.broadcast %136 : vector<8x1xf32> to vector<8x32xf32>
    %140 = arith.subf %128, %139 : vector<8x32xf32>
    %141 = arith.mulf %138, %140 : vector<8x32xf32>
    %cst_47 = arith.constant dense<0.000000e+00> : vector<8xf32>
    %142 = vector.multi_reduction <add>, %141, %cst_47 [1] : vector<8x32xf32> to vector<8xf32>
    %143 = vector.shape_cast %142 : vector<8xf32> to vector<8x1xf32>
    %cst_48 = arith.constant 3.200000e+01 : f32
    %144 = vector.broadcast %cst_48 : f32 to vector<8x1xf32>
    %145 = arith.divf %143, %144 : vector<8x1xf32>
    %cst_49 = arith.constant 9.99999974E-6 : f32
    %146 = vector.broadcast %cst_49 : f32 to vector<8x1xf32>
    %147 = arith.addf %145, %146 : vector<8x1xf32>
    %148 = math.rsqrt %147 : vector<8x1xf32>
    %149 = vector.broadcast %136 : vector<8x1xf32> to vector<8x32xf32>
    %150 = arith.subf %128, %149 : vector<8x32xf32>
    %151 = vector.broadcast %148 : vector<8x1xf32> to vector<8x32xf32>
    %152 = arith.mulf %150, %151 : vector<8x32xf32>
    %153 = vector.shape_cast %130 : vector<32xf32> to vector<1x32xf32>
    %154 = vector.broadcast %153 : vector<1x32xf32> to vector<8x32xf32>
    %155 = arith.mulf %152, %154 : vector<8x32xf32>
    %156 = vector.shape_cast %132 : vector<32xf32> to vector<1x32xf32>
    %157 = vector.broadcast %156 : vector<1x32xf32> to vector<8x32xf32>
    %158 = arith.addf %155, %157 : vector<8x32xf32>
    %159 = arith.truncf %158 : vector<8x32xf32> to vector<8x32xbf16>
    %c0_50 = arith.constant 0 : index
    %c0_51 = arith.constant 0 : index
    %160 = vector.load %arg10[%c0_50, %c0_51] : memref<32x64xbf16, #tpu.memory_space<vmem>>, vector<32x64xbf16>
    %cst_52 = arith.constant dense<0.000000e+00> : vector<8x64xf32>
    %161 = tpu.matmul %159, %160, %cst_52 {dimension_numbers = #tpu.dot_dimension_numbers<[1], [0], [0], [1], [0, 0, 1, 1], [], []>} : vector<8x32xbf16>, vector<32x64xbf16>, vector<8x64xf32> -> vector<8x64xf32>
    %c0_53 = arith.constant 0 : index
    %c0_54 = arith.constant 0 : index
    %162 = vector.load %arg11[%c0_53, %c0_54] : memref<1x64xf32, #tpu.memory_space<vmem>>, vector<1x64xf32>
    %163 = vector.shape_cast %162 : vector<1x64xf32> to vector<64xf32>
    %164 = vector.shape_cast %163 : vector<64xf32> to vector<1x64xf32>
    %165 = vector.broadcast %164 : vector<1x64xf32> to vector<8x64xf32>
    %166 = arith.addf %161, %165 : vector<8x64xf32>
    %cst_55 = arith.constant 5.000000e-01 : f32
    %167 = vector.broadcast %cst_55 : f32 to vector<8x64xf32>
    %168 = arith.mulf %167, %166 : vector<8x64xf32>
    %cst_56 = arith.constant 0.707106769 : f32
    %169 = vector.broadcast %cst_56 : f32 to vector<8x64xf32>
    %170 = arith.mulf %166, %169 : vector<8x64xf32>
    %cst_57 = arith.constant 0.000000e+00 : f32
    %171 = vector.broadcast %cst_57 : f32 to vector<8x64xf32>
    %172 = arith.cmpf oge, %170, %171 : vector<8x64xf32>
    %cst_58 = arith.constant 1.000000e+00 : f32
    %cst_59 = arith.constant -1.000000e+00 : f32
    %173 = vector.broadcast %cst_58 : f32 to vector<8x64xf32>
    %174 = vector.broadcast %cst_59 : f32 to vector<8x64xf32>
    %175 = arith.select %172, %173, %174 : vector<8x64xi1>, vector<8x64xf32>
    %176 = math.absf %170 : vector<8x64xf32>
    %cst_60 = arith.constant 0.327591091 : f32
    %177 = vector.broadcast %cst_60 : f32 to vector<8x64xf32>
    %178 = arith.mulf %177, %176 : vector<8x64xf32>
    %cst_61 = arith.constant 1.000000e+00 : f32
    %179 = vector.broadcast %cst_61 : f32 to vector<8x64xf32>
    %180 = arith.addf %179, %178 : vector<8x64xf32>
    %181 = tpu.reciprocal %180 {approx = true} : vector<8x64xf32> -> vector<8x64xf32>
    %cst_62 = arith.constant 1.06140542 : f32
    %182 = vector.broadcast %cst_62 : f32 to vector<8x64xf32>
    %183 = arith.mulf %182, %181 : vector<8x64xf32>
    %cst_63 = arith.constant -1.45315206 : f32
    %184 = vector.broadcast %cst_63 : f32 to vector<8x64xf32>
    %185 = arith.addf %183, %184 : vector<8x64xf32>
    %186 = arith.mulf %185, %181 : vector<8x64xf32>
    %cst_64 = arith.constant 1.42141378 : f32
    %187 = vector.broadcast %cst_64 : f32 to vector<8x64xf32>
    %188 = arith.addf %186, %187 : vector<8x64xf32>
    %189 = arith.mulf %188, %181 : vector<8x64xf32>
    %cst_65 = arith.constant -0.284496725 : f32
    %190 = vector.broadcast %cst_65 : f32 to vector<8x64xf32>
    %191 = arith.addf %189, %190 : vector<8x64xf32>
    %192 = arith.mulf %191, %181 : vector<8x64xf32>
    %cst_66 = arith.constant 0.254829586 : f32
    %193 = vector.broadcast %cst_66 : f32 to vector<8x64xf32>
    %194 = arith.addf %192, %193 : vector<8x64xf32>
    %195 = arith.mulf %194, %181 : vector<8x64xf32>
    %cst_67 = arith.constant 0.000000e+00 : f32
    %196 = vector.broadcast %cst_67 : f32 to vector<8x64xf32>
    %197 = arith.subf %196, %176 : vector<8x64xf32>
    %198 = arith.mulf %197, %176 : vector<8x64xf32>
    %199 = math.exp %198 : vector<8x64xf32>
    %200 = arith.mulf %195, %199 : vector<8x64xf32>
    %cst_68 = arith.constant 1.000000e+00 : f32
    %201 = vector.broadcast %cst_68 : f32 to vector<8x64xf32>
    %202 = arith.subf %201, %200 : vector<8x64xf32>
    %203 = arith.mulf %175, %202 : vector<8x64xf32>
    %cst_69 = arith.constant 1.000000e+00 : f32
    %204 = vector.broadcast %cst_69 : f32 to vector<8x64xf32>
    %205 = arith.addf %204, %203 : vector<8x64xf32>
    %206 = arith.mulf %168, %205 : vector<8x64xf32>
    %207 = arith.truncf %206 : vector<8x64xf32> to vector<8x64xbf16>
    %c0_70 = arith.constant 0 : index
    %c0_71 = arith.constant 0 : index
    %208 = vector.load %arg12[%c0_70, %c0_71] : memref<64x32xbf16, #tpu.memory_space<vmem>>, vector<64x32xbf16>
    %cst_72 = arith.constant dense<0.000000e+00> : vector<8x32xf32>
    %209 = tpu.matmul %207, %208, %cst_72 {dimension_numbers = #tpu.dot_dimension_numbers<[1], [0], [0], [1], [0, 0, 1, 1], [], []>} : vector<8x64xbf16>, vector<64x32xbf16>, vector<8x32xf32> -> vector<8x32xf32>
    %210 = arith.addf %128, %209 : vector<8x32xf32>
    %c0_73 = arith.constant 0 : index
    %c0_74 = arith.constant 0 : index
    %211 = vector.load %arg13[%c0_73, %c0_74] : memref<1x32xf32, #tpu.memory_space<vmem>>, vector<1x32xf32>
    %212 = vector.shape_cast %211 : vector<1x32xf32> to vector<32xf32>
    %213 = vector.shape_cast %212 : vector<32xf32> to vector<1x32xf32>
    %214 = vector.broadcast %213 : vector<1x32xf32> to vector<8x32xf32>
    %215 = arith.addf %210, %214 : vector<8x32xf32>
    %c0_75 = arith.constant 0 : index
    %c0_76 = arith.constant 0 : index
    %216 = vector.load %arg14[%c0_75, %c0_76] : memref<8x32xf32, #tpu.memory_space<vmem>>, vector<8x32xf32>
    tpu.vector_store %arg14[%c0_75, %c0_76], %215 {strides = array<i32>} : memref<8x32xf32, #tpu.memory_space<vmem>>, vector<8x32xf32>,
    return
  }
  func.func @transform_0(%arg0: i32) -> (i32, i32) {
    %c0_i32 = arith.constant 0 : i32
    %c0_i32_0 = arith.constant 0 : i32
    return %arg0, %c0_i32 : i32, i32
  }
  func.func @transform_1(%arg0: i32) -> (i32, i32) {
    %c0_i32 = arith.constant 0 : i32
    %c0_i32_0 = arith.constant 0 : i32
    %c0_i32_1 = arith.constant 0 : i32
    return %c0_i32, %c0_i32_0 : i32, i32
  }
  func.func @transform_2(%arg0: i32) -> (i32, i32) {
    %c0_i32 = arith.constant 0 : i32
    %c0_i32_0 = arith.constant 0 : i32
    %c0_i32_1 = arith.constant 0 : i32
    return %c0_i32, %c0_i32_0 : i32, i32
  }
  func.func @transform_3(%arg0: i32) -> (i32, i32) {
    %c0_i32 = arith.constant 0 : i32
    %c0_i32_0 = arith.constant 0 : i32
    %c0_i32_1 = arith.constant 0 : i32
    return %c0_i32, %c0_i32_0 : i32, i32
  }
  func.func @transform_4(%arg0: i32) -> (i32, i32) {
    %c0_i32 = arith.constant 0 : i32
    %c0_i32_0 = arith.constant 0 : i32
    %c0_i32_1 = arith.constant 0 : i32
    return %c0_i32, %c0_i32_0 : i32, i32
  }
  func.func @transform_5(%arg0: i32) -> (i32, i32) {
    %c0_i32 = arith.constant 0 : i32
    %c0_i32_0 = arith.constant 0 : i32
    %c0_i32_1 = arith.constant 0 : i32
    return %c0_i32, %c0_i32_0 : i32, i32
  }
  func.func @transform_6(%arg0: i32) -> (i32, i32) {
    %c0_i32 = arith.constant 0 : i32
    %c0_i32_0 = arith.constant 0 : i32
    %c0_i32_1 = arith.constant 0 : i32
    return %c0_i32, %c0_i32_0 : i32, i32
  }
  func.func @transform_7(%arg0: i32) -> (i32, i32) {
    %c0_i32 = arith.constant 0 : i32
    %c0_i32_0 = arith.constant 0 : i32
    %c0_i32_1 = arith.constant 0 : i32
    return %c0_i32, %c0_i32_0 : i32, i32
  }
  func.func @transform_8(%arg0: i32) -> (i32, i32) {
    %c0_i32 = arith.constant 0 : i32
    %c0_i32_0 = arith.constant 0 : i32
    %c0_i32_1 = arith.constant 0 : i32
    return %c0_i32, %c0_i32_0 : i32, i32
  }
  func.func @transform_9(%arg0: i32) -> (i32, i32) {
    %c0_i32 = arith.constant 0 : i32
    %c0_i32_0 = arith.constant 0 : i32
    %c0_i32_1 = arith.constant 0 : i32
    return %c0_i32, %c0_i32_0 : i32, i32
  }
  func.func @transform_10(%arg0: i32) -> (i32, i32) {
    %c0_i32 = arith.constant 0 : i32
    %c0_i32_0 = arith.constant 0 : i32
    %c0_i32_1 = arith.constant 0 : i32
    return %c0_i32, %c0_i32_0 : i32, i32
  }
  func.func @transform_11(%arg0: i32) -> (i32, i32) {
    %c0_i32 = arith.constant 0 : i32
    %c0_i32_0 = arith.constant 0 : i32
    %c0_i32_1 = arith.constant 0 : i32
    return %c0_i32, %c0_i32_0 : i32, i32
  }
  func.func @transform_12(%arg0: i32) -> (i32, i32) {
    %c0_i32 = arith.constant 0 : i32
    %c0_i32_0 = arith.constant 0 : i32
    %c0_i32_1 = arith.constant 0 : i32
    return %c0_i32, %c0_i32_0 : i32, i32
  }
  func.func @transform_13(%arg0: i32) -> (i32, i32) {
    %c0_i32 = arith.constant 0 : i32
    %c0_i32_0 = arith.constant 0 : i32
    return %arg0, %c0_i32 : i32, i32
  }
}

</mosaic_0001>

<llo_original>
// kernel: tpu_custom_call.1
$region0: #{tpu_custom_call.1}
  #allocation0 [shape = 'u32[]', space=smem, size = 0x4, offset = 0x4, fixed_abs, tag = 'smem constant byte address 0x4 - core index']
  #allocation1 [shape = 'u32[144,128]{1,0:T(1,128)}', space=vmem, size = 0x12000, scoped, tag = 'internal scratch']
  #allocation2 [shape = 'bf16[8,96]{1,0:T(8,128)(2,1)}', space=vmem, size = 0x800, scoped, tag = 'scratch operand']
  #allocation3 [shape = 'bf16[8,32]{1,0:T(8,128)(2,1)}', space=vmem, size = 0x800, scoped, tag = 'scratch operand']
  %s0 = inlined_call_operand.hbm [shape: f32[16,32], index: 0, kind: input, shape index: {}]
  %s1 = inlined_call_operand.hbm [shape: f32[1,32], index: 1, kind: input, shape index: {}]
  %s2 = inlined_call_operand.hbm [shape: f32[1,32], index: 2, kind: input, shape index: {}]
  %s3 = inlined_call_operand.hbm [shape: bf16[32,96], index: 3, kind: input, shape index: {}]
  %s4 = inlined_call_operand.hbm [shape: f32[1,96], index: 4, kind: input, shape index: {}]
  %s5 = inlined_call_operand.hbm [shape: bf16[32,32], index: 5, kind: input, shape index: {}]
  %s6 = inlined_call_operand.hbm [shape: f32[1,32], index: 6, kind: input, shape index: {}]
  %s7 = inlined_call_operand.hbm [shape: f32[1,32], index: 7, kind: input, shape index: {}]
  %s8 = inlined_call_operand.hbm [shape: f32[1,32], index: 8, kind: input, shape index: {}]
  %s9 = inlined_call_operand.hbm [shape: bf16[32,64], index: 9, kind: input, shape index: {}]
  %s10 = inlined_call_operand.hbm [shape: f32[1,64], index: 10, kind: input, shape index: {}]
  %s11 = inlined_call_operand.hbm [shape: bf16[64,32], index: 11, kind: input, shape index: {}]
  %s12 = inlined_call_operand.hbm [shape: f32[1,32], index: 12, kind: input, shape index: {}]
  %s13 = inlined_call_operand.hbm [shape: f32[16,32], index: 13, kind: output, shape index: {}]
  %s14 = sld [smem:[#allocation0]]
  $region137: #{tpu_custom_call.1} parent=0
    _
  %s16 = ssub.s32 1, %s14
  %s17 = scalar_select 0, %s16, %s14
  $region1: #{tpu_custom_call.1} parent=0
    #allocation4 [shape = 'u8[8192]{0}', space=vmem, size = 0x2000, scoped, tag = 'input window, operand 0']
    #allocation5 [shape = 's32[2]{0}', space=sflag, size = 0x8, scoped, tag = 'scoped memory for tpu_custom_call.1']
    #allocation6 [shape = 's32[2]{0}', space=sflag, size = 0x8, scoped, tag = 'scoped memory for tpu_custom_call.1']
    #allocation7 [shape = 'u8[512]{0}', space=vmem, size = 0x400, scoped, tag = 'input window, operand 1, single buffered']
    #allocation8 [shape = 's32[1]{0}', space=sflag, size = 0x4, scoped, tag = 'scoped memory for tpu_custom_call.1']
    #allocation9 [shape = 'u8[512]{0}', space=vmem, size = 0x400, scoped, tag = 'input window, operand 2, single buffered']
    #allocation10 [shape = 'u8[8192]{0}', space=vmem, size = 0x2000, scoped, tag = 'input window, operand 3, single buffered']
    #allocation11 [shape = 's32[1]{0}', space=sflag, size = 0x4, scoped, tag = 'scoped memory for tpu_custom_call.1']
    #allocation12 [shape = 'u8[512]{0}', space=vmem, size = 0x400, scoped, tag = 'input window, operand 4, single buffered']
    #allocation13 [shape = 'u8[8192]{0}', space=vmem, size = 0x2000, scoped, tag = 'input window, operand 5, single buffered']
    #allocation14 [shape = 's32[1]{0}', space=sflag, size = 0x4, scoped, tag = 'scoped memory for tpu_custom_call.1']
    #allocation15 [shape = 'u8[512]{0}', space=vmem, size = 0x400, scoped, tag = 'input window, operand 6, single buffered']
    #allocation16 [shape = 'u8[512]{0}', space=vmem, size = 0x400, scoped, tag = 'input window, operand 7, single buffered']
    #allocation17 [shape = 's32[1]{0}', space=sflag, size = 0x4, scoped, tag = 'scoped memory for tpu_custom_call.1']
    #allocation18 [shape = 'u8[512]{0}', space=vmem, size = 0x400, scoped, tag = 'input window, operand 8, single buffered']
    #allocation19 [shape = 'u8[8192]{0}', space=vmem, size = 0x2000, scoped, tag = 'input window, operand 9, single buffered']
    #allocation20 [shape = 's32[1]{0}', space=sflag, size = 0x4, scoped, tag = 'scoped memory for tpu_custom_call.1']
    #allocation21 [shape = 'u8[512]{0}', space=vmem, size = 0x400, scoped, tag = 'input window, operand 10, single buffered']
    #allocation22 [shape = 'u8[16384]{0}', space=vmem, size = 0x4000, scoped, tag = 'input window, operand 11, single buffered']
    #allocation23 [shape = 's32[1]{0}', space=sflag, size = 0x4, scoped, tag = 'scoped memory for tpu_custom_call.1']
    #allocation24 [shape = 'u8[512]{0}', space=vmem, size = 0x400, scoped, tag = 'input window, operand 12, single buffered']
    #allocation25 [shape = 'u8[8192]{0}', space=vmem, size = 0x2000, scoped, tag = 'output window, operand 0']
    %18 = vsyncpa [#allocation5], 0
    %s19 = scalar_lea.sflag [#allocation5], 1
    %20 = vsyncpa %s19, 0
    %21 = vsyncpa [#allocation8], 0
    %22 = vsyncpa [#allocation11], 0
    %23 = vsyncpa [#allocation14], 0
    %24 = vsyncpa [#allocation17], 0
    %25 = vsyncpa [#allocation20], 0
    %26 = vsyncpa [#allocation23], 0
    %27 = vsyncpa [#allocation6], 0
    %s28 = scalar_lea.sflag [#allocation6], 1
    %29 = vsyncpa %s28, 0
    loop: start=0, step=1, limit=4
    $region2: #{tpu_custom_call.1} parent=1 // loop_pre_header
      _
    $region3: #{tpu_custom_call.1} parent=1 // loop_header
      %s31 = sphi 0, %s35
      %p32 = scmp.ge.s32.totalorder %s31, 4
      %s41 = sphi 0, %s43
      %s44 = sphi 0, %s41
      %s45 = sphi 0, %s44
      %s61 = sphi 0, %s45
      %s65 = sphi 0, %s65
      %s67 = sphi 0, %s65
      %s68 = sphi 0, %s67
      %s82 = sphi 0, %s68
      %s86 = sphi 0, %s86
      %s88 = sphi 0, %s86
      %s89 = sphi 0, %s88
      %s103 = sphi 0, %s89
      %s107 = sphi 0, %s107
      %s109 = sphi 0, %s107
      %s110 = sphi 0, %s109
      %s124 = sphi 0, %s110
      %s128 = sphi 0, %s128
      %s130 = sphi 0, %s128
      %s131 = sphi 0, %s130
      %s145 = sphi 0, %s131
      %s149 = sphi 0, %s149
      %s151 = sphi 0, %s149
      %s152 = sphi 0, %s151
      %s166 = sphi 0, %s152
      %s170 = sphi 0, %s170
      %s172 = sphi 0, %s170
      %s173 = sphi 0, %s172
      %s187 = sphi 0, %s173
      %s191 = sphi 0, %s191
      %s193 = sphi 0, %s191
      %s194 = sphi 0, %s193
      %s208 = sphi 0, %s194
      %s212 = sphi 0, %s212
      %s214 = sphi 0, %s212
      %s215 = sphi 0, %s214
      %s229 = sphi 0, %s215
      %s233 = sphi 0, %s233
      %s235 = sphi 0, %s233
      %s236 = sphi 0, %s235
      %s250 = sphi 0, %s236
      %s254 = sphi 0, %s254
      %s256 = sphi 0, %s254
      %s257 = sphi 0, %s256
      %s271 = sphi 0, %s257
      %s275 = sphi 0, %s275
      %s277 = sphi 0, %s275
      %s278 = sphi 0, %s277
      %s292 = sphi 0, %s278
      %s296 = sphi 0, %s296
      %s298 = sphi 0, %s296
      %s299 = sphi 0, %s298
      %s313 = sphi 0, %s299
      %s319 = sphi 0, %s321
      %s322 = sphi 0, %s319
      %s323 = sphi 0, %s322
      %s339 = sphi 0, %s323
    $region4: #{tpu_custom_call.1} parent=1 // loop_header_branch
      %34 = sbr.rel (%p32) target = $region8
    $region5: #{tpu_custom_call.1} parent=1 // loop_body
      %s36 = ssub.s32 %s31, 1
      %s37 = ssub.s32 %s31, 2
      %s38 = sadd.s32 %s31, 1
      %s39 = ssub.s32 %s31, %s38
      %p40 = scmp.eq.s32.totalorder %s39, 0
      %s42 = sadd.s32 %s41, 1
      %s43 = scalar_select %p40, %s41, %s42
      %p46 = pneg %p40
      %p47 = scmp.eq.s32.totalorder %s31, 1
      %p48 = por %p46, %p47
      %p49 = scmp.ne.s32.totalorder %s41, %s44
      %p50 = scmp.eq.s32.totalorder %s31, 0
      %p51 = por %p49, %p50
      %p52 = scmp.ne.s32.totalorder %s41, %s44
      %p53 = scmp.eq.s32.totalorder %s36, 1
      %p54 = por %p52, %p53
      %p55 = scmp.ne.s32.totalorder %s44, %s45
      %p56 = scmp.eq.s32.totalorder %s36, 0
      %p57 = por %p55, %p56
      %p58 = scmp.ne.s32.totalorder %s44, %s45
      %p59 = scmp.eq.s32.totalorder %s37, 1
      %p60 = por %p58, %p59
      %p62 = scmp.ne.s32.totalorder %s45, %s61
      %p63 = scmp.eq.s32.totalorder %s37, 0
      %p64 = por %p62, %p63
      %s66 = sadd.s32 %s65, 1
      %p69 = scmp.eq.s32.totalorder %s31, 1
      %p70 = scmp.ne.s32.totalorder %s65, %s67
      %p71 = scmp.eq.s32.totalorder %s31, 0
      %p72 = por %p70, %p71
      %p73 = scmp.ne.s32.totalorder %s65, %s67
      %p74 = scmp.eq.s32.totalorder %s36, 1
      %p75 = por %p73, %p74
      %p76 = scmp.ne.s32.totalorder %s67, %s68
      %p77 = scmp.eq.s32.totalorder %s36, 0
      %p78 = por %p76, %p77
      %p79 = scmp.ne.s32.totalorder %s67, %s68
      %p80 = scmp.eq.s32.totalorder %s37, 1
      %p81 = por %p79, %p80
      %p83 = scmp.ne.s32.totalorder %s68, %s82
      %p84 = scmp.eq.s32.totalorder %s37, 0
      %p85 = por %p83, %p84
      %s87 = sadd.s32 %s86, 1
      %p90 = scmp.eq.s32.totalorder %s31, 1
      %p91 = scmp.ne.s32.totalorder %s86, %s88
      %p92 = scmp.eq.s32.totalorder %s31, 0
      %p93 = por %p91, %p92
      %p94 = scmp.ne.s32.totalorder %s86, %s88
      %p95 = scmp.eq.s32.totalorder %s36, 1
      %p96 = por %p94, %p95
      %p97 = scmp.ne.s32.totalorder %s88, %s89
      %p98 = scmp.eq.s32.totalorder %s36, 0
      %p99 = por %p97, %p98
      %p100 = scmp.ne.s32.totalorder %s88, %s89
      %p101 = scmp.eq.s32.totalorder %s37, 1
      %p102 = por %p100, %p101
      %p104 = scmp.ne.s32.totalorder %s89, %s103
      %p105 = scmp.eq.s32.totalorder %s37, 0
      %p106 = por %p104, %p105
      %s108 = sadd.s32 %s107, 1
      %p111 = scmp.eq.s32.totalorder %s31, 1
      %p112 = scmp.ne.s32.totalorder %s107, %s109
      %p113 = scmp.eq.s32.totalorder %s31, 0
      %p114 = por %p112, %p113
      %p115 = scmp.ne.s32.totalorder %s107, %s109
      %p116 = scmp.eq.s32.totalorder %s36, 1
      %p117 = por %p115, %p116
      %p118 = scmp.ne.s32.totalorder %s109, %s110
      %p119 = scmp.eq.s32.totalorder %s36, 0
      %p120 = por %p118, %p119
      %p121 = scmp.ne.s32.totalorder %s109, %s110
      %p122 = scmp.eq.s32.totalorder %s37, 1
      %p123 = por %p121, %p122
      %p125 = scmp.ne.s32.totalorder %s110, %s124
      %p126 = scmp.eq.s32.totalorder %s37, 0
      %p127 = por %p125, %p126
      %s129 = sadd.s32 %s128, 1
      %p132 = scmp.eq.s32.totalorder %s31, 1
      %p133 = scmp.ne.s32.totalorder %s128, %s130
      %p134 = scmp.eq.s32.totalorder %s31, 0
      %p135 = por %p133, %p134
      %p136 = scmp.ne.s32.totalorder %s128, %s130
      %p137 = scmp.eq.s32.totalorder %s36, 1
      %p138 = por %p136, %p137
      %p139 = scmp.ne.s32.totalorder %s130, %s131
      %p140 = scmp.eq.s32.totalorder %s36, 0
      %p141 = por %p139, %p140
      %p142 = scmp.ne.s32.totalorder %s130, %s131
      %p143 = scmp.eq.s32.totalorder %s37, 1
      %p144 = por %p142, %p143
      %p146 = scmp.ne.s32.totalorder %s131, %s145
      %p147 = scmp.eq.s32.totalorder %s37, 0
      %p148 = por %p146, %p147
      %s150 = sadd.s32 %s149, 1
      %p153 = scmp.eq.s32.totalorder %s31, 1
      %p154 = scmp.ne.s32.totalorder %s149, %s151
      %p155 = scmp.eq.s32.totalorder %s31, 0
      %p156 = por %p154, %p155
      %p157 = scmp.ne.s32.totalorder %s149, %s151
      %p158 = scmp.eq.s32.totalorder %s36, 1
      %p159 = por %p157, %p158
      %p160 = scmp.ne.s32.totalorder %s151, %s152
      %p161 = scmp.eq.s32.totalorder %s36, 0
      %p162 = por %p160, %p161
      %p163 = scmp.ne.s32.totalorder %s151, %s152
      %p164 = scmp.eq.s32.totalorder %s37, 1
      %p165 = por %p163, %p164
      %p167 = scmp.ne.s32.totalorder %s152, %s166
      %p168 = scmp.eq.s32.totalorder %s37, 0
      %p169 = por %p167, %p168
      %s171 = sadd.s32 %s170, 1
      %p174 = scmp.eq.s32.totalorder %s31, 1
      %p175 = scmp.ne.s32.totalorder %s170, %s172
      %p176 = scmp.eq.s32.totalorder %s31, 0
      %p177 = por %p175, %p176
      %p178 = scmp.ne.s32.totalorder %s170, %s172
      %p179 = scmp.eq.s32.totalorder %s36, 1
      %p180 = por %p178, %p179
      %p181 = scmp.ne.s32.totalorder %s172, %s173
      %p182 = scmp.eq.s32.totalorder %s36, 0
      %p183 = por %p181, %p182
      %p184 = scmp.ne.s32.totalorder %s172, %s173
      %p185 = scmp.eq.s32.totalorder %s37, 1
      %p186 = por %p184, %p185
      %p188 = scmp.ne.s32.totalorder %s173, %s187
      %p189 = scmp.eq.s32.totalorder %s37, 0
      %p190 = por %p188, %p189
      %s192 = sadd.s32 %s191, 1
      %p195 = scmp.eq.s32.totalorder %s31, 1
      %p196 = scmp.ne.s32.totalorder %s191, %s193
      %p197 = scmp.eq.s32.totalorder %s31, 0
      %p198 = por %p196, %p197
      %p199 = scmp.ne.s32.totalorder %s191, %s193
      %p200 = scmp.eq.s32.totalorder %s36, 1
      %p201 = por %p199, %p200
      %p202 = scmp.ne.s32.totalorder %s193, %s194
      %p203 = scmp.eq.s32.totalorder %s36, 0
      %p204 = por %p202, %p203
      %p205 = scmp.ne.s32.totalorder %s193, %s194
      %p206 = scmp.eq.s32.totalorder %s37, 1
      %p207 = por %p205, %p206
      %p209 = scmp.ne.s32.totalorder %s194, %s208
      %p210 = scmp.eq.s32.totalorder %s37, 0
      %p211 = por %p209, %p210
      %s213 = sadd.s32 %s212, 1
      %p216 = scmp.eq.s32.totalorder %s31, 1
      %p217 = scmp.ne.s32.totalorder %s212, %s214
      %p218 = scmp.eq.s32.totalorder %s31, 0
      %p219 = por %p217, %p218
      %p220 = scmp.ne.s32.totalorder %s212, %s214
      %p221 = scmp.eq.s32.totalorder %s36, 1
      %p222 = por %p220, %p221
      %p223 = scmp.ne.s32.totalorder %s214, %s215
      %p224 = scmp.eq.s32.totalorder %s36, 0
      %p225 = por %p223, %p224
      %p226 = scmp.ne.s32.totalorder %s214, %s215
      %p227 = scmp.eq.s32.totalorder %s37, 1
      %p228 = por %p226, %p227
      %p230 = scmp.ne.s32.totalorder %s215, %s229
      %p231 = scmp.eq.s32.totalorder %s37, 0
      %p232 = por %p230, %p231
      %s234 = sadd.s32 %s233, 1
      %p237 = scmp.eq.s32.totalorder %s31, 1
      %p238 = scmp.ne.s32.totalorder %s233, %s235
      %p239 = scmp.eq.s32.totalorder %s31, 0
      %p240 = por %p238, %p239
      %p241 = scmp.ne.s32.totalorder %s233, %s235
      %p242 = scmp.eq.s32.totalorder %s36, 1
      %p243 = por %p241, %p242
      %p244 = scmp.ne.s32.totalorder %s235, %s236
      %p245 = scmp.eq.s32.totalorder %s36, 0
      %p246 = por %p244, %p245
      %p247 = scmp.ne.s32.totalorder %s235, %s236
      %p248 = scmp.eq.s32.totalorder %s37, 1
      %p249 = por %p247, %p248
      %p251 = scmp.ne.s32.totalorder %s236, %s250
      %p252 = scmp.eq.s32.totalorder %s37, 0
      %p253 = por %p251, %p252
      %s255 = sadd.s32 %s254, 1
      %p258 = scmp.eq.s32.totalorder %s31, 1
      %p259 = scmp.ne.s32.totalorder %s254, %s256
      %p260 = scmp.eq.s32.totalorder %s31, 0
      %p261 = por %p259, %p260
      %p262 = scmp.ne.s32.totalorder %s254, %s256
      %p263 = scmp.eq.s32.totalorder %s36, 1
      %p264 = por %p262, %p263
      %p265 = scmp.ne.s32.totalorder %s256, %s257
      %p266 = scmp.eq.s32.totalorder %s36, 0
      %p267 = por %p265, %p266
      %p268 = scmp.ne.s32.totalorder %s256, %s257
      %p269 = scmp.eq.s32.totalorder %s37, 1
      %p270 = por %p268, %p269
      %p272 = scmp.ne.s32.totalorder %s257, %s271
      %p273 = scmp.eq.s32.totalorder %s37, 0
      %p274 = por %p272, %p273
      %s276 = sadd.s32 %s275, 1
      %p279 = scmp.eq.s32.totalorder %s31, 1
      %p280 = scmp.ne.s32.totalorder %s275, %s277
      %p281 = scmp.eq.s32.totalorder %s31, 0
      %p282 = por %p280, %p281
      %p283 = scmp.ne.s32.totalorder %s275, %s277
      %p284 = scmp.eq.s32.totalorder %s36, 1
      %p285 = por %p283, %p284
      %p286 = scmp.ne.s32.totalorder %s277, %s278
      %p287 = scmp.eq.s32.totalorder %s36, 0
      %p288 = por %p286, %p287
      %p289 = scmp.ne.s32.totalorder %s277, %s278
      %p290 = scmp.eq.s32.totalorder %s37, 1
      %p291 = por %p289, %p290
      %p293 = scmp.ne.s32.totalorder %s278, %s292
      %p294 = scmp.eq.s32.totalorder %s37, 0
      %p295 = por %p293, %p294
      %s297 = sadd.s32 %s296, 1
      %p300 = scmp.eq.s32.totalorder %s31, 1
      %p301 = scmp.ne.s32.totalorder %s296, %s298
      %p302 = scmp.eq.s32.totalorder %s31, 0
      %p303 = por %p301, %p302
      %p304 = scmp.ne.s32.totalorder %s296, %s298
      %p305 = scmp.eq.s32.totalorder %s36, 1
      %p306 = por %p304, %p305
      %p307 = scmp.ne.s32.totalorder %s298, %s299
      %p308 = scmp.eq.s32.totalorder %s36, 0
      %p309 = por %p307, %p308
      %p310 = scmp.ne.s32.totalorder %s298, %s299
      %p311 = scmp.eq.s32.totalorder %s37, 1
      %p312 = por %p310, %p311
      %p314 = scmp.ne.s32.totalorder %s299, %s313
      %p315 = scmp.eq.s32.totalorder %s37, 0
      %p316 = por %p314, %p315
      %s317 = ssub.s32 %s31, %s38
      %p318 = scmp.eq.s32.totalorder %s317, 0
      %s320 = sadd.s32 %s319, 1
      %s321 = scalar_select %p318, %s319, %s320
      %p324 = pneg %p318
      %p325 = scmp.eq.s32.totalorder %s31, 1
      %p326 = por %p324, %p325
      %p327 = scmp.ne.s32.totalorder %s319, %s322
      %p328 = scmp.eq.s32.totalorder %s31, 0
      %p329 = por %p327, %p328
      %p330 = scmp.ne.s32.totalorder %s319, %s322
      %p331 = scmp.eq.s32.totalorder %s36, 1
      %p332 = por %p330, %p331
      %p333 = scmp.ne.s32.totalorder %s322, %s323
      %p334 = scmp.eq.s32.totalorder %s36, 0
      %p335 = por %p333, %p334
      %p336 = scmp.ne.s32.totalorder %s322, %s323
      %p337 = scmp.eq.s32.totalorder %s37, 1
      %p338 = por %p336, %p337
      %p340 = scmp.ne.s32.totalorder %s323, %s339
      %p341 = scmp.eq.s32.totalorder %s37, 0
      %p342 = por %p340, %p341
      %p343 = scmp.le.s32.totalorder 1, %s31
      %p344 = scmp.lt.s32.totalorder %s31, 3
      %p345 = pnand %p343, %p344
      %p346 = pneg %p345
      // Predicated region
      $region9: #{tpu_custom_call.1} parent=5 // pred_check
        _
      $region10: #{tpu_custom_call.1} parent=5 // pred_check_branch
        %348 = sbr.rel (%p345) target = $region12
      $region11: #{tpu_custom_call.1} parent=5 // pred_region
        %s349 = ssub.s32 %s31, 1
        // Predicated region
        $region13: #{tpu_custom_call.1} parent=11 // pred_check
          %p350 = pneg %p78
        $region14: #{tpu_custom_call.1} parent=11 // pred_check_branch
          %352 = sbr.rel (%p350) target = $region16
        $region15: #{tpu_custom_call.1} parent=11 // pred_region
          %s354 = ssub.s32 16, 16
          %355 = vsyncadd [#allocation8], %s354
          %s357 = sshll.u32 [#allocation7], 4
          %s358 = int_to_ptr.vmem [resolvable:$true] %s357
          %360 = dma.hbm_to_vmem [thread:$0]  %s1, 16, %s358, [#allocation8]
        $region16: #{tpu_custom_call.1} parent=11 // pred_fallthru
          _
        // Predicated region
        $region17: #{tpu_custom_call.1} parent=11 // pred_check
          %p361 = pneg %p99
        $region18: #{tpu_custom_call.1} parent=11 // pred_check_branch
          %363 = sbr.rel (%p361) target = $region20
        $region19: #{tpu_custom_call.1} parent=11 // pred_region
          %s365 = ssub.s32 16, 16
          %366 = vsyncadd [#allocation8], %s365
          %s368 = sshll.u32 [#allocation9], 4
          %s369 = int_to_ptr.vmem [resolvable:$true] %s368
          %371 = dma.hbm_to_vmem [thread:$0]  %s2, 16, %s369, [#allocation8]
        $region20: #{tpu_custom_call.1} parent=11 // pred_fallthru
          _
        // Predicated region
        $region21: #{tpu_custom_call.1} parent=11 // pred_check
          %p372 = pneg %p120
        $region22: #{tpu_custom_call.1} parent=11 // pred_check_branch
          %374 = sbr.rel (%p372) target = $region24
        $region23: #{tpu_custom_call.1} parent=11 // pred_region
          %s376 = ssub.s32 256, 256
          %377 = vsyncadd [#allocation11], %s376
          %s378 = sshll.u32 [#allocation10], 4
          %s379 = int_to_ptr.vmem [resolvable:$true] %s378
          %384 = dma.hbm_to_vmem [thread:$0]  %s3, 256, %s379, [#allocation11], 64, 64, 4
        $region24: #{tpu_custom_call.1} parent=11 // pred_fallthru
          _
        // Predicated region
        $region25: #{tpu_custom_call.1} parent=11 // pred_check
          %p385 = pneg %p141
        $region26: #{tpu_custom_call.1} parent=11 // pred_check_branch
          %387 = sbr.rel (%p385) target = $region28
        $region27: #{tpu_custom_call.1} parent=11 // pred_region
          %s389 = ssub.s32 16, 16
          %390 = vsyncadd [#allocation11], %s389
          %s392 = sshll.u32 [#allocation12], 4
          %s393 = int_to_ptr.vmem [resolvable:$true] %s392
          %395 = dma.hbm_to_vmem [thread:$0]  %s4, 16, %s393, [#allocation11]
        $region28: #{tpu_custom_call.1} parent=11 // pred_fallthru
          _
        // Predicated region
        $region29: #{tpu_custom_call.1} parent=11 // pred_check
          %p396 = pneg %p162
        $region30: #{tpu_custom_call.1} parent=11 // pred_check_branch
          %398 = sbr.rel (%p396) target = $region32
        $region31: #{tpu_custom_call.1} parent=11 // pred_region
          %s400 = ssub.s32 256, 256
          %401 = vsyncadd [#allocation14], %s400
          %s402 = sshll.u32 [#allocation13], 4
          %s403 = int_to_ptr.vmem [resolvable:$true] %s402
          %408 = dma.hbm_to_vmem [thread:$0]  %s5, 256, %s403, [#allocation14], 64, 64, 4
        $region32: #{tpu_custom_call.1} parent=11 // pred_fallthru
          _
        // Predicated region
        $region33: #{tpu_custom_call.1} parent=11 // pred_check
          %p409 = pneg %p183
        $region34: #{tpu_custom_call.1} parent=11 // pred_check_branch
          %411 = sbr.rel (%p409) target = $region36
        $region35: #{tpu_custom_call.1} parent=11 // pred_region
          %s413 = ssub.s32 16, 16
          %414 = vsyncadd [#allocation14], %s413
          %s416 = sshll.u32 [#allocation15], 4
          %s417 = int_to_ptr.vmem [resolvable:$true] %s416
          %419 = dma.hbm_to_vmem [thread:$0]  %s6, 16, %s417, [#allocation14]
        $region36: #{tpu_custom_call.1} parent=11 // pred_fallthru
          _
        // Predicated region
        $region37: #{tpu_custom_call.1} parent=11 // pred_check
          %p420 = pneg %p204
        $region38: #{tpu_custom_call.1} parent=11 // pred_check_branch
          %422 = sbr.rel (%p420) target = $region40
        $region39: #{tpu_custom_call.1} parent=11 // pred_region
          %s424 = ssub.s32 16, 16
          %425 = vsyncadd [#allocation17], %s424
          %s427 = sshll.u32 [#allocation16], 4
          %s428 = int_to_ptr.vmem [resolvable:$true] %s427
          %430 = dma.hbm_to_vmem [thread:$0]  %s7, 16, %s428, [#allocation17]
        $region40: #{tpu_custom_call.1} parent=11 // pred_fallthru
          _
        // Predicated region
        $region41: #{tpu_custom_call.1} parent=11 // pred_check
          %p431 = pneg %p225
        $region42: #{tpu_custom_call.1} parent=11 // pred_check_branch
          %433 = sbr.rel (%p431) target = $region44
        $region43: #{tpu_custom_call.1} parent=11 // pred_region
          %s435 = ssub.s32 16, 16
          %436 = vsyncadd [#allocation17], %s435
          %s438 = sshll.u32 [#allocation18], 4
          %s439 = int_to_ptr.vmem [resolvable:$true] %s438
          %441 = dma.hbm_to_vmem [thread:$0]  %s8, 16, %s439, [#allocation17]
        $region44: #{tpu_custom_call.1} parent=11 // pred_fallthru
          _
        // Predicated region
        $region45: #{tpu_custom_call.1} parent=11 // pred_check
          %p442 = pneg %p246
        $region46: #{tpu_custom_call.1} parent=11 // pred_check_branch
          %444 = sbr.rel (%p442) target = $region48
        $region47: #{tpu_custom_call.1} parent=11 // pred_region
          %s446 = ssub.s32 256, 256
          %447 = vsyncadd [#allocation20], %s446
          %s448 = sshll.u32 [#allocation19], 4
          %s449 = int_to_ptr.vmem [resolvable:$true] %s448
          %454 = dma.hbm_to_vmem [thread:$0]  %s9, 256, %s449, [#allocation20], 64, 64, 4
        $region48: #{tpu_custom_call.1} parent=11 // pred_fallthru
          _
        // Predicated region
        $region49: #{tpu_custom_call.1} parent=11 // pred_check
          %p455 = pneg %p267
        $region50: #{tpu_custom_call.1} parent=11 // pred_check_branch
          %457 = sbr.rel (%p455) target = $region52
        $region51: #{tpu_custom_call.1} parent=11 // pred_region
          %s459 = ssub.s32 16, 16
          %460 = vsyncadd [#allocation20], %s459
          %s462 = sshll.u32 [#allocation21], 4
          %s463 = int_to_ptr.vmem [resolvable:$true] %s462
          %465 = dma.hbm_to_vmem [thread:$0]  %s10, 16, %s463, [#allocation20]
        $region52: #{tpu_custom_call.1} parent=11 // pred_fallthru
          _
        // Predicated region
        $region53: #{tpu_custom_call.1} parent=11 // pred_check
          %p466 = pneg %p288
        $region54: #{tpu_custom_call.1} parent=11 // pred_check_branch
          %468 = sbr.rel (%p466) target = $region56
        $region55: #{tpu_custom_call.1} parent=11 // pred_region
          %s470 = ssub.s32 512, 512
          %471 = vsyncadd [#allocation23], %s470
          %s472 = sshll.u32 [#allocation22], 4
          %s473 = int_to_ptr.vmem [resolvable:$true] %s472
          %478 = dma.hbm_to_vmem [thread:$0]  %s11, 512, %s473, [#allocation23], 64, 64, 4
        $region56: #{tpu_custom_call.1} parent=11 // pred_fallthru
          _
        // Predicated region
        $region57: #{tpu_custom_call.1} parent=11 // pred_check
          %p479 = pneg %p309
        $region58: #{tpu_custom_call.1} parent=11 // pred_check_branch
          %481 = sbr.rel (%p479) target = $region60
        $region59: #{tpu_custom_call.1} parent=11 // pred_region
          %s483 = ssub.s32 16, 16
          %484 = vsyncadd [#allocation23], %s483
          %s486 = sshll.u32 [#allocation24], 4
          %s487 = int_to_ptr.vmem [resolvable:$true] %s486
          %489 = dma.hbm_to_vmem [thread:$0]  %s12, 16, %s487, [#allocation23]
        $region60: #{tpu_custom_call.1} parent=11 // pred_fallthru
          _
      $region12: #{tpu_custom_call.1} parent=5 // pred_fallthru
        _
      %p490 = scmp.lt.s32.totalorder %s31, 2
      // Predicated region
      $region61: #{tpu_custom_call.1} parent=5 // pred_check
        %p491 = pneg %p490
      $region62: #{tpu_custom_call.1} parent=5 // pred_check_branch
        %493 = sbr.rel (%p491) target = $region64
      $region63: #{tpu_custom_call.1} parent=5 // pred_region
        // Predicated region
        $region65: #{tpu_custom_call.1} parent=63 // pred_check
          %p494 = pneg %p51
        $region66: #{tpu_custom_call.1} parent=63 // pred_check_branch
          %496 = sbr.rel (%p494) target = $region68
        $region67: #{tpu_custom_call.1} parent=63 // pred_region
          %s497 = sand.u32 %s41, 1
          %s498 = scalar_lea.sflag [#allocation5], %s497
          %s499 = sand.u32 %s41, 1
          %s500 = smul.addr %s499, 8
          %s501 = scalar_lea.vmem [#allocation4], %s500
          %s503 = ssub.s32 128, 128
          %504 = vsyncadd %s498, %s503
          %s505 = smul.addr %s31, 128
          %s506 = scalar_lea.hbm %s0, %s505
          %s508 = sshll.u32 %s501, 4
          %s509 = int_to_ptr.vmem [resolvable:$true] %s508
          %511 = dma.hbm_to_vmem [thread:$0]  %s506, 128, %s509, %s498
        $region68: #{tpu_custom_call.1} parent=63 // pred_fallthru
          _
      $region64: #{tpu_custom_call.1} parent=5 // pred_fallthru
        _
      %p512 = scmp.le.s32.totalorder 1, %s31
      %p513 = scmp.lt.s32.totalorder %s31, 3
      %p514 = pnand %p512, %p513
      %p515 = pneg %p514
      // Predicated region
      $region69: #{tpu_custom_call.1} parent=5 // pred_check
        _
      $region70: #{tpu_custom_call.1} parent=5 // pred_check_branch
        %517 = sbr.rel (%p514) target = $region72
      $region71: #{tpu_custom_call.1} parent=5 // pred_region
        %s518 = ssub.s32 %s31, 1
        %s519 = sand.u32 %s44, 1
        %s520 = scalar_lea.sflag [#allocation5], %s519
        %s521 = sand.u32 %s44, 1
        %s522 = smul.addr %s521, 8
        %s523 = scalar_lea.vmem [#allocation4], %s522
        // Predicated region
        $region73: #{tpu_custom_call.1} parent=71 // pred_check
          %p524 = pneg %p57
        $region74: #{tpu_custom_call.1} parent=71 // pred_check_branch
          %526 = sbr.rel (%p524) target = $region76
        $region75: #{tpu_custom_call.1} parent=71 // pred_region
          %527 = dma.done %s520, 128
        $region76: #{tpu_custom_call.1} parent=71 // pred_fallthru
          _
        // Predicated region
        $region77: #{tpu_custom_call.1} parent=71 // pred_check
          %p528 = pneg %p78
        $region78: #{tpu_custom_call.1} parent=71 // pred_check_branch
          %530 = sbr.rel (%p528) target = $region80
        $region79: #{tpu_custom_call.1} parent=71 // pred_region
          %531 = dma.done [#allocation8], 16
        $region80: #{tpu_custom_call.1} parent=71 // pred_fallthru
          _
        // Predicated region
        $region81: #{tpu_custom_call.1} parent=71 // pred_check
          %p532 = pneg %p99
        $region82: #{tpu_custom_call.1} parent=71 // pred_check_branch
          %534 = sbr.rel (%p532) target = $region84
        $region83: #{tpu_custom_call.1} parent=71 // pred_region
          %535 = dma.done [#allocation8], 16
        $region84: #{tpu_custom_call.1} parent=71 // pred_fallthru
          _
        // Predicated region
        $region85: #{tpu_custom_call.1} parent=71 // pred_check
          %p536 = pneg %p120
        $region86: #{tpu_custom_call.1} parent=71 // pred_check_branch
          %538 = sbr.rel (%p536) target = $region88
        $region87: #{tpu_custom_call.1} parent=71 // pred_region
          %539 = dma.done [#allocation11], 256
        $region88: #{tpu_custom_call.1} parent=71 // pred_fallthru
          _
        // Predicated region
        $region89: #{tpu_custom_call.1} parent=71 // pred_check
          %p540 = pneg %p141
        $region90: #{tpu_custom_call.1} parent=71 // pred_check_branch
          %542 = sbr.rel (%p540) target = $region92
        $region91: #{tpu_custom_call.1} parent=71 // pred_region
          %543 = dma.done [#allocation11], 16
        $region92: #{tpu_custom_call.1} parent=71 // pred_fallthru
          _
        // Predicated region
        $region93: #{tpu_custom_call.1} parent=71 // pred_check
          %p544 = pneg %p162
        $region94: #{tpu_custom_call.1} parent=71 // pred_check_branch
          %546 = sbr.rel (%p544) target = $region96
        $region95: #{tpu_custom_call.1} parent=71 // pred_region
          %547 = dma.done [#allocation14], 256
        $region96: #{tpu_custom_call.1} parent=71 // pred_fallthru
          _
        // Predicated region
        $region97: #{tpu_custom_call.1} parent=71 // pred_check
          %p548 = pneg %p183
        $region98: #{tpu_custom_call.1} parent=71 // pred_check_branch
          %550 = sbr.rel (%p548) target = $region100
        $region99: #{tpu_custom_call.1} parent=71 // pred_region
          %551 = dma.done [#allocation14], 16
        $region100: #{tpu_custom_call.1} parent=71 // pred_fallthru
          _
        // Predicated region
        $region101: #{tpu_custom_call.1} parent=71 // pred_check
          %p552 = pneg %p204
        $region102: #{tpu_custom_call.1} parent=71 // pred_check_branch
          %554 = sbr.rel (%p552) target = $region104
        $region103: #{tpu_custom_call.1} parent=71 // pred_region
          %555 = dma.done [#allocation17], 16
        $region104: #{tpu_custom_call.1} parent=71 // pred_fallthru
          _
        // Predicated region
        $region105: #{tpu_custom_call.1} parent=71 // pred_check
          %p556 = pneg %p225
        $region106: #{tpu_custom_call.1} parent=71 // pred_check_branch
          %558 = sbr.rel (%p556) target = $region108
        $region107: #{tpu_custom_call.1} parent=71 // pred_region
          %559 = dma.done [#allocation17], 16
        $region108: #{tpu_custom_call.1} parent=71 // pred_fallthru
          _
        // Predicated region
        $region109: #{tpu_custom_call.1} parent=71 // pred_check
          %p560 = pneg %p246
        $region110: #{tpu_custom_call.1} parent=71 // pred_check_branch
          %562 = sbr.rel (%p560) target = $region112
        $region111: #{tpu_custom_call.1} parent=71 // pred_region
          %563 = dma.done [#allocation20], 256
        $region112: #{tpu_custom_call.1} parent=71 // pred_fallthru
          _
        // Predicated region
        $region113: #{tpu_custom_call.1} parent=71 // pred_check
          %p564 = pneg %p267
        $region114: #{tpu_custom_call.1} parent=71 // pred_check_branch
          %566 = sbr.rel (%p564) target = $region116
        $region115: #{tpu_custom_call.1} parent=71 // pred_region
          %567 = dma.done [#allocation20], 16
        $region116: #{tpu_custom_call.1} parent=71 // pred_fallthru
          _
        // Predicated region
        $region117: #{tpu_custom_call.1} parent=71 // pred_check
          %p568 = pneg %p288
        $region118: #{tpu_custom_call.1} parent=71 // pred_check_branch
          %570 = sbr.rel (%p568) target = $region120
        $region119: #{tpu_custom_call.1} parent=71 // pred_region
          %571 = dma.done [#allocation23], 512
        $region120: #{tpu_custom_call.1} parent=71 // pred_fallthru
          _
        // Predicated region
        $region121: #{tpu_custom_call.1} parent=71 // pred_check
          %p572 = pneg %p309
        $region122: #{tpu_custom_call.1} parent=71 // pred_check_branch
          %574 = sbr.rel (%p572) target = $region124
        $region123: #{tpu_custom_call.1} parent=71 // pred_region
          %575 = dma.done [#allocation23], 16
        $region124: #{tpu_custom_call.1} parent=71 // pred_fallthru
          _
        %s576 = sand.u32 %s44, 1
        %s577 = scalar_lea.sflag [#allocation5], %s576
        %s578 = sand.u32 %s44, 1
        %s579 = smul.addr %s578, 8
        %s580 = scalar_lea.vmem [#allocation4], %s579
        %p581 = pneg %p57
        %p582 = pneg %p54
        %p583 = pneg %p78
        %p584 = pneg %p75
        %p585 = pneg %p99
        %p586 = pneg %p96
        %p587 = pneg %p120
        %p588 = pneg %p117
        %p589 = pneg %p141
        %p590 = pneg %p138
        %p591 = pneg %p162
        %p592 = pneg %p159
        %p593 = pneg %p183
        %p594 = pneg %p180
        %p595 = pneg %p204
        %p596 = pneg %p201
        %p597 = pneg %p225
        %p598 = pneg %p222
        %p599 = pneg %p246
        %p600 = pneg %p243
        %p601 = pneg %p267
        %p602 = pneg %p264
        %p603 = pneg %p288
        %p604 = pneg %p285
        %p605 = pneg %p309
        %p606 = pneg %p306
        %p607 = pneg %p335
        %p608 = pneg %p332
        %s609 = sand.u32 %s322, 1
        %s610 = scalar_lea.sflag [#allocation6], %s609
        %s611 = sand.u32 %s322, 1
        %s612 = smul.addr %s611, 8
        %s613 = scalar_lea.vmem [#allocation25], %s612
        %v615 = vld [vmem:[%s523] sm:$0xff]
        %v616 = vld [vmem:[#allocation7] sm:$0x1]
        %v617 = vld [vmem:[#allocation9] sm:$0x1]
        %vm618 = vcmask 261120
        %v619 = vsel %vm618, %v615, 0.0
        %620 = vadd.xlane.f32.xlu0 %v619
        %v621 = vpop.xlane.xlu0 %620
        %v622 = vrcp.pop 32.0
        %v623 = vmul.f32 %v621, %v622
        %v624 = vsub.f32 %v615, %v623
        %v625 = vmul.f32 %v624, %v624
        %v626 = vsel %vm618, %v625, 0.0
        %627 = vadd.xlane.f32.xlu0 %v626
        %v628 = vpop.xlane.xlu0 %627
        %v629 = vmul.f32 %v628, %v622
        %v630 = vadd.f32 %v629, 1e-05
        %v631 = vrsqrt.pop %v630
        %v632 = vmul.f32 %v624, %v631
        %v634 = vlaneseq
        %v635 = vshrl.u32 %v634, 7
        %v636 = vsub.s32 0, %v635
        %v637 = vrot.slane %v616, %v636
        %v639 = vmul.f32 %v632, %v637
        %v641 = vlaneseq
        %v642 = vshrl.u32 %v641, 7
        %v643 = vsub.s32 0, %v642
        %v644 = vrot.slane %v617, %v643
        %v646 = vadd.f32 %v639, %v644
        %v647 = vpack.c.bf16 %v646, %v646
        %v648 = vld [vmem:[#allocation10] sm:$0xf]
        %v649 = vld [vmem:[#allocation10 + $0x4] sm:$0xf]
        %v650 = vld [vmem:[#allocation10 + $0x8] sm:$0xf]
        %v651 = vld [vmem:[#allocation10 + $0xc] sm:$0xf]
        %v652 = vld [vmem:[#allocation12] sm:$0x1]
        %v654 = vlaneseq
        %v655 = vshrl.u32 %v654, 7
        %v656 = vsub.s32 0, %v655
        %v657 = vrot.slane %v652, %v656
        %v663 = vunpack.c.l.b16 %v648
        %v664 = vunpack.c.l.b16 %v649
        %v665 = vunpack.c.l.b16 %v650
        %v666 = vunpack.c.l.b16 %v651
        %v667 = vpack.c.b16 %v664, %v663
        %v668 = vpack.c.b16 %v666, %v665
        %v672 = vsel %vm618, %v647, 0
        %674 = vmatprep.subr.bf16.mxu0 0
        %675 = vmatpush1.bf16.msra.mxu0 %v667
        %676 = vmatprep.subr.bf16.mxu0 0
        %677 = vmatpush1.bf16.msra.mxu0 %v668
        %678 = vmatprep.subr.bf16.mxu0 0
        %679 = vmatpush1.bf16.msra.mxu0 0
        %680 = vmatprep.subr.bf16.mxu0 0
        %681 = vmatpush1.bf16.msra.mxu0 0
        %682 = vmatprep.subr.bf16.mxu0 0
        %683 = vmatpush1.bf16.msra.mxu0 0
        %684 = vmatprep.subr.bf16.mxu0 0
        %685 = vmatpush1.bf16.msra.mxu0 0
        %686 = vmatprep.subr.bf16.mxu0 0
        %687 = vmatpush1.bf16.msra.mxu0 0
        %688 = vmatprep.subr.bf16.mxu0 0
        %689 = vmatpush1.bf16.msra.mxu0 0
        %690 = vmatprep.subr.bf16.mxu0 0
        %691 = vmatpush1.bf16.msra.mxu0 0
        %692 = vmatprep.subr.bf16.mxu0 0
        %693 = vmatpush1.bf16.msra.mxu0 0
        %694 = vmatprep.subr.bf16.mxu0 0
        %695 = vmatpush1.bf16.msra.mxu0 0
        %696 = vmatprep.subr.bf16.mxu0 0
        %697 = vmatpush1.bf16.msra.mxu0 0
        %698 = vmatprep.subr.bf16.mxu0 0
        %699 = vmatpush1.bf16.msra.mxu0 0
        %700 = vmatprep.subr.bf16.mxu0 0
        %701 = vmatpush1.bf16.msra.mxu0 0
        %702 = vmatprep.subr.bf16.mxu0 0
        %703 = vmatpush1.bf16.msra.mxu0 0
        %704 = vmatprep.subr.bf16.mxu0 0
        %705 = vmatpush1.bf16.msra.mxu0 0
        %706 = vmatprep.mubr.bf16.mxu0 0
        %707 = vmatmul.mubr.bf16.gmra.mrb[0].mxu0 %v672
        %v708 = vpop.f32.mrb[0].mxu0
        %v709 = vadd.f32 %v657, %v708
        %v710 = vpop.f32.mrb[0].mxu0
        %v711 = vpop.f32.mrb[0].mxu0
        %v712 = vpop.f32.mrb[0].mxu0
        %713 = vdwg.mxu0
        %v714 = vpack.c.bf16 %v709, %v709
        %vm715 = vcmask 781312
        %716 = vst.msk [vmem:[#allocation2] sm:$0xf] %vm715, %v714
        %v717 = vld [vmem:[#allocation2] sm:$0xf]
        %v719 = vunpack.c.l.b16 %v717
        %v720 = vpack.c.b16 %v719, %v719
        %721 = vrot.lane.b32.xlu0 %v720, 96
        %v722 = vpop.permute.xlu0 %721
        %vm723 = vcmask 64512
        %v725 = vsel %vm723, %v717, 0
        %v728 = vsel %vm723, %v722, 0
        %730 = vmatprep.subr.bf16.mxu0 0
        %731 = vmatpush1.bf16.xpose.msra.mxu0 %v728
        %732 = vmatprep.subr.bf16.mxu0 0
        %733 = vmatpush1.bf16.xpose.msra.mxu0 0
        %734 = vmatprep.subr.bf16.mxu0 0
        %735 = vmatpush1.bf16.xpose.msra.mxu0 0
        %736 = vmatprep.subr.bf16.mxu0 0
        %737 = vmatpush1.bf16.xpose.msra.mxu0 0
        %738 = vmatprep.subr.bf16.mxu0 0
        %739 = vmatpush1.bf16.xpose.msra.mxu0 0
        %740 = vmatprep.subr.bf16.mxu0 0
        %741 = vmatpush1.bf16.xpose.msra.mxu0 0
        %742 = vmatprep.subr.bf16.mxu0 0
        %743 = vmatpush1.bf16.xpose.msra.mxu0 0
        %744 = vmatprep.subr.bf16.mxu0 0
        %745 = vmatpush1.bf16.xpose.msra.mxu0 0
        %746 = vmatprep.subr.bf16.mxu0 0
        %747 = vmatpush1.bf16.xpose.msra.mxu0 0
        %748 = vmatprep.subr.bf16.mxu0 0
        %749 = vmatpush1.bf16.xpose.msra.mxu0 0
        %750 = vmatprep.subr.bf16.mxu0 0
        %751 = vmatpush1.bf16.xpose.msra.mxu0 0
        %752 = vmatprep.subr.bf16.mxu0 0
        %753 = vmatpush1.bf16.xpose.msra.mxu0 0
        %754 = vmatprep.subr.bf16.mxu0 0
        %755 = vmatpush1.bf16.xpose.msra.mxu0 0
        %756 = vmatprep.subr.bf16.mxu0 0
        %757 = vmatpush1.bf16.xpose.msra.mxu0 0
        %758 = vmatprep.subr.bf16.mxu0 0
        %759 = vmatpush1.bf16.xpose.msra.mxu0 0
        %760 = vmatprep.subr.bf16.mxu0 0
        %761 = vmatpush1.bf16.xpose.msra.mxu0 0
        %762 = vmatprep.mubr.bf16.mxu0 0
        %763 = vmatmul.mubr.bf16.gmra.mrb[0].mxu0 %v725
        %v764 = vpop.f32.mrb[0].mxu0
        %v765 = vadd.f32 0.0, %v764
        %v766 = vpop.f32.mrb[0].mxu0
        %v767 = vpop.f32.mrb[0].mxu0
        %v768 = vpop.f32.mrb[0].mxu0
        %769 = vdwg.mxu0
        %v770 = vsel %vm723, %v765, -inf
        %771 = vmax.xlane.f32.xlu0 %v770
        %v772 = vpop.xlane.xlu0 %771
        %v773 = vsub.f32 %v765, %v772
        %v774 = vmul.f32 %v773, 1.442695
        %v775 = vpow.pop %v774
        %v776 = vsel %vm723, %v775, 0.0
        %777 = vadd.xlane.f32.xlu0 %v776
        %v778 = vpop.xlane.xlu0 %777
        %v779 = vrcp.pop %v778
        %v780 = vmul.f32 %v775, %v779
        %v781 = vpack.c.bf16 %v780, %v780
        %782 = vrot.lane.b32.xlu0 %v720, 64
        %v783 = vpop.permute.xlu0 %782
        %v785 = vsel %vm723, %v781, 0
        %vm787 = vcmask 1043456
        %v789 = vsel %vm787, %v783, 0
        %791 = vmatprep.subr.bf16.mxu0 0
        %792 = vmatpush1.bf16.msra.mxu0 %v789
        %793 = vmatprep.subr.bf16.mxu0 0
        %794 = vmatpush1.bf16.msra.mxu0 0
        %795 = vmatprep.subr.bf16.mxu0 0
        %796 = vmatpush1.bf16.msra.mxu0 0
        %797 = vmatprep.subr.bf16.mxu0 0
        %798 = vmatpush1.bf16.msra.mxu0 0
        %799 = vmatprep.subr.bf16.mxu0 0
        %800 = vmatpush1.bf16.msra.mxu0 0
        %801 = vmatprep.subr.bf16.mxu0 0
        %802 = vmatpush1.bf16.msra.mxu0 0
        %803 = vmatprep.subr.bf16.mxu0 0
        %804 = vmatpush1.bf16.msra.mxu0 0
        %805 = vmatprep.subr.bf16.mxu0 0
        %806 = vmatpush1.bf16.msra.mxu0 0
        %807 = vmatprep.subr.bf16.mxu0 0
        %808 = vmatpush1.bf16.msra.mxu0 0
        %809 = vmatprep.subr.bf16.mxu0 0
        %810 = vmatpush1.bf16.msra.mxu0 0
        %811 = vmatprep.subr.bf16.mxu0 0
        %812 = vmatpush1.bf16.msra.mxu0 0
        %813 = vmatprep.subr.bf16.mxu0 0
        %814 = vmatpush1.bf16.msra.mxu0 0
        %815 = vmatprep.subr.bf16.mxu0 0
        %816 = vmatpush1.bf16.msra.mxu0 0
        %817 = vmatprep.subr.bf16.mxu0 0
        %818 = vmatpush1.bf16.msra.mxu0 0
        %819 = vmatprep.subr.bf16.mxu0 0
        %820 = vmatpush1.bf16.msra.mxu0 0
        %821 = vmatprep.subr.bf16.mxu0 0
        %822 = vmatpush1.bf16.msra.mxu0 0
        %823 = vmatprep.mubr.bf16.mxu0 0
        %824 = vmatmul.mubr.bf16.gmra.mrb[0].mxu0 %v785
        %v825 = vpop.f32.mrb[0].mxu0
        %v826 = vadd.f32 0.0, %v825
        %v827 = vpop.f32.mrb[0].mxu0
        %v828 = vpop.f32.mrb[0].mxu0
        %v829 = vpop.f32.mrb[0].mxu0
        %830 = vdwg.mxu0
        %v831 = vpack.c.bf16 %v826, %v826
        %832 = vrot.lane.b32.xlu0 %v720, 120
        %v833 = vpop.permute.xlu0 %832
        %834 = vrot.lane.b32.xlu0 %v720, 88
        %v835 = vpop.permute.xlu0 %834
        %v837 = vsel %vm723, %v833, 0
        %v840 = vsel %vm723, %v835, 0
        %842 = vmatprep.subr.bf16.mxu0 0
        %843 = vmatpush1.bf16.xpose.msra.mxu0 %v840
        %844 = vmatprep.subr.bf16.mxu0 0
        %845 = vmatpush1.bf16.xpose.msra.mxu0 0
        %846 = vmatprep.subr.bf16.mxu0 0
        %847 = vmatpush1.bf16.xpose.msra.mxu0 0
        %848 = vmatprep.subr.bf16.mxu0 0
        %849 = vmatpush1.bf16.xpose.msra.mxu0 0
        %850 = vmatprep.subr.bf16.mxu0 0
        %851 = vmatpush1.bf16.xpose.msra.mxu0 0
        %852 = vmatprep.subr.bf16.mxu0 0
        %853 = vmatpush1.bf16.xpose.msra.mxu0 0
        %854 = vmatprep.subr.bf16.mxu0 0
        %855 = vmatpush1.bf16.xpose.msra.mxu0 0
        %856 = vmatprep.subr.bf16.mxu0 0
        %857 = vmatpush1.bf16.xpose.msra.mxu0 0
        %858 = vmatprep.subr.bf16.mxu0 0
        %859 = vmatpush1.bf16.xpose.msra.mxu0 0
        %860 = vmatprep.subr.bf16.mxu0 0
        %861 = vmatpush1.bf16.xpose.msra.mxu0 0
        %862 = vmatprep.subr.bf16.mxu0 0
        %863 = vmatpush1.bf16.xpose.msra.mxu0 0
        %864 = vmatprep.subr.bf16.mxu0 0
        %865 = vmatpush1.bf16.xpose.msra.mxu0 0
        %866 = vmatprep.subr.bf16.mxu0 0
        %867 = vmatpush1.bf16.xpose.msra.mxu0 0
        %868 = vmatprep.subr.bf16.mxu0 0
        %869 = vmatpush1.bf16.xpose.msra.mxu0 0
        %870 = vmatprep.subr.bf16.mxu0 0
        %871 = vmatpush1.bf16.xpose.msra.mxu0 0
        %872 = vmatprep.subr.bf16.mxu0 0
        %873 = vmatpush1.bf16.xpose.msra.mxu0 0
        %874 = vmatprep.mubr.bf16.mxu0 0
        %875 = vmatmul.mubr.bf16.gmra.mrb[0].mxu0 %v837
        %v876 = vpop.f32.mrb[0].mxu0
        %v877 = vadd.f32 0.0, %v876
        %v878 = vpop.f32.mrb[0].mxu0
        %v879 = vpop.f32.mrb[0].mxu0
        %v880 = vpop.f32.mrb[0].mxu0
        %881 = vdwg.mxu0
        %v882 = vsel %vm723, %v877, -inf
        %883 = vmax.xlane.f32.xlu0 %v882
        %v884 = vpop.xlane.xlu0 %883
        %v885 = vsub.f32 %v877, %v884
        %v886 = vmul.f32 %v885, 1.442695
        %v887 = vpow.pop %v886
        %v888 = vsel %vm723, %v887, 0.0
        %889 = vadd.xlane.f32.xlu0 %v888
        %v890 = vpop.xlane.xlu0 %889
        %v891 = vrcp.pop %v890
        %v892 = vmul.f32 %v887, %v891
        %v893 = vpack.c.bf16 %v892, %v892
        %894 = vrot.lane.b32.xlu0 %v720, 56
        %v895 = vpop.permute.xlu0 %894
        %v897 = vsel %vm723, %v893, 0
        %v900 = vsel %vm787, %v895, 0
        %902 = vmatprep.subr.bf16.mxu0 0
        %903 = vmatpush1.bf16.msra.mxu0 %v900
        %904 = vmatprep.subr.bf16.mxu0 0
        %905 = vmatpush1.bf16.msra.mxu0 0
        %906 = vmatprep.subr.bf16.mxu0 0
        %907 = vmatpush1.bf16.msra.mxu0 0
        %908 = vmatprep.subr.bf16.mxu0 0
        %909 = vmatpush1.bf16.msra.mxu0 0
        %910 = vmatprep.subr.bf16.mxu0 0
        %911 = vmatpush1.bf16.msra.mxu0 0
        %912 = vmatprep.subr.bf16.mxu0 0
        %913 = vmatpush1.bf16.msra.mxu0 0
        %914 = vmatprep.subr.bf16.mxu0 0
        %915 = vmatpush1.bf16.msra.mxu0 0
        %916 = vmatprep.subr.bf16.mxu0 0
        %917 = vmatpush1.bf16.msra.mxu0 0
        %918 = vmatprep.subr.bf16.mxu0 0
        %919 = vmatpush1.bf16.msra.mxu0 0
        %920 = vmatprep.subr.bf16.mxu0 0
        %921 = vmatpush1.bf16.msra.mxu0 0
        %922 = vmatprep.subr.bf16.mxu0 0
        %923 = vmatpush1.bf16.msra.mxu0 0
        %924 = vmatprep.subr.bf16.mxu0 0
        %925 = vmatpush1.bf16.msra.mxu0 0
        %926 = vmatprep.subr.bf16.mxu0 0
        %927 = vmatpush1.bf16.msra.mxu0 0
        %928 = vmatprep.subr.bf16.mxu0 0
        %929 = vmatpush1.bf16.msra.mxu0 0
        %930 = vmatprep.subr.bf16.mxu0 0
        %931 = vmatpush1.bf16.msra.mxu0 0
        %932 = vmatprep.subr.bf16.mxu0 0
        %933 = vmatpush1.bf16.msra.mxu0 0
        %934 = vmatprep.mubr.bf16.mxu0 0
        %935 = vmatmul.mubr.bf16.gmra.mrb[0].mxu0 %v897
        %v936 = vpop.f32.mrb[0].mxu0
        %v937 = vadd.f32 0.0, %v936
        %v938 = vpop.f32.mrb[0].mxu0
        %v939 = vpop.f32.mrb[0].mxu0
        %v940 = vpop.f32.mrb[0].mxu0
        %941 = vdwg.mxu0
        %v942 = vpack.c.bf16 %v937, %v937
        %943 = vrot.lane.b32.xlu0 %v720, 112
        %v944 = vpop.permute.xlu0 %943
        %945 = vrot.lane.b32.xlu0 %v720, 80
        %v946 = vpop.permute.xlu0 %945
        %v948 = vsel %vm723, %v944, 0
        %v951 = vsel %vm723, %v946, 0
        %953 = vmatprep.subr.bf16.mxu0 0
        %954 = vmatpush1.bf16.xpose.msra.mxu0 %v951
        %955 = vmatprep.subr.bf16.mxu0 0
        %956 = vmatpush1.bf16.xpose.msra.mxu0 0
        %957 = vmatprep.subr.bf16.mxu0 0
        %958 = vmatpush1.bf16.xpose.msra.mxu0 0
        %959 = vmatprep.subr.bf16.mxu0 0
        %960 = vmatpush1.bf16.xpose.msra.mxu0 0
        %961 = vmatprep.subr.bf16.mxu0 0
        %962 = vmatpush1.bf16.xpose.msra.mxu0 0
        %963 = vmatprep.subr.bf16.mxu0 0
        %964 = vmatpush1.bf16.xpose.msra.mxu0 0
        %965 = vmatprep.subr.bf16.mxu0 0
        %966 = vmatpush1.bf16.xpose.msra.mxu0 0
        %967 = vmatprep.subr.bf16.mxu0 0
        %968 = vmatpush1.bf16.xpose.msra.mxu0 0
        %969 = vmatprep.subr.bf16.mxu0 0
        %970 = vmatpush1.bf16.xpose.msra.mxu0 0
        %971 = vmatprep.subr.bf16.mxu0 0
        %972 = vmatpush1.bf16.xpose.msra.mxu0 0
        %973 = vmatprep.subr.bf16.mxu0 0
        %974 = vmatpush1.bf16.xpose.msra.mxu0 0
        %975 = vmatprep.subr.bf16.mxu0 0
        %976 = vmatpush1.bf16.xpose.msra.mxu0 0
        %977 = vmatprep.subr.bf16.mxu0 0
        %978 = vmatpush1.bf16.xpose.msra.mxu0 0
        %979 = vmatprep.subr.bf16.mxu0 0
        %980 = vmatpush1.bf16.xpose.msra.mxu0 0
        %981 = vmatprep.subr.bf16.mxu0 0
        %982 = vmatpush1.bf16.xpose.msra.mxu0 0
        %983 = vmatprep.subr.bf16.mxu0 0
        %984 = vmatpush1.bf16.xpose.msra.mxu0 0
        %985 = vmatprep.mubr.bf16.mxu0 0
        %986 = vmatmul.mubr.bf16.gmra.mrb[0].mxu0 %v948
        %v987 = vpop.f32.mrb[0].mxu0
        %v988 = vadd.f32 0.0, %v987
        %v989 = vpop.f32.mrb[0].mxu0
        %v990 = vpop.f32.mrb[0].mxu0
        %v991 = vpop.f32.mrb[0].mxu0
        %992 = vdwg.mxu0
        %v993 = vsel %vm723, %v988, -inf
        %994 = vmax.xlane.f32.xlu0 %v993
        %v995 = vpop.xlane.xlu0 %994
        %v996 = vsub.f32 %v988, %v995
        %v997 = vmul.f32 %v996, 1.442695
        %v998 = vpow.pop %v997
        %v999 = vsel %vm723, %v998, 0.0
        %1000 = vadd.xlane.f32.xlu0 %v999
        %v1001 = vpop.xlane.xlu0 %1000
        %v1002 = vrcp.pop %v1001
        %v1003 = vmul.f32 %v998, %v1002
        %v1004 = vpack.c.bf16 %v1003, %v1003
        %1005 = vrot.lane.b32.xlu0 %v720, 48
        %v1006 = vpop.permute.xlu0 %1005
        %v1008 = vsel %vm723, %v1004, 0
        %v1011 = vsel %vm787, %v1006, 0
        %1013 = vmatprep.subr.bf16.mxu0 0
        %1014 = vmatpush1.bf16.msra.mxu0 %v1011
        %1015 = vmatprep.subr.bf16.mxu0 0
        %1016 = vmatpush1.bf16.msra.mxu0 0
        %1017 = vmatprep.subr.bf16.mxu0 0
        %1018 = vmatpush1.bf16.msra.mxu0 0
        %1019 = vmatprep.subr.bf16.mxu0 0
        %1020 = vmatpush1.bf16.msra.mxu0 0
        %1021 = vmatprep.subr.bf16.mxu0 0
        %1022 = vmatpush1.bf16.msra.mxu0 0
        %1023 = vmatprep.subr.bf16.mxu0 0
        %1024 = vmatpush1.bf16.msra.mxu0 0
        %1025 = vmatprep.subr.bf16.mxu0 0
        %1026 = vmatpush1.bf16.msra.mxu0 0
        %1027 = vmatprep.subr.bf16.mxu0 0
        %1028 = vmatpush1.bf16.msra.mxu0 0
        %1029 = vmatprep.subr.bf16.mxu0 0
        %1030 = vmatpush1.bf16.msra.mxu0 0
        %1031 = vmatprep.subr.bf16.mxu0 0
        %1032 = vmatpush1.bf16.msra.mxu0 0
        %1033 = vmatprep.subr.bf16.mxu0 0
        %1034 = vmatpush1.bf16.msra.mxu0 0
        %1035 = vmatprep.subr.bf16.mxu0 0
        %1036 = vmatpush1.bf16.msra.mxu0 0
        %1037 = vmatprep.subr.bf16.mxu0 0
        %1038 = vmatpush1.bf16.msra.mxu0 0
        %1039 = vmatprep.subr.bf16.mxu0 0
        %1040 = vmatpush1.bf16.msra.mxu0 0
        %1041 = vmatprep.subr.bf16.mxu0 0
        %1042 = vmatpush1.bf16.msra.mxu0 0
        %1043 = vmatprep.subr.bf16.mxu0 0
        %1044 = vmatpush1.bf16.msra.mxu0 0
        %1045 = vmatprep.mubr.bf16.mxu0 0
        %1046 = vmatmul.mubr.bf16.gmra.mrb[0].mxu0 %v1008
        %v1047 = vpop.f32.mrb[0].mxu0
        %v1048 = vadd.f32 0.0, %v1047
        %v1049 = vpop.f32.mrb[0].mxu0
        %v1050 = vpop.f32.mrb[0].mxu0
        %v1051 = vpop.f32.mrb[0].mxu0
        %1052 = vdwg.mxu0
        %v1053 = vpack.c.bf16 %v1048, %v1048
        %1054 = vrot.lane.b32.xlu0 %v720, 104
        %v1055 = vpop.permute.xlu0 %1054
        %1056 = vrot.lane.b32.xlu0 %v720, 72
        %v1057 = vpop.permute.xlu0 %1056
        %v1059 = vsel %vm723, %v1055, 0
        %v1062 = vsel %vm723, %v1057, 0
        %1064 = vmatprep.subr.bf16.mxu0 0
        %1065 = vmatpush1.bf16.xpose.msra.mxu0 %v1062
        %1066 = vmatprep.subr.bf16.mxu0 0
        %1067 = vmatpush1.bf16.xpose.msra.mxu0 0
        %1068 = vmatprep.subr.bf16.mxu0 0
        %1069 = vmatpush1.bf16.xpose.msra.mxu0 0
        %1070 = vmatprep.subr.bf16.mxu0 0
        %1071 = vmatpush1.bf16.xpose.msra.mxu0 0
        %1072 = vmatprep.subr.bf16.mxu0 0
        %1073 = vmatpush1.bf16.xpose.msra.mxu0 0
        %1074 = vmatprep.subr.bf16.mxu0 0
        %1075 = vmatpush1.bf16.xpose.msra.mxu0 0
        %1076 = vmatprep.subr.bf16.mxu0 0
        %1077 = vmatpush1.bf16.xpose.msra.mxu0 0
        %1078 = vmatprep.subr.bf16.mxu0 0
        %1079 = vmatpush1.bf16.xpose.msra.mxu0 0
        %1080 = vmatprep.subr.bf16.mxu0 0
        %1081 = vmatpush1.bf16.xpose.msra.mxu0 0
        %1082 = vmatprep.subr.bf16.mxu0 0
        %1083 = vmatpush1.bf16.xpose.msra.mxu0 0
        %1084 = vmatprep.subr.bf16.mxu0 0
        %1085 = vmatpush1.bf16.xpose.msra.mxu0 0
        %1086 = vmatprep.subr.bf16.mxu0 0
        %1087 = vmatpush1.bf16.xpose.msra.mxu0 0
        %1088 = vmatprep.subr.bf16.mxu0 0
        %1089 = vmatpush1.bf16.xpose.msra.mxu0 0
        %1090 = vmatprep.subr.bf16.mxu0 0
        %1091 = vmatpush1.bf16.xpose.msra.mxu0 0
        %1092 = vmatprep.subr.bf16.mxu0 0
        %1093 = vmatpush1.bf16.xpose.msra.mxu0 0
        %1094 = vmatprep.subr.bf16.mxu0 0
        %1095 = vmatpush1.bf16.xpose.msra.mxu0 0
        %1096 = vmatprep.mubr.bf16.mxu0 0
        %1097 = vmatmul.mubr.bf16.gmra.mrb[0].mxu0 %v1059
        %v1098 = vpop.f32.mrb[0].mxu0
        %v1099 = vadd.f32 0.0, %v1098
        %v1100 = vpop.f32.mrb[0].mxu0
        %v1101 = vpop.f32.mrb[0].mxu0
        %v1102 = vpop.f32.mrb[0].mxu0
        %1103 = vdwg.mxu0
        %v1104 = vsel %vm723, %v1099, -inf
        %1105 = vmax.xlane.f32.xlu0 %v1104
        %v1106 = vpop.xlane.xlu0 %1105
        %v1107 = vsub.f32 %v1099, %v1106
        %v1108 = vmul.f32 %v1107, 1.442695
        %v1109 = vpow.pop %v1108
        %v1110 = vsel %vm723, %v1109, 0.0
        %1111 = vadd.xlane.f32.xlu0 %v1110
        %v1112 = vpop.xlane.xlu0 %1111
        %v1113 = vrcp.pop %v1112
        %v1114 = vmul.f32 %v1109, %v1113
        %v1115 = vpack.c.bf16 %v1114, %v1114
        %1116 = vrot.lane.b32.xlu0 %v720, 40
        %v1117 = vpop.permute.xlu0 %1116
        %v1119 = vsel %vm723, %v1115, 0
        %v1122 = vsel %vm787, %v1117, 0
        %1124 = vmatprep.subr.bf16.mxu0 0
        %1125 = vmatpush1.bf16.msra.mxu0 %v1122
        %1126 = vmatprep.subr.bf16.mxu0 0
        %1127 = vmatpush1.bf16.msra.mxu0 0
        %1128 = vmatprep.subr.bf16.mxu0 0
        %1129 = vmatpush1.bf16.msra.mxu0 0
        %1130 = vmatprep.subr.bf16.mxu0 0
        %1131 = vmatpush1.bf16.msra.mxu0 0
        %1132 = vmatprep.subr.bf16.mxu0 0
        %1133 = vmatpush1.bf16.msra.mxu0 0
        %1134 = vmatprep.subr.bf16.mxu0 0
        %1135 = vmatpush1.bf16.msra.mxu0 0
        %1136 = vmatprep.subr.bf16.mxu0 0
        %1137 = vmatpush1.bf16.msra.mxu0 0
        %1138 = vmatprep.subr.bf16.mxu0 0
        %1139 = vmatpush1.bf16.msra.mxu0 0
        %1140 = vmatprep.subr.bf16.mxu0 0
        %1141 = vmatpush1.bf16.msra.mxu0 0
        %1142 = vmatprep.subr.bf16.mxu0 0
        %1143 = vmatpush1.bf16.msra.mxu0 0
        %1144 = vmatprep.subr.bf16.mxu0 0
        %1145 = vmatpush1.bf16.msra.mxu0 0
        %1146 = vmatprep.subr.bf16.mxu0 0
        %1147 = vmatpush1.bf16.msra.mxu0 0
        %1148 = vmatprep.subr.bf16.mxu0 0
        %1149 = vmatpush1.bf16.msra.mxu0 0
        %1150 = vmatprep.subr.bf16.mxu0 0
        %1151 = vmatpush1.bf16.msra.mxu0 0
        %1152 = vmatprep.subr.bf16.mxu0 0
        %1153 = vmatpush1.bf16.msra.mxu0 0
        %1154 = vmatprep.subr.bf16.mxu0 0
        %1155 = vmatpush1.bf16.msra.mxu0 0
        %1156 = vmatprep.mubr.bf16.mxu0 0
        %1157 = vmatmul.mubr.bf16.gmra.mrb[0].mxu0 %v1119
        %v1158 = vpop.f32.mrb[0].mxu0
        %v1159 = vadd.f32 0.0, %v1158
        %v1160 = vpop.f32.mrb[0].mxu0
        %v1161 = vpop.f32.mrb[0].mxu0
        %v1162 = vpop.f32.mrb[0].mxu0
        %1163 = vdwg.mxu0
        %v1164 = vpack.c.bf16 %v1159, %v1159
        %1166 = vrot.lane.b32.xlu0 %v942, 8
        %v1167 = vpop.permute.xlu0 %1166
        %1169 = vrot.lane.b32.xlu0 %v1053, 16
        %v1170 = vpop.permute.xlu0 %1169
        %1172 = vrot.lane.b32.xlu0 %v1164, 24
        %v1173 = vpop.permute.xlu0 %1172
        %v1176 = vsel %vm723, %v831, %v1167
        %vm1177 = vcmask 130048
        %v1179 = vsel %vm1177, %v1176, %v1170
        %vm1180 = vcmask 195584
        %v1182 = vsel %vm1180, %v1179, %v1173
        %vm1184 = vcmask 257024
        %1185 = vst.msk [vmem:[#allocation3] sm:$0xf] %vm1184, %v1182
        %v1186 = vld [vmem:[#allocation3] sm:$0xf]
        %v1187 = vld [vmem:[#allocation13] sm:$0xf]
        %v1188 = vld [vmem:[#allocation13 + $0x4] sm:$0xf]
        %v1189 = vld [vmem:[#allocation13 + $0x8] sm:$0xf]
        %v1190 = vld [vmem:[#allocation13 + $0xc] sm:$0xf]
        %v1191 = vld [vmem:[#allocation15] sm:$0x1]
        %v1193 = vlaneseq
        %v1194 = vshrl.u32 %v1193, 7
        %v1195 = vsub.s32 0, %v1194
        %v1196 = vrot.slane %v1191, %v1195
        %v1202 = vunpack.c.l.b16 %v1187
        %v1203 = vunpack.c.l.b16 %v1188
        %v1204 = vunpack.c.l.b16 %v1189
        %v1205 = vunpack.c.l.b16 %v1190
        %v1206 = vpack.c.b16 %v1203, %v1202
        %v1207 = vpack.c.b16 %v1205, %v1204
        %v1211 = vsel %vm618, %v1186, 0
        %1213 = vmatprep.subr.bf16.mxu0 0
        %1214 = vmatpush1.bf16.msra.mxu0 %v1206
        %1215 = vmatprep.subr.bf16.mxu0 0
        %1216 = vmatpush1.bf16.msra.mxu0 %v1207
        %1217 = vmatprep.subr.bf16.mxu0 0
        %1218 = vmatpush1.bf16.msra.mxu0 0
        %1219 = vmatprep.subr.bf16.mxu0 0
        %1220 = vmatpush1.bf16.msra.mxu0 0
        %1221 = vmatprep.subr.bf16.mxu0 0
        %1222 = vmatpush1.bf16.msra.mxu0 0
        %1223 = vmatprep.subr.bf16.mxu0 0
        %1224 = vmatpush1.bf16.msra.mxu0 0
        %1225 = vmatprep.subr.bf16.mxu0 0
        %1226 = vmatpush1.bf16.msra.mxu0 0
        %1227 = vmatprep.subr.bf16.mxu0 0
        %1228 = vmatpush1.bf16.msra.mxu0 0
        %1229 = vmatprep.subr.bf16.mxu0 0
        %1230 = vmatpush1.bf16.msra.mxu0 0
        %1231 = vmatprep.subr.bf16.mxu0 0
        %1232 = vmatpush1.bf16.msra.mxu0 0
        %1233 = vmatprep.subr.bf16.mxu0 0
        %1234 = vmatpush1.bf16.msra.mxu0 0
        %1235 = vmatprep.subr.bf16.mxu0 0
        %1236 = vmatpush1.bf16.msra.mxu0 0
        %1237 = vmatprep.subr.bf16.mxu0 0
        %1238 = vmatpush1.bf16.msra.mxu0 0
        %1239 = vmatprep.subr.bf16.mxu0 0
        %1240 = vmatpush1.bf16.msra.mxu0 0
        %1241 = vmatprep.subr.bf16.mxu0 0
        %1242 = vmatpush1.bf16.msra.mxu0 0
        %1243 = vmatprep.subr.bf16.mxu0 0
        %1244 = vmatpush1.bf16.msra.mxu0 0
        %1245 = vmatprep.mubr.bf16.mxu0 0
        %1246 = vmatmul.mubr.bf16.gmra.mrb[0].mxu0 %v1211
        %v1247 = vpop.f32.mrb[0].mxu0
        %v1248 = vadd.f32 %v1196, %v1247
        %v1249 = vpop.f32.mrb[0].mxu0
        %v1250 = vpop.f32.mrb[0].mxu0
        %v1251 = vpop.f32.mrb[0].mxu0
        %1252 = vdwg.mxu0
        %v1253 = vadd.f32 %v615, %v1248
        %v1254 = vld [vmem:[#allocation16] sm:$0x1]
        %v1255 = vld [vmem:[#allocation18] sm:$0x1]
        %v1256 = vsel %vm618, %v1253, 0.0
        %1257 = vadd.xlane.f32.xlu0 %v1256
        %v1258 = vpop.xlane.xlu0 %1257
        %v1259 = vmul.f32 %v1258, %v622
        %v1260 = vsub.f32 %v1253, %v1259
        %v1261 = vmul.f32 %v1260, %v1260
        %v1262 = vsel %vm618, %v1261, 0.0
        %1263 = vadd.xlane.f32.xlu0 %v1262
        %v1264 = vpop.xlane.xlu0 %1263
        %v1265 = vmul.f32 %v1264, %v622
        %v1266 = vadd.f32 %v1265, 1e-05
        %v1267 = vrsqrt.pop %v1266
        %v1268 = vmul.f32 %v1260, %v1267
        %v1270 = vlaneseq
        %v1271 = vshrl.u32 %v1270, 7
        %v1272 = vsub.s32 0, %v1271
        %v1273 = vrot.slane %v1254, %v1272
        %v1275 = vmul.f32 %v1268, %v1273
        %v1277 = vlaneseq
        %v1278 = vshrl.u32 %v1277, 7
        %v1279 = vsub.s32 0, %v1278
        %v1280 = vrot.slane %v1255, %v1279
        %v1282 = vadd.f32 %v1275, %v1280
        %v1283 = vpack.c.bf16 %v1282, %v1282
        %v1284 = vld [vmem:[#allocation19] sm:$0xf]
        %v1285 = vld [vmem:[#allocation19 + $0x4] sm:$0xf]
        %v1286 = vld [vmem:[#allocation19 + $0x8] sm:$0xf]
        %v1287 = vld [vmem:[#allocation19 + $0xc] sm:$0xf]
        %v1288 = vld [vmem:[#allocation21] sm:$0x1]
        %v1290 = vlaneseq
        %v1291 = vshrl.u32 %v1290, 7
        %v1292 = vsub.s32 0, %v1291
        %v1293 = vrot.slane %v1288, %v1292
        %v1299 = vunpack.c.l.b16 %v1284
        %v1300 = vunpack.c.l.b16 %v1285
        %v1301 = vunpack.c.l.b16 %v1286
        %v1302 = vunpack.c.l.b16 %v1287
        %v1303 = vpack.c.b16 %v1300, %v1299
        %v1304 = vpack.c.b16 %v1302, %v1301
        %v1308 = vsel %vm618, %v1283, 0
        %1310 = vmatprep.subr.bf16.mxu0 0
        %1311 = vmatpush1.bf16.msra.mxu0 %v1303
        %1312 = vmatprep.subr.bf16.mxu0 0
        %1313 = vmatpush1.bf16.msra.mxu0 %v1304
        %1314 = vmatprep.subr.bf16.mxu0 0
        %1315 = vmatpush1.bf16.msra.mxu0 0
        %1316 = vmatprep.subr.bf16.mxu0 0
        %1317 = vmatpush1.bf16.msra.mxu0 0
        %1318 = vmatprep.subr.bf16.mxu0 0
        %1319 = vmatpush1.bf16.msra.mxu0 0
        %1320 = vmatprep.subr.bf16.mxu0 0
        %1321 = vmatpush1.bf16.msra.mxu0 0
        %1322 = vmatprep.subr.bf16.mxu0 0
        %1323 = vmatpush1.bf16.msra.mxu0 0
        %1324 = vmatprep.subr.bf16.mxu0 0
        %1325 = vmatpush1.bf16.msra.mxu0 0
        %1326 = vmatprep.subr.bf16.mxu0 0
        %1327 = vmatpush1.bf16.msra.mxu0 0
        %1328 = vmatprep.subr.bf16.mxu0 0
        %1329 = vmatpush1.bf16.msra.mxu0 0
        %1330 = vmatprep.subr.bf16.mxu0 0
        %1331 = vmatpush1.bf16.msra.mxu0 0
        %1332 = vmatprep.subr.bf16.mxu0 0
        %1333 = vmatpush1.bf16.msra.mxu0 0
        %1334 = vmatprep.subr.bf16.mxu0 0
        %1335 = vmatpush1.bf16.msra.mxu0 0
        %1336 = vmatprep.subr.bf16.mxu0 0
        %1337 = vmatpush1.bf16.msra.mxu0 0
        %1338 = vmatprep.subr.bf16.mxu0 0
        %1339 = vmatpush1.bf16.msra.mxu0 0
        %1340 = vmatprep.subr.bf16.mxu0 0
        %1341 = vmatpush1.bf16.msra.mxu0 0
        %1342 = vmatprep.mubr.bf16.mxu0 0
        %1343 = vmatmul.mubr.bf16.gmra.mrb[0].mxu0 %v1308
        %v1344 = vpop.f32.mrb[0].mxu0
        %v1345 = vadd.f32 %v1293, %v1344
        %v1346 = vpop.f32.mrb[0].mxu0
        %v1347 = vpop.f32.mrb[0].mxu0
        %v1348 = vpop.f32.mrb[0].mxu0
        %1349 = vdwg.mxu0
        %v1350 = vmul.f32 %v1345, 0.5
        %v1351 = vmul.f32 %v1345, 0.70710677
        %vm1352 = vcmp.ge.f32.partialorder %v1351, 0.0
        %v1353 = vsel %vm1352, 1.0, -1.0
        %v1354 = vand.u32 2147483647, %v1351
        %v1355 = vmul.f32 %v1354, 0.3275911
        %v1356 = vadd.f32 %v1355, 1.0
        %v1357 = vrcp.pop %v1356
        %v1358 = vmul.f32 %v1357, 1.0614054
        %v1359 = vadd.f32 %v1358, -1.4531521
        %v1360 = vmul.f32 %v1359, %v1357
        %v1361 = vadd.f32 %v1360, 1.4214138
        %v1362 = vmul.f32 %v1361, %v1357
        %v1363 = vadd.f32 %v1362, -0.28449672
        %v1364 = vmul.f32 %v1363, %v1357
        %v1365 = vadd.f32 %v1364, 0.2548296
        %v1366 = vmul.f32 %v1365, %v1357
        %v1367 = vsub.f32 0.0, %v1354
        %v1368 = vmul.f32 %v1367, %v1354
        %v1369 = vmul.f32 %v1368, 1.442695
        %v1370 = vpow.pop %v1369
        %v1371 = vmul.f32 %v1366, %v1370
        %v1372 = vsub.f32 1.0, %v1371
        %v1373 = vmul.f32 %v1353, %v1372
        %v1374 = vadd.f32 %v1373, 1.0
        %v1375 = vmul.f32 %v1350, %v1374
        %v1376 = vpack.c.bf16 %v1375, %v1375
        %v1377 = vld [vmem:[#allocation22] sm:$0xf]
        %v1378 = vld [vmem:[#allocation22 + $0x4] sm:$0xf]
        %v1379 = vld [vmem:[#allocation22 + $0x8] sm:$0xf]
        %v1380 = vld [vmem:[#allocation22 + $0xc] sm:$0xf]
        %v1381 = vld [vmem:[#allocation22 + $0x10] sm:$0xf]
        %v1382 = vld [vmem:[#allocation22 + $0x14] sm:$0xf]
        %v1383 = vld [vmem:[#allocation22 + $0x18] sm:$0xf]
        %v1384 = vld [vmem:[#allocation22 + $0x1c] sm:$0xf]
        %v1393 = vunpack.c.l.b16 %v1377
        %v1394 = vunpack.c.l.b16 %v1378
        %v1395 = vunpack.c.l.b16 %v1379
        %v1396 = vunpack.c.l.b16 %v1380
        %v1397 = vunpack.c.l.b16 %v1381
        %v1398 = vunpack.c.l.b16 %v1382
        %v1399 = vunpack.c.l.b16 %v1383
        %v1400 = vunpack.c.l.b16 %v1384
        %v1401 = vpack.c.b16 %v1394, %v1393
        %v1402 = vpack.c.b16 %v1396, %v1395
        %v1403 = vpack.c.b16 %v1398, %v1397
        %v1404 = vpack.c.b16 %v1400, %v1399
        %vm1409 = vcmask 523264
        %v1411 = vsel %vm1409, %v1376, 0
        %1413 = vmatprep.subr.bf16.mxu0 0
        %1414 = vmatpush1.bf16.msra.mxu0 %v1401
        %1415 = vmatprep.subr.bf16.mxu0 0
        %1416 = vmatpush1.bf16.msra.mxu0 %v1402
        %1417 = vmatprep.subr.bf16.mxu0 0
        %1418 = vmatpush1.bf16.msra.mxu0 %v1403
        %1419 = vmatprep.subr.bf16.mxu0 0
        %1420 = vmatpush1.bf16.msra.mxu0 %v1404
        %1421 = vmatprep.subr.bf16.mxu0 0
        %1422 = vmatpush1.bf16.msra.mxu0 0
        %1423 = vmatprep.subr.bf16.mxu0 0
        %1424 = vmatpush1.bf16.msra.mxu0 0
        %1425 = vmatprep.subr.bf16.mxu0 0
        %1426 = vmatpush1.bf16.msra.mxu0 0
        %1427 = vmatprep.subr.bf16.mxu0 0
        %1428 = vmatpush1.bf16.msra.mxu0 0
        %1429 = vmatprep.subr.bf16.mxu0 0
        %1430 = vmatpush1.bf16.msra.mxu0 0
        %1431 = vmatprep.subr.bf16.mxu0 0
        %1432 = vmatpush1.bf16.msra.mxu0 0
        %1433 = vmatprep.subr.bf16.mxu0 0
        %1434 = vmatpush1.bf16.msra.mxu0 0
        %1435 = vmatprep.subr.bf16.mxu0 0
        %1436 = vmatpush1.bf16.msra.mxu0 0
        %1437 = vmatprep.subr.bf16.mxu0 0
        %1438 = vmatpush1.bf16.msra.mxu0 0
        %1439 = vmatprep.subr.bf16.mxu0 0
        %1440 = vmatpush1.bf16.msra.mxu0 0
        %1441 = vmatprep.subr.bf16.mxu0 0
        %1442 = vmatpush1.bf16.msra.mxu0 0
        %1443 = vmatprep.subr.bf16.mxu0 0
        %1444 = vmatpush1.bf16.msra.mxu0 0
        %1445 = vmatprep.mubr.bf16.mxu0 0
        %1446 = vmatmul.mubr.bf16.gmra.mrb[0].mxu0 %v1411
        %v1447 = vpop.f32.mrb[0].mxu0
        %v1448 = vadd.f32 0.0, %v1447
        %v1449 = vpop.f32.mrb[0].mxu0
        %v1450 = vpop.f32.mrb[0].mxu0
        %v1451 = vpop.f32.mrb[0].mxu0
        %1452 = vdwg.mxu0
        %v1453 = vadd.f32 %v1253, %v1448
        %v1454 = vld [vmem:[#allocation24] sm:$0x1]
        %v1456 = vlaneseq
        %v1457 = vshrl.u32 %v1456, 7
        %v1458 = vsub.s32 0, %v1457
        %v1459 = vrot.slane %v1454, %v1458
        %v1461 = vadd.f32 %v1453, %v1459
        %1462 = vst.msk [vmem:[%s613] sm:$0xff] %vm618, %v1461
        %s1463 = sand.u32 %s322, 1
        %s1464 = scalar_lea.sflag [#allocation6], %s1463
        %s1465 = sand.u32 %s322, 1
        %s1466 = smul.addr %s1465, 8
        %s1467 = scalar_lea.vmem [#allocation25], %s1466
        // Predicated region
        $region125: #{tpu_custom_call.1} parent=71 // pred_check
          %p1468 = pneg %p332
        $region126: #{tpu_custom_call.1} parent=71 // pred_check_branch
          %1470 = sbr.rel (%p1468) target = $region128
        $region127: #{tpu_custom_call.1} parent=71 // pred_region
          %s1472 = ssub.s32 128, 128
          %1473 = vsyncadd %s1464, %s1472
          %s1474 = smul.addr %s36, 128
          %s1475 = scalar_lea.hbm %s13, %s1474
          %s1477 = sshll.u32 %s1467, 4
          %s1478 = int_to_ptr.vmem [resolvable:$true] %s1477
          %1480 = dma.vmem_to_hbm [thread:$0]  %s1478, 128, %s1475, %s1464
        $region128: #{tpu_custom_call.1} parent=71 // pred_fallthru
          _
      $region72: #{tpu_custom_call.1} parent=5 // pred_fallthru
        _
      %p1481 = scmp.le.s32.totalorder 2, %s31
      // Predicated region
      $region129: #{tpu_custom_call.1} parent=5 // pred_check
        %p1482 = pneg %p1481
      $region130: #{tpu_custom_call.1} parent=5 // pred_check_branch
        %1484 = sbr.rel (%p1482) target = $region132
      $region131: #{tpu_custom_call.1} parent=5 // pred_region
        %s1485 = ssub.s32 %s31, 2
        // Predicated region
        $region133: #{tpu_custom_call.1} parent=131 // pred_check
          %p1486 = pneg %p338
        $region134: #{tpu_custom_call.1} parent=131 // pred_check_branch
          %1488 = sbr.rel (%p1486) target = $region136
        $region135: #{tpu_custom_call.1} parent=131 // pred_region
          %s1489 = sand.u32 %s323, 1
          %s1490 = scalar_lea.sflag [#allocation6], %s1489
          %s1491 = sand.u32 %s323, 1
          %s1492 = smul.addr %s1491, 8
          %s1493 = scalar_lea.vmem [#allocation25], %s1492
          %1494 = dma.done %s1490, 128
        $region136: #{tpu_custom_call.1} parent=131 // pred_fallthru
          _
      $region132: #{tpu_custom_call.1} parent=5 // pred_fallthru
        _
    $region6: #{tpu_custom_call.1} parent=1 // loop_footer
      %s35 = sadd.s32 1, %s31
    $region7: #{tpu_custom_call.1} parent=1 // loop_footer_branch
      %30 = sbr.rel target = $region3
    $region8: #{tpu_custom_call.1} parent=1 // loop_exit
      _
    %1495 = vsyncpa [#allocation5], 1
    %s1496 = scalar_lea.sflag [#allocation5], 1
    %1497 = vsyncpa %s1496, 1
    %1498 = vsyncpa [#allocation8], 1
    %1499 = vsyncpa [#allocation11], 1
    %1500 = vsyncpa [#allocation14], 1
    %1501 = vsyncpa [#allocation17], 1
    %1502 = vsyncpa [#allocation20], 1
    %1503 = vsyncpa [#allocation23], 1
    %1504 = vsyncpa [#allocation6], 1
    %s1505 = scalar_lea.sflag [#allocation6], 1
    %1506 = vsyncpa %s1505, 1

// kernel: tpu_custom_call.1
$region0: #{tpu_custom_call.1}
  #allocation0 [shape = 'u32[]', space=smem, size = 0x4, offset = 0x4, fixed_abs, tag = 'smem constant byte address 0x4 - core index']
  #allocation1 [shape = 'u32[144,128]{1,0:T(1,128)}', space=vmem, size = 0x12000, scoped, tag = 'internal scratch']
  #allocation2 [shape = 'bf16[8,96]{1,0:T(8,128)(2,1)}', space=vmem, size = 0x800, scoped, tag = 'scratch operand']
  #allocation3 [shape = 'bf16[8,32]{1,0:T(8,128)(2,1)}', space=vmem, size = 0x800, scoped, tag = 'scratch operand']
  %s0 = inlined_call_operand.hbm [shape: f32[16,32], index: 0, kind: input, shape index: {}]
  %s1 = inlined_call_operand.hbm [shape: f32[1,32], index: 1, kind: input, shape index: {}]
  %s2 = inlined_call_operand.hbm [shape: f32[1,32], index: 2, kind: input, shape index: {}]
  %s3 = inlined_call_operand.hbm [shape: bf16[32,96], index: 3, kind: input, shape index: {}]
  %s4 = inlined_call_operand.hbm [shape: f32[1,96], index: 4, kind: input, shape index: {}]
  %s5 = inlined_call_operand.hbm [shape: bf16[32,32], index: 5, kind: input, shape index: {}]
  %s6 = inlined_call_operand.hbm [shape: f32[1,32], index: 6, kind: input, shape index: {}]
  %s7 = inlined_call_operand.hbm [shape: f32[1,32], index: 7, kind: input, shape index: {}]
  %s8 = inlined_call_operand.hbm [shape: f32[1,32], index: 8, kind: input, shape index: {}]
  %s9 = inlined_call_operand.hbm [shape: bf16[32,64], index: 9, kind: input, shape index: {}]
  %s10 = inlined_call_operand.hbm [shape: f32[1,64], index: 10, kind: input, shape index: {}]
  %s11 = inlined_call_operand.hbm [shape: bf16[64,32], index: 11, kind: input, shape index: {}]
  %s12 = inlined_call_operand.hbm [shape: f32[1,32], index: 12, kind: input, shape index: {}]
  %s13 = inlined_call_operand.hbm [shape: f32[16,32], index: 13, kind: output, shape index: {}]
  %s14 = sld [smem:[#allocation0]]
  $region137: #{tpu_custom_call.1} parent=0
    _
  %s16 = ssub.s32 1, %s14
  %s17 = scalar_select 0, %s16, %s14
  $region1: #{tpu_custom_call.1} parent=0
    #allocation4 [shape = 'u8[8192]{0}', space=vmem, size = 0x2000, scoped, tag = 'input window, operand 0']
    #allocation5 [shape = 's32[2]{0}', space=sflag, size = 0x8, scoped, tag = 'scoped memory for tpu_custom_call.1']
    #allocation6 [shape = 's32[2]{0}', space=sflag, size = 0x8, scoped, tag = 'scoped memory for tpu_custom_call.1']
    #allocation7 [shape = 'u8[512]{0}', space=vmem, size = 0x400, scoped, tag = 'input window, operand 1, single buffered']
    #allocation8 [shape = 's32[1]{0}', space=sflag, size = 0x4, scoped, tag = 'scoped memory for tpu_custom_call.1']
    #allocation9 [shape = 'u8[512]{0}', space=vmem, size = 0x400, scoped, tag = 'input window, operand 2, single buffered']
    #allocation10 [shape = 'u8[8192]{0}', space=vmem, size = 0x2000, scoped, tag = 'input window, operand 3, single buffered']
    #allocation11 [shape = 's32[1]{0}', space=sflag, size = 0x4, scoped, tag = 'scoped memory for tpu_custom_call.1']
    #allocation12 [shape = 'u8[512]{0}', space=vmem, size = 0x400, scoped, tag = 'input window, operand 4, single buffered']
    #allocation13 [shape = 'u8[8192]{0}', space=vmem, size = 0x2000, scoped, tag = 'input window, operand 5, single buffered']
    #allocation14 [shape = 's32[1]{0}', space=sflag, size = 0x4, scoped, tag = 'scoped memory for tpu_custom_call.1']
    #allocation15 [shape = 'u8[512]{0}', space=vmem, size = 0x400, scoped, tag = 'input window, operand 6, single buffered']
    #allocation16 [shape = 'u8[512]{0}', space=vmem, size = 0x400, scoped, tag = 'input window, operand 7, single buffered']
    #allocation17 [shape = 's32[1]{0}', space=sflag, size = 0x4, scoped, tag = 'scoped memory for tpu_custom_call.1']
    #allocation18 [shape = 'u8[512]{0}', space=vmem, size = 0x400, scoped, tag = 'input window, operand 8, single buffered']
    #allocation19 [shape = 'u8[8192]{0}', space=vmem, size = 0x2000, scoped, tag = 'input window, operand 9, single buffered']
    #allocation20 [shape = 's32[1]{0}', space=sflag, size = 0x4, scoped, tag = 'scoped memory for tpu_custom_call.1']
    #allocation21 [shape = 'u8[512]{0}', space=vmem, size = 0x400, scoped, tag = 'input window, operand 10, single buffered']
    #allocation22 [shape = 'u8[16384]{0}', space=vmem, size = 0x4000, scoped, tag = 'input window, operand 11, single buffered']
    #allocation23 [shape = 's32[1]{0}', space=sflag, size = 0x4, scoped, tag = 'scoped memory for tpu_custom_call.1']
    #allocation24 [shape = 'u8[512]{0}', space=vmem, size = 0x400, scoped, tag = 'input window, operand 12, single buffered']
    #allocation25 [shape = 'u8[8192]{0}', space=vmem, size = 0x2000, scoped, tag = 'output window, operand 0']
    %18 = vsyncpa [#allocation5], 0
    %s19 = scalar_lea.sflag [#allocation5], 1
    %20 = vsyncpa %s19, 0
    %21 = vsyncpa [#allocation8], 0
    %22 = vsyncpa [#allocation11], 0
    %23 = vsyncpa [#allocation14], 0
    %24 = vsyncpa [#allocation17], 0
    %25 = vsyncpa [#allocation20], 0
    %26 = vsyncpa [#allocation23], 0
    %27 = vsyncpa [#allocation6], 0
    %s28 = scalar_lea.sflag [#allocation6], 1
    %29 = vsyncpa %s28, 0
    loop: start=0, step=1, limit=4
    $region2: #{tpu_custom_call.1} parent=1 // loop_pre_header
      _
    $region3: #{tpu_custom_call.1} parent=1 // loop_header
      %s31 = sphi 0, %s35
      %p32 = scmp.ge.s32.totalorder %s31, 4
      %s41 = sphi 0, %s43
      %s44 = sphi 0, %s41
      %s45 = sphi 0, %s44
      %s61 = sphi 0, %s45
      %s65 = sphi 0, %s65
      %s67 = sphi 0, %s65
      %s68 = sphi 0, %s67
      %s82 = sphi 0, %s68
      %s86 = sphi 0, %s86
      %s88 = sphi 0, %s86
      %s89 = sphi 0, %s88
      %s103 = sphi 0, %s89
      %s107 = sphi 0, %s107
      %s109 = sphi 0, %s107
      %s110 = sphi 0, %s109
      %s124 = sphi 0, %s110
      %s128 = sphi 0, %s128
      %s130 = sphi 0, %s128
      %s131 = sphi 0, %s130
      %s145 = sphi 0, %s131
      %s149 = sphi 0, %s149
      %s151 = sphi 0, %s149
      %s152 = sphi 0, %s151
      %s166 = sphi 0, %s152
      %s170 = sphi 0, %s170
      %s172 = sphi 0, %s170
      %s173 = sphi 0, %s172
      %s187 = sphi 0, %s173
      %s191 = sphi 0, %s191
      %s193 = sphi 0, %s191
      %s194 = sphi 0, %s193
      %s208 = sphi 0, %s194
      %s212 = sphi 0, %s212
      %s214 = sphi 0, %s212
      %s215 = sphi 0, %s214
      %s229 = sphi 0, %s215
      %s233 = sphi 0, %s233
      %s235 = sphi 0, %s233
      %s236 = sphi 0, %s235
      %s250 = sphi 0, %s236
      %s254 = sphi 0, %s254
      %s256 = sphi 0, %s254
      %s257 = sphi 0, %s256
      %s271 = sphi 0, %s257
      %s275 = sphi 0, %s275
      %s277 = sphi 0, %s275
      %s278 = sphi 0, %s277
      %s292 = sphi 0, %s278
      %s296 = sphi 0, %s296
      %s298 = sphi 0, %s296
      %s299 = sphi 0, %s298
      %s313 = sphi 0, %s299
      %s319 = sphi 0, %s321
      %s322 = sphi 0, %s319
      %s323 = sphi 0, %s322
      %s339 = sphi 0, %s323
    $region4: #{tpu_custom_call.1} parent=1 // loop_header_branch
      %34 = sbr.rel (%p32) target = $region8
    $region5: #{tpu_custom_call.1} parent=1 // loop_body
      %s36 = ssub.s32 %s31, 1
      %s37 = ssub.s32 %s31, 2
      %s38 = sadd.s32 %s31, 1
      %s39 = ssub.s32 %s31, %s38
      %p40 = scmp.eq.s32.totalorder %s39, 0
      %s42 = sadd.s32 %s41, 1
      %s43 = scalar_select %p40, %s41, %s42
      %p46 = pneg %p40
      %p47 = scmp.eq.s32.totalorder %s31, 1
      %p48 = por %p46, %p47
      %p49 = scmp.ne.s32.totalorder %s41, %s44
      %p50 = scmp.eq.s32.totalorder %s31, 0
      %p51 = por %p49, %p50
      %p52 = scmp.ne.s32.totalorder %s41, %s44
      %p53 = scmp.eq.s32.totalorder %s36, 1
      %p54 = por %p52, %p53
      %p55 = scmp.ne.s32.totalorder %s44, %s45
      %p56 = scmp.eq.s32.totalorder %s36, 0
      %p57 = por %p55, %p56
      %p58 = scmp.ne.s32.totalorder %s44, %s45
      %p59 = scmp.eq.s32.totalorder %s37, 1
      %p60 = por %p58, %p59
      %p62 = scmp.ne.s32.totalorder %s45, %s61
      %p63 = scmp.eq.s32.totalorder %s37, 0
      %p64 = por %p62, %p63
      %s66 = sadd.s32 %s65, 1
      %p69 = scmp.eq.s32.totalorder %s31, 1
      %p70 = scmp.ne.s32.totalorder %s65, %s67
      %p71 = scmp.eq.s32.totalorder %s31, 0
      %p72 = por %p70, %p71
      %p73 = scmp.ne.s32.totalorder %s65, %s67
      %p74 = scmp.eq.s32.totalorder %s36, 1
      %p75 = por %p73, %p74
      %p76 = scmp.ne.s32.totalorder %s67, %s68
      %p77 = scmp.eq.s32.totalorder %s36, 0
      %p78 = por %p76, %p77
      %p79 = scmp.ne.s32.totalorder %s67, %s68
      %p80 = scmp.eq.s32.totalorder %s37, 1
      %p81 = por %p79, %p80
      %p83 = scmp.ne.s32.totalorder %s68, %s82
      %p84 = scmp.eq.s32.totalorder %s37, 0
      %p85 = por %p83, %p84
      %s87 = sadd.s32 %s86, 1
      %p90 = scmp.eq.s32.totalorder %s31, 1
      %p91 = scmp.ne.s32.totalorder %s86, %s88
      %p92 = scmp.eq.s32.totalorder %s31, 0
      %p93 = por %p91, %p92
      %p94 = scmp.ne.s32.totalorder %s86, %s88
      %p95 = scmp.eq.s32.totalorder %s36, 1
      %p96 = por %p94, %p95
      %p97 = scmp.ne.s32.totalorder %s88, %s89
      %p98 = scmp.eq.s32.totalorder %s36, 0
      %p99 = por %p97, %p98
      %p100 = scmp.ne.s32.totalorder %s88, %s89
      %p101 = scmp.eq.s32.totalorder %s37, 1
      %p102 = por %p100, %p101
      %p104 = scmp.ne.s32.totalorder %s89, %s103
      %p105 = scmp.eq.s32.totalorder %s37, 0
      %p106 = por %p104, %p105
      %s108 = sadd.s32 %s107, 1
      %p111 = scmp.eq.s32.totalorder %s31, 1
      %p112 = scmp.ne.s32.totalorder %s107, %s109
      %p113 = scmp.eq.s32.totalorder %s31, 0
      %p114 = por %p112, %p113
      %p115 = scmp.ne.s32.totalorder %s107, %s109
      %p116 = scmp.eq.s32.totalorder %s36, 1
      %p117 = por %p115, %p116
      %p118 = scmp.ne.s32.totalorder %s109, %s110
      %p119 = scmp.eq.s32.totalorder %s36, 0
      %p120 = por %p118, %p119
      %p121 = scmp.ne.s32.totalorder %s109, %s110
      %p122 = scmp.eq.s32.totalorder %s37, 1
      %p123 = por %p121, %p122
      %p125 = scmp.ne.s32.totalorder %s110, %s124
      %p126 = scmp.eq.s32.totalorder %s37, 0
      %p127 = por %p125, %p126
      %s129 = sadd.s32 %s128, 1
      %p132 = scmp.eq.s32.totalorder %s31, 1
      %p133 = scmp.ne.s32.totalorder %s128, %s130
      %p134 = scmp.eq.s32.totalorder %s31, 0
      %p135 = por %p133, %p134
      %p136 = scmp.ne.s32.totalorder %s128, %s130
      %p137 = scmp.eq.s32.totalorder %s36, 1
      %p138 = por %p136, %p137
      %p139 = scmp.ne.s32.totalorder %s130, %s131
      %p140 = scmp.eq.s32.totalorder %s36, 0
      %p141 = por %p139, %p140
      %p142 = scmp.ne.s32.totalorder %s130, %s131
      %p143 = scmp.eq.s32.totalorder %s37, 1
      %p144 = por %p142, %p143
      %p146 = scmp.ne.s32.totalorder %s131, %s145
      %p147 = scmp.eq.s32.totalorder %s37, 0
      %p148 = por %p146, %p147
      %s150 = sadd.s32 %s149, 1
      %p153 = scmp.eq.s32.totalorder %s31, 1
      %p154 = scmp.ne.s32.totalorder %s149, %s151
      %p155 = scmp.eq.s32.totalorder %s31, 0
      %p156 = por %p154, %p155
      %p157 = scmp.ne.s32.totalorder %s149, %s151
      %p158 = scmp.eq.s32.totalorder %s36, 1
      %p159 = por %p157, %p158
      %p160 = scmp.ne.s32.totalorder %s151, %s152
      %p161 = scmp.eq.s32.totalorder %s36, 0
      %p162 = por %p160, %p161
      %p163 = scmp.ne.s32.totalorder %s151, %s152
      %p164 = scmp.eq.s32.totalorder %s37, 1
      %p165 = por %p163, %p164
      %p167 = scmp.ne.s32.totalorder %s152, %s166
      %p168 = scmp.eq.s32.totalorder %s37, 0
      %p169 = por %p167, %p168
      %s171 = sadd.s32 %s170, 1
      %p174 = scmp.eq.s32.totalorder %s31, 1
      %p175 = scmp.ne.s32.totalorder %s170, %s172
      %p176 = scmp.eq.s32.totalorder %s31, 0
      %p177 = por %p175, %p176
      %p178 = scmp.ne.s32.totalorder %s170, %s172
      %p179 = scmp.eq.s32.totalorder %s36, 1
      %p180 = por %p178, %p179
      %p181 = scmp.ne.s32.totalorder %s172, %s173
      %p182 = scmp.eq.s32.totalorder %s36, 0
      %p183 = por %p181, %p182
      %p184 = scmp.ne.s32.totalorder %s172, %s173
      %p185 = scmp.eq.s32.totalorder %s37, 1
      %p186 = por %p184, %p185
      %p188 = scmp.ne.s32.totalorder %s173, %s187
      %p189 = scmp.eq.s32.totalorder %s37, 0
      %p190 = por %p188, %p189
      %s192 = sadd.s32 %s191, 1
      %p195 = scmp.eq.s32.totalorder %s31, 1
      %p196 = scmp.ne.s32.totalorder %s191, %s193
      %p197 = scmp.eq.s32.totalorder %s31, 0
      %p198 = por %p196, %p197
      %p199 = scmp.ne.s32.totalorder %s191, %s193
      %p200 = scmp.eq.s32.totalorder %s36, 1
      %p201 = por %p199, %p200
      %p202 = scmp.ne.s32.totalorder %s193, %s194
      %p203 = scmp.eq.s32.totalorder %s36, 0
      %p204 = por %p202, %p203
      %p205 = scmp.ne.s32.totalorder %s193, %s194
      %p206 = scmp.eq.s32.totalorder %s37, 1
      %p207 = por %p205, %p206
      %p209 = scmp.ne.s32.totalorder %s194, %s208
      %p210 = scmp.eq.s32.totalorder %s37, 0
      %p211 = por %p209, %p210
      %s213 = sadd.s32 %s212, 1
      %p216 = scmp.eq.s32.totalorder %s31, 1
      %p217 = scmp.ne.s32.totalorder %s212, %s214
      %p218 = scmp.eq.s32.totalorder %s31, 0
      %p219 = por %p217, %p218
      %p220 = scmp.ne.s32.totalorder %s212, %s214
      %p221 = scmp.eq.s32.totalorder %s36, 1
      %p222 = por %p220, %p221
      %p223 = scmp.ne.s32.totalorder %s214, %s215
      %p224 = scmp.eq.s32.totalorder %s36, 0
      %p225 = por %p223, %p224
      %p226 = scmp.ne.s32.totalorder %s214, %s215
      %p227 = scmp.eq.s32.totalorder %s37, 1
      %p228 = por %p226, %p227
      %p230 = scmp.ne.s32.totalorder %s215, %s229
      %p231 = scmp.eq.s32.totalorder %s37, 0
      %p232 = por %p230, %p231
      %s234 = sadd.s32 %s233, 1
      %p237 = scmp.eq.s32.totalorder %s31, 1
      %p238 = scmp.ne.s32.totalorder %s233, %s235
      %p239 = scmp.eq.s32.totalorder %s31, 0
      %p240 = por %p238, %p239
      %p241 = scmp.ne.s32.totalorder %s233, %s235
      %p242 = scmp.eq.s32.totalorder %s36, 1
      %p243 = por %p241, %p242
      %p244 = scmp.ne.s32.totalorder %s235, %s236
      %p245 = scmp.eq.s32.totalorder %s36, 0
      %p246 = por %p244, %p245
      %p247 = scmp.ne.s32.totalorder %s235, %s236
      %p248 = scmp.eq.s32.totalorder %s37, 1
      %p249 = por %p247, %p248
      %p251 = scmp.ne.s32.totalorder %s236, %s250
      %p252 = scmp.eq.s32.totalorder %s37, 0
      %p253 = por %p251, %p252
      %s255 = sadd.s32 %s254, 1
      %p258 = scmp.eq.s32.totalorder %s31, 1
      %p259 = scmp.ne.s32.totalorder %s254, %s256
      %p260 = scmp.eq.s32.totalorder %s31, 0
      %p261 = por %p259, %p260
      %p262 = scmp.ne.s32.totalorder %s254, %s256
      %p263 = scmp.eq.s32.totalorder %s36, 1
      %p264 = por %p262, %p263
      %p265 = scmp.ne.s32.totalorder %s256, %s257
      %p266 = scmp.eq.s32.totalorder %s36, 0
      %p267 = por %p265, %p266
      %p268 = scmp.ne.s32.totalorder %s256, %s257
      %p269 = scmp.eq.s32.totalorder %s37, 1
      %p270 = por %p268, %p269
      %p272 = scmp.ne.s32.totalorder %s257, %s271
      %p273 = scmp.eq.s32.totalorder %s37, 0
      %p274 = por %p272, %p273
      %s276 = sadd.s32 %s275, 1
      %p279 = scmp.eq.s32.totalorder %s31, 1
      %p280 = scmp.ne.s32.totalorder %s275, %s277
      %p281 = scmp.eq.s32.totalorder %s31, 0
      %p282 = por %p280, %p281
      %p283 = scmp.ne.s32.totalorder %s275, %s277
      %p284 = scmp.eq.s32.totalorder %s36, 1
      %p285 = por %p283, %p284
      %p286 = scmp.ne.s32.totalorder %s277, %s278
      %p287 = scmp.eq.s32.totalorder %s36, 0
      %p288 = por %p286, %p287
      %p289 = scmp.ne.s32.totalorder %s277, %s278
      %p290 = scmp.eq.s32.totalorder %s37, 1
      %p291 = por %p289, %p290
      %p293 = scmp.ne.s32.totalorder %s278, %s292
      %p294 = scmp.eq.s32.totalorder %s37, 0
      %p295 = por %p293, %p294
      %s297 = sadd.s32 %s296, 1
      %p300 = scmp.eq.s32.totalorder %s31, 1
      %p301 = scmp.ne.s32.totalorder %s296, %s298
      %p302 = scmp.eq.s32.totalorder %s31, 0
      %p303 = por %p301, %p302
      %p304 = scmp.ne.s32.totalorder %s296, %s298
      %p305 = scmp.eq.s32.totalorder %s36, 1
      %p306 = por %p304, %p305
      %p307 = scmp.ne.s32.totalorder %s298, %s299
      %p308 = scmp.eq.s32.totalorder %s36, 0
      %p309 = por %p307, %p308
      %p310 = scmp.ne.s32.totalorder %s298, %s299
      %p311 = scmp.eq.s32.totalorder %s37, 1
      %p312 = por %p310, %p311
      %p314 = scmp.ne.s32.totalorder %s299, %s313
      %p315 = scmp.eq.s32.totalorder %s37, 0
      %p316 = por %p314, %p315
      %s317 = ssub.s32 %s31, %s38
      %p318 = scmp.eq.s32.totalorder %s317, 0
      %s320 = sadd.s32 %s319, 1
      %s321 = scalar_select %p318, %s319, %s320
      %p324 = pneg %p318
      %p325 = scmp.eq.s32.totalorder %s31, 1
      %p326 = por %p324, %p325
      %p327 = scmp.ne.s32.totalorder %s319, %s322
      %p328 = scmp.eq.s32.totalorder %s31, 0
      %p329 = por %p327, %p328
      %p330 = scmp.ne.s32.totalorder %s319, %s322
      %p331 = scmp.eq.s32.totalorder %s36, 1
      %p332 = por %p330, %p331
      %p333 = scmp.ne.s32.totalorder %s322, %s323
      %p334 = scmp.eq.s32.totalorder %s36, 0
      %p335 = por %p333, %p334
      %p336 = scmp.ne.s32.totalorder %s322, %s323
      %p337 = scmp.eq.s32.totalorder %s37, 1
      %p338 = por %p336, %p337
      %p340 = scmp.ne.s32.totalorder %s323, %s339
      %p341 = scmp.eq.s32.totalorder %s37, 0
      %p342 = por %p340, %p341
      %p343 = scmp.le.s32.totalorder 1, %s31
      %p344 = scmp.lt.s32.totalorder %s31, 3
      %p345 = pnand %p343, %p344
      %p346 = pneg %p345
      // Predicated region
      $region9: #{tpu_custom_call.1} parent=5 // pred_check
        _
      $region10: #{tpu_custom_call.1} parent=5 // pred_check_branch
        %348 = sbr.rel (%p345) target = $region12
      $region11: #{tpu_custom_call.1} parent=5 // pred_region
        %s349 = ssub.s32 %s31, 1
        // Predicated region
        $region13: #{tpu_custom_call.1} parent=11 // pred_check
          %p350 = pneg %p78
        $region14: #{tpu_custom_call.1} parent=11 // pred_check_branch
          %352 = sbr.rel (%p350) target = $region16
        $region15: #{tpu_custom_call.1} parent=11 // pred_region
          %s354 = ssub.s32 16, 16
          %355 = vsyncadd [#allocation8], %s354
          %s357 = sshll.u32 [#allocation7], 4
          %s358 = int_to_ptr.vmem [resolvable:$true] %s357
          %360 = dma.hbm_to_vmem [thread:$0]  %s1, 16, %s358, [#allocation8]
        $region16: #{tpu_custom_call.1} parent=11 // pred_fallthru
          _
        // Predicated region
        $region17: #{tpu_custom_call.1} parent=11 // pred_check
          %p361 = pneg %p99
        $region18: #{tpu_custom_call.1} parent=11 // pred_check_branch
          %363 = sbr.rel (%p361) target = $region20
        $region19: #{tpu_custom_call.1} parent=11 // pred_region
          %s365 = ssub.s32 16, 16
          %366 = vsyncadd [#allocation8], %s365
          %s368 = sshll.u32 [#allocation9], 4
          %s369 = int_to_ptr.vmem [resolvable:$true] %s368
          %371 = dma.hbm_to_vmem [thread:$0]  %s2, 16, %s369, [#allocation8]
        $region20: #{tpu_custom_call.1} parent=11 // pred_fallthru
          _
        // Predicated region
        $region21: #{tpu_custom_call.1} parent=11 // pred_check
          %p372 = pneg %p120
        $region22: #{tpu_custom_call.1} parent=11 // pred_check_branch
          %374 = sbr.rel (%p372) target = $region24
        $region23: #{tpu_custom_call.1} parent=11 // pred_region
          %s376 = ssub.s32 256, 256
          %377 = vsyncadd [#allocation11], %s376
          %s378 = sshll.u32 [#allocation10], 4
          %s379 = int_to_ptr.vmem [resolvable:$true] %s378
          %384 = dma.hbm_to_vmem [thread:$0]  %s3, 256, %s379, [#allocation11], 64, 64, 4
        $region24: #{tpu_custom_call.1} parent=11 // pred_fallthru
          _
        // Predicated region
        $region25: #{tpu_custom_call.1} parent=11 // pred_check
          %p385 = pneg %p141
        $region26: #{tpu_custom_call.1} parent=11 // pred_check_branch
          %387 = sbr.rel (%p385) target = $region28
        $region27: #{tpu_custom_call.1} parent=11 // pred_region
          %s389 = ssub.s32 16, 16
          %390 = vsyncadd [#allocation11], %s389
          %s392 = sshll.u32 [#allocation12], 4
          %s393 = int_to_ptr.vmem [resolvable:$true] %s392
          %395 = dma.hbm_to_vmem [thread:$0]  %s4, 16, %s393, [#allocation11]
        $region28: #{tpu_custom_call.1} parent=11 // pred_fallthru
          _
        // Predicated region
        $region29: #{tpu_custom_call.1} parent=11 // pred_check
          %p396 = pneg %p162
        $region30: #{tpu_custom_call.1} parent=11 // pred_check_branch
          %398 = sbr.rel (%p396) target = $region32
        $region31: #{tpu_custom_call.1} parent=11 // pred_region
          %s400 = ssub.s32 256, 256
          %401 = vsyncadd [#allocation14], %s400
          %s402 = sshll.u32 [#allocation13], 4
          %s403 = int_to_ptr.vmem [resolvable:$true] %s402
          %408 = dma.hbm_to_vmem [thread:$0]  %s5, 256, %s403, [#allocation14], 64, 64, 4
        $region32: #{tpu_custom_call.1} parent=11 // pred_fallthru
          _
        // Predicated region
        $region33: #{tpu_custom_call.1} parent=11 // pred_check
          %p409 = pneg %p183
        $region34: #{tpu_custom_call.1} parent=11 // pred_check_branch
          %411 = sbr.rel (%p409) target = $region36
        $region35: #{tpu_custom_call.1} parent=11 // pred_region
          %s413 = ssub.s32 16, 16
          %414 = vsyncadd [#allocation14], %s413
          %s416 = sshll.u32 [#allocation15], 4
          %s417 = int_to_ptr.vmem [resolvable:$true] %s416
          %419 = dma.hbm_to_vmem [thread:$0]  %s6, 16, %s417, [#allocation14]
        $region36: #{tpu_custom_call.1} parent=11 // pred_fallthru
          _
        // Predicated region
        $region37: #{tpu_custom_call.1} parent=11 // pred_check
          %p420 = pneg %p204
        $region38: #{tpu_custom_call.1} parent=11 // pred_check_branch
          %422 = sbr.rel (%p420) target = $region40
        $region39: #{tpu_custom_call.1} parent=11 // pred_region
          %s424 = ssub.s32 16, 16
          %425 = vsyncadd [#allocation17], %s424
          %s427 = sshll.u32 [#allocation16], 4
          %s428 = int_to_ptr.vmem [resolvable:$true] %s427
          %430 = dma.hbm_to_vmem [thread:$0]  %s7, 16, %s428, [#allocation17]
        $region40: #{tpu_custom_call.1} parent=11 // pred_fallthru
          _
        // Predicated region
        $region41: #{tpu_custom_call.1} parent=11 // pred_check
          %p431 = pneg %p225
        $region42: #{tpu_custom_call.1} parent=11 // pred_check_branch
          %433 = sbr.rel (%p431) target = $region44
        $region43: #{tpu_custom_call.1} parent=11 // pred_region
          %s435 = ssub.s32 16, 16
          %436 = vsyncadd [#allocation17], %s435
          %s438 = sshll.u32 [#allocation18], 4
          %s439 = int_to_ptr.vmem [resolvable:$true] %s438
          %441 = dma.hbm_to_vmem [thread:$0]  %s8, 16, %s439, [#allocation17]
        $region44: #{tpu_custom_call.1} parent=11 // pred_fallthru
          _
        // Predicated region
        $region45: #{tpu_custom_call.1} parent=11 // pred_check
          %p442 = pneg %p246
        $region46: #{tpu_custom_call.1} parent=11 // pred_check_branch
          %444 = sbr.rel (%p442) target = $region48
        $region47: #{tpu_custom_call.1} parent=11 // pred_region
          %s446 = ssub.s32 256, 256
          %447 = vsyncadd [#allocation20], %s446
          %s448 = sshll.u32 [#allocation19], 4
          %s449 = int_to_ptr.vmem [resolvable:$true] %s448
          %454 = dma.hbm_to_vmem [thread:$0]  %s9, 256, %s449, [#allocation20], 64, 64, 4
        $region48: #{tpu_custom_call.1} parent=11 // pred_fallthru
          _
        // Predicated region
        $region49: #{tpu_custom_call.1} parent=11 // pred_check
          %p455 = pneg %p267
        $region50: #{tpu_custom_call.1} parent=11 // pred_check_branch
          %457 = sbr.rel (%p455) target = $region52
        $region51: #{tpu_custom_call.1} parent=11 // pred_region
          %s459 = ssub.s32 16, 16
          %460 = vsyncadd [#allocation20], %s459
          %s462 = sshll.u32 [#allocation21], 4
          %s463 = int_to_ptr.vmem [resolvable:$true] %s462
          %465 = dma.hbm_to_vmem [thread:$0]  %s10, 16, %s463, [#allocation20]
        $region52: #{tpu_custom_call.1} parent=11 // pred_fallthru
          _
        // Predicated region
        $region53: #{tpu_custom_call.1} parent=11 // pred_check
          %p466 = pneg %p288
        $region54: #{tpu_custom_call.1} parent=11 // pred_check_branch
          %468 = sbr.rel (%p466) target = $region56
        $region55: #{tpu_custom_call.1} parent=11 // pred_region
          %s470 = ssub.s32 512, 512
          %471 = vsyncadd [#allocation23], %s470
          %s472 = sshll.u32 [#allocation22], 4
          %s473 = int_to_ptr.vmem [resolvable:$true] %s472
          %478 = dma.hbm_to_vmem [thread:$0]  %s11, 512, %s473, [#allocation23], 64, 64, 4
        $region56: #{tpu_custom_call.1} parent=11 // pred_fallthru
          _
        // Predicated region
        $region57: #{tpu_custom_call.1} parent=11 // pred_check
          %p479 = pneg %p309
        $region58: #{tpu_custom_call.1} parent=11 // pred_check_branch
          %481 = sbr.rel (%p479) target = $region60
        $region59: #{tpu_custom_call.1} parent=11 // pred_region
          %s483 = ssub.s32 16, 16
          %484 = vsyncadd [#allocation23], %s483
          %s486 = sshll.u32 [#allocation24], 4
          %s487 = int_to_ptr.vmem [resolvable:$true] %s486
          %489 = dma.hbm_to_vmem [thread:$0]  %s12, 16, %s487, [#allocation23]
        $region60: #{tpu_custom_call.1} parent=11 // pred_fallthru
          _
      $region12: #{tpu_custom_call.1} parent=5 // pred_fallthru
        _
      %p490 = scmp.lt.s32.totalorder %s31, 2
      // Predicated region
      $region61: #{tpu_custom_call.1} parent=5 // pred_check
        %p491 = pneg %p490
      $region62: #{tpu_custom_call.1} parent=5 // pred_check_branch
        %493 = sbr.rel (%p491) target = $region64
      $region63: #{tpu_custom_call.1} parent=5 // pred_region
        // Predicated region
        $region65: #{tpu_custom_call.1} parent=63 // pred_check
          %p494 = pneg %p51
        $region66: #{tpu_custom_call.1} parent=63 // pred_check_branch
          %496 = sbr.rel (%p494) target = $region68
        $region67: #{tpu_custom_call.1} parent=63 // pred_region
          %s497 = sand.u32 %s41, 1
          %s498 = scalar_lea.sflag [#allocation5], %s497
          %s499 = sand.u32 %s41, 1
          %s500 = smul.addr %s499, 8
          %s501 = scalar_lea.vmem [#allocation4], %s500
          %s503 = ssub.s32 128, 128
          %504 = vsyncadd %s498, %s503
          %s505 = smul.addr %s31, 128
          %s506 = scalar_lea.hbm %s0, %s505
          %s508 = sshll.u32 %s501, 4
          %s509 = int_to_ptr.vmem [resolvable:$true] %s508
          %511 = dma.hbm_to_vmem [thread:$0]  %s506, 128, %s509, %s498
        $region68: #{tpu_custom_call.1} parent=63 // pred_fallthru
          _
      $region64: #{tpu_custom_call.1} parent=5 // pred_fallthru
        _
      %p512 = scmp.le.s32.totalorder 1, %s31
      %p513 = scmp.lt.s32.totalorder %s31, 3
      %p514 = pnand %p512, %p513
      %p515 = pneg %p514
      // Predicated region
      $region69: #{tpu_custom_call.1} parent=5 // pred_check
        _
      $region70: #{tpu_custom_call.1} parent=5 // pred_check_branch
        %517 = sbr.rel (%p514) target = $region72
      $region71: #{tpu_custom_call.1} parent=5 // pred_region
        %s518 = ssub.s32 %s31, 1
        %s519 = sand.u32 %s44, 1
        %s520 = scalar_lea.sflag [#allocation5], %s519
        %s521 = sand.u32 %s44, 1
        %s522 = smul.addr %s521, 8
        %s523 = scalar_lea.vmem [#allocation4], %s522
        // Predicated region
        $region73: #{tpu_custom_call.1} parent=71 // pred_check
          %p524 = pneg %p57
        $region74: #{tpu_custom_call.1} parent=71 // pred_check_branch
          %526 = sbr.rel (%p524) target = $region76
        $region75: #{tpu_custom_call.1} parent=71 // pred_region
          %527 = dma.done %s520, 128
        $region76: #{tpu_custom_call.1} parent=71 // pred_fallthru
          _
        // Predicated region
        $region77: #{tpu_custom_call.1} parent=71 // pred_check
          %p528 = pneg %p78
        $region78: #{tpu_custom_call.1} parent=71 // pred_check_branch
          %530 = sbr.rel (%p528) target = $region80
        $region79: #{tpu_custom_call.1} parent=71 // pred_region
          %531 = dma.done [#allocation8], 16
        $region80: #{tpu_custom_call.1} parent=71 // pred_fallthru
          _
        // Predicated region
        $region81: #{tpu_custom_call.1} parent=71 // pred_check
          %p532 = pneg %p99
        $region82: #{tpu_custom_call.1} parent=71 // pred_check_branch
          %534 = sbr.rel (%p532) target = $region84
        $region83: #{tpu_custom_call.1} parent=71 // pred_region
          %535 = dma.done [#allocation8], 16
        $region84: #{tpu_custom_call.1} parent=71 // pred_fallthru
          _
        // Predicated region
        $region85: #{tpu_custom_call.1} parent=71 // pred_check
          %p536 = pneg %p120
        $region86: #{tpu_custom_call.1} parent=71 // pred_check_branch
          %538 = sbr.rel (%p536) target = $region88
        $region87: #{tpu_custom_call.1} parent=71 // pred_region
          %539 = dma.done [#allocation11], 256
        $region88: #{tpu_custom_call.1} parent=71 // pred_fallthru
          _
        // Predicated region
        $region89: #{tpu_custom_call.1} parent=71 // pred_check
          %p540 = pneg %p141
        $region90: #{tpu_custom_call.1} parent=71 // pred_check_branch
          %542 = sbr.rel (%p540) target = $region92
        $region91: #{tpu_custom_call.1} parent=71 // pred_region
          %543 = dma.done [#allocation11], 16
        $region92: #{tpu_custom_call.1} parent=71 // pred_fallthru
          _
        // Predicated region
        $region93: #{tpu_custom_call.1} parent=71 // pred_check
          %p544 = pneg %p162
        $region94: #{tpu_custom_call.1} parent=71 // pred_check_branch
          %546 = sbr.rel (%p544) target = $region96
        $region95: #{tpu_custom_call.1} parent=71 // pred_region
          %547 = dma.done [#allocation14], 256
        $region96: #{tpu_custom_call.1} parent=71 // pred_fallthru
          _
        // Predicated region
        $region97: #{tpu_custom_call.1} parent=71 // pred_check
          %p548 = pneg %p183
        $region98: #{tpu_custom_call.1} parent=71 // pred_check_branch
          %550 = sbr.rel (%p548) target = $region100
        $region99: #{tpu_custom_call.1} parent=71 // pred_region
          %551 = dma.done [#allocation14], 16
        $region100: #{tpu_custom_call.1} parent=71 // pred_fallthru
          _
        // Predicated region
        $region101: #{tpu_custom_call.1} parent=71 // pred_check
          %p552 = pneg %p204
        $region102: #{tpu_custom_call.1} parent=71 // pred_check_branch
          %554 = sbr.rel (%p552) target = $region104
        $region103: #{tpu_custom_call.1} parent=71 // pred_region
          %555 = dma.done [#allocation17], 16
        $region104: #{tpu_custom_call.1} parent=71 // pred_fallthru
          _
        // Predicated region
        $region105: #{tpu_custom_call.1} parent=71 // pred_check
          %p556 = pneg %p225
        $region106: #{tpu_custom_call.1} parent=71 // pred_check_branch
          %558 = sbr.rel (%p556) target = $region108
        $region107: #{tpu_custom_call.1} parent=71 // pred_region
          %559 = dma.done [#allocation17], 16
        $region108: #{tpu_custom_call.1} parent=71 // pred_fallthru
          _
        // Predicated region
        $region109: #{tpu_custom_call.1} parent=71 // pred_check
          %p560 = pneg %p246
        $region110: #{tpu_custom_call.1} parent=71 // pred_check_branch
          %562 = sbr.rel (%p560) target = $region112
        $region111: #{tpu_custom_call.1} parent=71 // pred_region
          %563 = dma.done [#allocation20], 256
        $region112: #{tpu_custom_call.1} parent=71 // pred_fallthru
          _
        // Predicated region
        $region113: #{tpu_custom_call.1} parent=71 // pred_check
          %p564 = pneg %p267
        $region114: #{tpu_custom_call.1} parent=71 // pred_check_branch
          %566 = sbr.rel (%p564) target = $region116
        $region115: #{tpu_custom_call.1} parent=71 // pred_region
          %567 = dma.done [#allocation20], 16
        $region116: #{tpu_custom_call.1} parent=71 // pred_fallthru
          _
        // Predicated region
        $region117: #{tpu_custom_call.1} parent=71 // pred_check
          %p568 = pneg %p288
        $region118: #{tpu_custom_call.1} parent=71 // pred_check_branch
          %570 = sbr.rel (%p568) target = $region120
        $region119: #{tpu_custom_call.1} parent=71 // pred_region
          %571 = dma.done [#allocation23], 512
        $region120: #{tpu_custom_call.1} parent=71 // pred_fallthru
          _
        // Predicated region
        $region121: #{tpu_custom_call.1} parent=71 // pred_check
          %p572 = pneg %p309
        $region122: #{tpu_custom_call.1} parent=71 // pred_check_branch
          %574 = sbr.rel (%p572) target = $region124
        $region123: #{tpu_custom_call.1} parent=71 // pred_region
          %575 = dma.done [#allocation23], 16
        $region124: #{tpu_custom_call.1} parent=71 // pred_fallthru
          _
        %s576 = sand.u32 %s44, 1
        %s577 = scalar_lea.sflag [#allocation5], %s576
        %s578 = sand.u32 %s44, 1
        %s579 = smul.addr %s578, 8
        %s580 = scalar_lea.vmem [#allocation4], %s579
        %p581 = pneg %p57
        %p582 = pneg %p54
        %p583 = pneg %p78
        %p584 = pneg %p75
        %p585 = pneg %p99
        %p586 = pneg %p96
        %p587 = pneg %p120
        %p588 = pneg %p117
        %p589 = pneg %p141
        %p590 = pneg %p138
        %p591 = pneg %p162
        %p592 = pneg %p159
        %p593 = pneg %p183
        %p594 = pneg %p180
        %p595 = pneg %p204
        %p596 = pneg %p201
        %p597 = pneg %p225
        %p598 = pneg %p222
        %p599 = pneg %p246
        %p600 = pneg %p243
        %p601 = pneg %p267
        %p602 = pneg %p264
        %p603 = pneg %p288
        %p604 = pneg %p285
        %p605 = pneg %p309
        %p606 = pneg %p306
        %p607 = pneg %p335
        %p608 = pneg %p332
        %s609 = sand.u32 %s322, 1
        %s610 = scalar_lea.sflag [#allocation6], %s609
        %s611 = sand.u32 %s322, 1
        %s612 = smul.addr %s611, 8
        %s613 = scalar_lea.vmem [#allocation25], %s612
        %v615 = vld [vmem:[%s523] sm:$0xff]
        %v616 = vld [vmem:[#allocation7] sm:$0x1]
        %v617 = vld [vmem:[#allocation9] sm:$0x1]
        %vm618 = vcmask 261120
        %v619 = vsel %vm618, %v615, 0.0
        %620 = vadd.xlane.f32.xlu0 %v619
        %v621 = vpop.xlane.xlu0 %620
        %v622 = vrcp.pop 32.0
        %v623 = vmul.f32 %v621, %v622
        %v624 = vsub.f32 %v615, %v623
        %v625 = vmul.f32 %v624, %v624
        %v626 = vsel %vm618, %v625, 0.0
        %627 = vadd.xlane.f32.xlu0 %v626
        %v628 = vpop.xlane.xlu0 %627
        %v629 = vmul.f32 %v628, %v622
        %v630 = vadd.f32 %v629, 1e-05
        %v631 = vrsqrt.pop %v630
        %v632 = vmul.f32 %v624, %v631
        %v634 = vlaneseq
        %v635 = vshrl.u32 %v634, 7
        %v636 = vsub.s32 0, %v635
        %v637 = vrot.slane %v616, %v636
        %v639 = vmul.f32 %v632, %v637
        %v641 = vlaneseq
        %v642 = vshrl.u32 %v641, 7
        %v643 = vsub.s32 0, %v642
        %v644 = vrot.slane %v617, %v643
        %v646 = vadd.f32 %v639, %v644
        %v647 = vpack.c.bf16 %v646, %v646
        %v648 = vld [vmem:[#allocation10] sm:$0xf]
        %v649 = vld [vmem:[#allocation10 + $0x4] sm:$0xf]
        %v650 = vld [vmem:[#allocation10 + $0x8] sm:$0xf]
        %v651 = vld [vmem:[#allocation10 + $0xc] sm:$0xf]
        %v652 = vld [vmem:[#allocation12] sm:$0x1]
        %v654 = vlaneseq
        %v655 = vshrl.u32 %v654, 7
        %v656 = vsub.s32 0, %v655
        %v657 = vrot.slane %v652, %v656
        %v663 = vunpack.c.l.b16 %v648
        %v664 = vunpack.c.l.b16 %v649
        %v665 = vunpack.c.l.b16 %v650
        %v666 = vunpack.c.l.b16 %v651
        %v667 = vpack.c.b16 %v664, %v663
        %v668 = vpack.c.b16 %v666, %v665
        %v672 = vsel %vm618, %v647, 0
        %674 = vmatprep.subr.bf16.mxu0 0
        %675 = vmatpush1.bf16.msra.mxu0 %v667
        %676 = vmatprep.subr.bf16.mxu0 0
        %677 = vmatpush1.bf16.msra.mxu0 %v668
        %678 = vmatprep.subr.bf16.mxu0 0
        %679 = vmatpush1.bf16.msra.mxu0 0
        %680 = vmatprep.subr.bf16.mxu0 0
        %681 = vmatpush1.bf16.msra.mxu0 0
        %682 = vmatprep.subr.bf16.mxu0 0
        %683 = vmatpush1.bf16.msra.mxu0 0
        %684 = vmatprep.subr.bf16.mxu0 0
        %685 = vmatpush1.bf16.msra.mxu0 0
        %686 = vmatprep.subr.bf16.mxu0 0
        %687 = vmatpush1.bf16.msra.mxu0 0
        %688 = vmatprep.subr.bf16.mxu0 0
        %689 = vmatpush1.bf16.msra.mxu0 0
        %690 = vmatprep.subr.bf16.mxu0 0
        %691 = vmatpush1.bf16.msra.mxu0 0
        %692 = vmatprep.subr.bf16.mxu0 0
        %693 = vmatpush1.bf16.msra.mxu0 0
        %694 = vmatprep.subr.bf16.mxu0 0
        %695 = vmatpush1.bf16.msra.mxu0 0
        %696 = vmatprep.subr.bf16.mxu0 0
        %697 = vmatpush1.bf16.msra.mxu0 0
        %698 = vmatprep.subr.bf16.mxu0 0
        %699 = vmatpush1.bf16.msra.mxu0 0
        %700 = vmatprep.subr.bf16.mxu0 0
        %701 = vmatpush1.bf16.msra.mxu0 0
        %702 = vmatprep.subr.bf16.mxu0 0
        %703 = vmatpush1.bf16.msra.mxu0 0
        %704 = vmatprep.subr.bf16.mxu0 0
        %705 = vmatpush1.bf16.msra.mxu0 0
        %706 = vmatprep.mubr.bf16.mxu0 0
        %707 = vmatmul.mubr.bf16.gmra.mrb[0].mxu0 %v672
        %v708 = vpop.f32.mrb[0].mxu0
        %v709 = vadd.f32 %v657, %v708
        %v710 = vpop.f32.mrb[0].mxu0
        %v711 = vpop.f32.mrb[0].mxu0
        %v712 = vpop.f32.mrb[0].mxu0
        %713 = vdwg.mxu0
        %v714 = vpack.c.bf16 %v709, %v709
        %vm715 = vcmask 781312
        %716 = vst.msk [vmem:[#allocation2] sm:$0xf] %vm715, %v714
        %v717 = vld [vmem:[#allocation2] sm:$0xf]
        %v719 = vunpack.c.l.b16 %v717
        %v720 = vpack.c.b16 %v719, %v719
        %721 = vrot.lane.b32.xlu0 %v720, 96
        %v722 = vpop.permute.xlu0 %721
        %vm723 = vcmask 64512
        %v725 = vsel %vm723, %v717, 0
        %v728 = vsel %vm723, %v722, 0
        %730 = vmatprep.subr.bf16.mxu0 0
        %731 = vmatpush1.bf16.xpose.msra.mxu0 %v728
        %732 = vmatprep.subr.bf16.mxu0 0
        %733 = vmatpush1.bf16.xpose.msra.mxu0 0
        %734 = vmatprep.subr.bf16.mxu0 0
        %735 = vmatpush1.bf16.xpose.msra.mxu0 0
        %736 = vmatprep.subr.bf16.mxu0 0
        %737 = vmatpush1.bf16.xpose.msra.mxu0 0
        %738 = vmatprep.subr.bf16.mxu0 0
        %739 = vmatpush1.bf16.xpose.msra.mxu0 0
        %740 = vmatprep.subr.bf16.mxu0 0
        %741 = vmatpush1.bf16.xpose.msra.mxu0 0
        %742 = vmatprep.subr.bf16.mxu0 0
        %743 = vmatpush1.bf16.xpose.msra.mxu0 0
        %744 = vmatprep.subr.bf16.mxu0 0
        %745 = vmatpush1.bf16.xpose.msra.mxu0 0
        %746 = vmatprep.subr.bf16.mxu0 0
        %747 = vmatpush1.bf16.xpose.msra.mxu0 0
        %748 = vmatprep.subr.bf16.mxu0 0
        %749 = vmatpush1.bf16.xpose.msra.mxu0 0
        %750 = vmatprep.subr.bf16.mxu0 0
        %751 = vmatpush1.bf16.xpose.msra.mxu0 0
        %752 = vmatprep.subr.bf16.mxu0 0
        %753 = vmatpush1.bf16.xpose.msra.mxu0 0
        %754 = vmatprep.subr.bf16.mxu0 0
        %755 = vmatpush1.bf16.xpose.msra.mxu0 0
        %756 = vmatprep.subr.bf16.mxu0 0
        %757 = vmatpush1.bf16.xpose.msra.mxu0 0
        %758 = vmatprep.subr.bf16.mxu0 0
        %759 = vmatpush1.bf16.xpose.msra.mxu0 0
        %760 = vmatprep.subr.bf16.mxu0 0
        %761 = vmatpush1.bf16.xpose.msra.mxu0 0
        %762 = vmatprep.mubr.bf16.mxu0 0
        %763 = vmatmul.mubr.bf16.gmra.mrb[0].mxu0 %v725
        %v764 = vpop.f32.mrb[0].mxu0
        %v765 = vadd.f32 0.0, %v764
        %v766 = vpop.f32.mrb[0].mxu0
        %v767 = vpop.f32.mrb[0].mxu0
        %v768 = vpop.f32.mrb[0].mxu0
        %769 = vdwg.mxu0
        %v770 = vsel %vm723, %v765, -inf
        %771 = vmax.xlane.f32.xlu0 %v770
        %v772 = vpop.xlane.xlu0 %771
        %v773 = vsub.f32 %v765, %v772
        %v774 = vmul.f32 %v773, 1.442695
        %v775 = vpow.pop %v774
        %v776 = vsel %vm723, %v775, 0.0
        %777 = vadd.xlane.f32.xlu0 %v776
        %v778 = vpop.xlane.xlu0 %777
        %v779 = vrcp.pop %v778
        %v780 = vmul.f32 %v775, %v779
        %v781 = vpack.c.bf16 %v780, %v780
        %782 = vrot.lane.b32.xlu0 %v720, 64
        %v783 = vpop.permute.xlu0 %782
        %v785 = vsel %vm723, %v781, 0
        %vm787 = vcmask 1043456
        %v789 = vsel %vm787, %v783, 0
        %791 = vmatprep.subr.bf16.mxu0 0
        %792 = vmatpush1.bf16.msra.mxu0 %v789
        %793 = vmatprep.subr.bf16.mxu0 0
        %794 = vmatpush1.bf16.msra.mxu0 0
        %795 = vmatprep.subr.bf16.mxu0 0
        %796 = vmatpush1.bf16.msra.mxu0 0
        %797 = vmatprep.subr.bf16.mxu0 0
        %798 = vmatpush1.bf16.msra.mxu0 0
        %799 = vmatprep.subr.bf16.mxu0 0
        %800 = vmatpush1.bf16.msra.mxu0 0
        %801 = vmatprep.subr.bf16.mxu0 0
        %802 = vmatpush1.bf16.msra.mxu0 0
        %803 = vmatprep.subr.bf16.mxu0 0
        %804 = vmatpush1.bf16.msra.mxu0 0
        %805 = vmatprep.subr.bf16.mxu0 0
        %806 = vmatpush1.bf16.msra.mxu0 0
        %807 = vmatprep.subr.bf16.mxu0 0
        %808 = vmatpush1.bf16.msra.mxu0 0
        %809 = vmatprep.subr.bf16.mxu0 0
        %810 = vmatpush1.bf16.msra.mxu0 0
        %811 = vmatprep.subr.bf16.mxu0 0
        %812 = vmatpush1.bf16.msra.mxu0 0
        %813 = vmatprep.subr.bf16.mxu0 0
        %814 = vmatpush1.bf16.msra.mxu0 0
        %815 = vmatprep.subr.bf16.mxu0 0
        %816 = vmatpush1.bf16.msra.mxu0 0
        %817 = vmatprep.subr.bf16.mxu0 0
        %818 = vmatpush1.bf16.msra.mxu0 0
        %819 = vmatprep.subr.bf16.mxu0 0
        %820 = vmatpush1.bf16.msra.mxu0 0
        %821 = vmatprep.subr.bf16.mxu0 0
        %822 = vmatpush1.bf16.msra.mxu0 0
        %823 = vmatprep.mubr.bf16.mxu0 0
        %824 = vmatmul.mubr.bf16.gmra.mrb[0].mxu0 %v785
        %v825 = vpop.f32.mrb[0].mxu0
        %v826 = vadd.f32 0.0, %v825
        %v827 = vpop.f32.mrb[0].mxu0
        %v828 = vpop.f32.mrb[0].mxu0
        %v829 = vpop.f32.mrb[0].mxu0
        %830 = vdwg.mxu0
        %v831 = vpack.c.bf16 %v826, %v826
        %832 = vrot.lane.b32.xlu0 %v720, 120
        %v833 = vpop.permute.xlu0 %832
        %834 = vrot.lane.b32.xlu0 %v720, 88
        %v835 = vpop.permute.xlu0 %834
        %v837 = vsel %vm723, %v833, 0
        %v840 = vsel %vm723, %v835, 0
        %842 = vmatprep.subr.bf16.mxu0 0
        %843 = vmatpush1.bf16.xpose.msra.mxu0 %v840
        %844 = vmatprep.subr.bf16.mxu0 0
        %845 = vmatpush1.bf16.xpose.msra.mxu0 0
        %846 = vmatprep.subr.bf16.mxu0 0
        %847 = vmatpush1.bf16.xpose.msra.mxu0 0
        %848 = vmatprep.subr.bf16.mxu0 0
        %849 = vmatpush1.bf16.xpose.msra.mxu0 0
        %850 = vmatprep.subr.bf16.mxu0 0
        %851 = vmatpush1.bf16.xpose.msra.mxu0 0
        %852 = vmatprep.subr.bf16.mxu0 0
        %853 = vmatpush1.bf16.xpose.msra.mxu0 0
        %854 = vmatprep.subr.bf16.mxu0 0
        %855 = vmatpush1.bf16.xpose.msra.mxu0 0
        %856 = vmatprep.subr.bf16.mxu0 0
        %857 = vmatpush1.bf16.xpose.msra.mxu0 0
        %858 = vmatprep.subr.bf16.mxu0 0
        %859 = vmatpush1.bf16.xpose.msra.mxu0 0
        %860 = vmatprep.subr.bf16.mxu0 0
        %861 = vmatpush1.bf16.xpose.msra.mxu0 0
        %862 = vmatprep.subr.bf16.mxu0 0
        %863 = vmatpush1.bf16.xpose.msra.mxu0 0
        %864 = vmatprep.subr.bf16.mxu0 0
        %865 = vmatpush1.bf16.xpose.msra.mxu0 0
        %866 = vmatprep.subr.bf16.mxu0 0
        %867 = vmatpush1.bf16.xpose.msra.mxu0 0
        %868 = vmatprep.subr.bf16.mxu0 0
        %869 = vmatpush1.bf16.xpose.msra.mxu0 0
        %870 = vmatprep.subr.bf16.mxu0 0
        %871 = vmatpush1.bf16.xpose.msra.mxu0 0
        %872 = vmatprep.subr.bf16.mxu0 0
        %873 = vmatpush1.bf16.xpose.msra.mxu0 0
        %874 = vmatprep.mubr.bf16.mxu0 0
        %875 = vmatmul.mubr.bf16.gmra.mrb[0].mxu0 %v837
        %v876 = vpop.f32.mrb[0].mxu0
        %v877 = vadd.f32 0.0, %v876
        %v878 = vpop.f32.mrb[0].mxu0
        %v879 = vpop.f32.mrb[0].mxu0
        %v880 = vpop.f32.mrb[0].mxu0
        %881 = vdwg.mxu0
        %v882 = vsel %vm723, %v877, -inf
        %883 = vmax.xlane.f32.xlu0 %v882
        %v884 = vpop.xlane.xlu0 %883
        %v885 = vsub.f32 %v877, %v884
        %v886 = vmul.f32 %v885, 1.442695
        %v887 = vpow.pop %v886
        %v888 = vsel %vm723, %v887, 0.0
        %889 = vadd.xlane.f32.xlu0 %v888
        %v890 = vpop.xlane.xlu0 %889
        %v891 = vrcp.pop %v890
        %v892 = vmul.f32 %v887, %v891
        %v893 = vpack.c.bf16 %v892, %v892
        %894 = vrot.lane.b32.xlu0 %v720, 56
        %v895 = vpop.permute.xlu0 %894
        %v897 = vsel %vm723, %v893, 0
        %v900 = vsel %vm787, %v895, 0
        %902 = vmatprep.subr.bf16.mxu0 0
        %903 = vmatpush1.bf16.msra.mxu0 %v900
        %904 = vmatprep.subr.bf16.mxu0 0
        %905 = vmatpush1.bf16.msra.mxu0 0
        %906 = vmatprep.subr.bf16.mxu0 0
        %907 = vmatpush1.bf16.msra.mxu0 0
        %908 = vmatprep.subr.bf16.mxu0 0
        %909 = vmatpush1.bf16.msra.mxu0 0
        %910 = vmatprep.subr.bf16.mxu0 0
        %911 = vmatpush1.bf16.msra.mxu0 0
        %912 = vmatprep.subr.bf16.mxu0 0
        %913 = vmatpush1.bf16.msra.mxu0 0
        %914 = vmatprep.subr.bf16.mxu0 0
        %915 = vmatpush1.bf16.msra.mxu0 0
        %916 = vmatprep.subr.bf16.mxu0 0
        %917 = vmatpush1.bf16.msra.mxu0 0
        %918 = vmatprep.subr.bf16.mxu0 0
        %919 = vmatpush1.bf16.msra.mxu0 0
        %920 = vmatprep.subr.bf16.mxu0 0
        %921 = vmatpush1.bf16.msra.mxu0 0
        %922 = vmatprep.subr.bf16.mxu0 0
        %923 = vmatpush1.bf16.msra.mxu0 0
        %924 = vmatprep.subr.bf16.mxu0 0
        %925 = vmatpush1.bf16.msra.mxu0 0
        %926 = vmatprep.subr.bf16.mxu0 0
        %927 = vmatpush1.bf16.msra.mxu0 0
        %928 = vmatprep.subr.bf16.mxu0 0
        %929 = vmatpush1.bf16.msra.mxu0 0
        %930 = vmatprep.subr.bf16.mxu0 0
        %931 = vmatpush1.bf16.msra.mxu0 0
        %932 = vmatprep.subr.bf16.mxu0 0
        %933 = vmatpush1.bf16.msra.mxu0 0
        %934 = vmatprep.mubr.bf16.mxu0 0
        %935 = vmatmul.mubr.bf16.gmra.mrb[0].mxu0 %v897
        %v936 = vpop.f32.mrb[0].mxu0
        %v937 = vadd.f32 0.0, %v936
        %v938 = vpop.f32.mrb[0].mxu0
        %v939 = vpop.f32.mrb[0].mxu0
        %v940 = vpop.f32.mrb[0].mxu0
        %941 = vdwg.mxu0
        %v942 = vpack.c.bf16 %v937, %v937
        %943 = vrot.lane.b32.xlu0 %v720, 112
        %v944 = vpop.permute.xlu0 %943
        %945 = vrot.lane.b32.xlu0 %v720, 80
        %v946 = vpop.permute.xlu0 %945
        %v948 = vsel %vm723, %v944, 0
        %v951 = vsel %vm723, %v946, 0
        %953 = vmatprep.subr.bf16.mxu0 0
        %954 = vmatpush1.bf16.xpose.msra.mxu0 %v951
        %955 = vmatprep.subr.bf16.mxu0 0
        %956 = vmatpush1.bf16.xpose.msra.mxu0 0
        %957 = vmatprep.subr.bf16.mxu0 0
        %958 = vmatpush1.bf16.xpose.msra.mxu0 0
        %959 = vmatprep.subr.bf16.mxu0 0
        %960 = vmatpush1.bf16.xpose.msra.mxu0 0
        %961 = vmatprep.subr.bf16.mxu0 0
        %962 = vmatpush1.bf16.xpose.msra.mxu0 0
        %963 = vmatprep.subr.bf16.mxu0 0
        %964 = vmatpush1.bf16.xpose.msra.mxu0 0
        %965 = vmatprep.subr.bf16.mxu0 0
        %966 = vmatpush1.bf16.xpose.msra.mxu0 0
        %967 = vmatprep.subr.bf16.mxu0 0
        %968 = vmatpush1.bf16.xpose.msra.mxu0 0
        %969 = vmatprep.subr.bf16.mxu0 0
        %970 = vmatpush1.bf16.xpose.msra.mxu0 0
        %971 = vmatprep.subr.bf16.mxu0 0
        %972 = vmatpush1.bf16.xpose.msra.mxu0 0
        %973 = vmatprep.subr.bf16.mxu0 0
        %974 = vmatpush1.bf16.xpose.msra.mxu0 0
        %975 = vmatprep.subr.bf16.mxu0 0
        %976 = vmatpush1.bf16.xpose.msra.mxu0 0
        %977 = vmatprep.subr.bf16.mxu0 0
        %978 = vmatpush1.bf16.xpose.msra.mxu0 0
        %979 = vmatprep.subr.bf16.mxu0 0
        %980 = vmatpush1.bf16.xpose.msra.mxu0 0
        %981 = vmatprep.subr.bf16.mxu0 0
        %982 = vmatpush1.bf16.xpose.msra.mxu0 0
        %983 = vmatprep.subr.bf16.mxu0 0
        %984 = vmatpush1.bf16.xpose.msra.mxu0 0
        %985 = vmatprep.mubr.bf16.mxu0 0
        %986 = vmatmul.mubr.bf16.gmra.mrb[0].mxu0 %v948
        %v987 = vpop.f32.mrb[0].mxu0
        %v988 = vadd.f32 0.0, %v987
        %v989 = vpop.f32.mrb[0].mxu0
        %v990 = vpop.f32.mrb[0].mxu0
        %v991 = vpop.f32.mrb[0].mxu0
        %992 = vdwg.mxu0
        %v993 = vsel %vm723, %v988, -inf
        %994 = vmax.xlane.f32.xlu0 %v993
        %v995 = vpop.xlane.xlu0 %994
        %v996 = vsub.f32 %v988, %v995
        %v997 = vmul.f32 %v996, 1.442695
        %v998 = vpow.pop %v997
        %v999 = vsel %vm723, %v998, 0.0
        %1000 = vadd.xlane.f32.xlu0 %v999
        %v1001 = vpop.xlane.xlu0 %1000
        %v1002 = vrcp.pop %v1001
        %v1003 = vmul.f32 %v998, %v1002
        %v1004 = vpack.c.bf16 %v1003, %v1003
        %1005 = vrot.lane.b32.xlu0 %v720, 48
        %v1006 = vpop.permute.xlu0 %1005
        %v1008 = vsel %vm723, %v1004, 0
        %v1011 = vsel %vm787, %v1006, 0
        %1013 = vmatprep.subr.bf16.mxu0 0
        %1014 = vmatpush1.bf16.msra.mxu0 %v1011
        %1015 = vmatprep.subr.bf16.mxu0 0
        %1016 = vmatpush1.bf16.msra.mxu0 0
        %1017 = vmatprep.subr.bf16.mxu0 0
        %1018 = vmatpush1.bf16.msra.mxu0 0
        %1019 = vmatprep.subr.bf16.mxu0 0
        %1020 = vmatpush1.bf16.msra.mxu0 0
        %1021 = vmatprep.subr.bf16.mxu0 0
        %1022 = vmatpush1.bf16.msra.mxu0 0
        %1023 = vmatprep.subr.bf16.mxu0 0
        %1024 = vmatpush1.bf16.msra.mxu0 0
        %1025 = vmatprep.subr.bf16.mxu0 0
        %1026 = vmatpush1.bf16.msra.mxu0 0
        %1027 = vmatprep.subr.bf16.mxu0 0
        %1028 = vmatpush1.bf16.msra.mxu0 0
        %1029 = vmatprep.subr.bf16.mxu0 0
        %1030 = vmatpush1.bf16.msra.mxu0 0
        %1031 = vmatprep.subr.bf16.mxu0 0
        %1032 = vmatpush1.bf16.msra.mxu0 0
        %1033 = vmatprep.subr.bf16.mxu0 0
        %1034 = vmatpush1.bf16.msra.mxu0 0
        %1035 = vmatprep.subr.bf16.mxu0 0
        %1036 = vmatpush1.bf16.msra.mxu0 0
        %1037 = vmatprep.subr.bf16.mxu0 0
        %1038 = vmatpush1.bf16.msra.mxu0 0
        %1039 = vmatprep.subr.bf16.mxu0 0
        %1040 = vmatpush1.bf16.msra.mxu0 0
        %1041 = vmatprep.subr.bf16.mxu0 0
        %1042 = vmatpush1.bf16.msra.mxu0 0
        %1043 = vmatprep.subr.bf16.mxu0 0
        %1044 = vmatpush1.bf16.msra.mxu0 0
        %1045 = vmatprep.mubr.bf16.mxu0 0
        %1046 = vmatmul.mubr.bf16.gmra.mrb[0].mxu0 %v1008
        %v1047 = vpop.f32.mrb[0].mxu0
        %v1048 = vadd.f32 0.0, %v1047
        %v1049 = vpop.f32.mrb[0].mxu0
        %v1050 = vpop.f32.mrb[0].mxu0
        %v1051 = vpop.f32.mrb[0].mxu0
        %1052 = vdwg.mxu0
        %v1053 = vpack.c.bf16 %v1048, %v1048
        %1054 = vrot.lane.b32.xlu0 %v720, 104
        %v1055 = vpop.permute.xlu0 %1054
        %1056 = vrot.lane.b32.xlu0 %v720, 72
        %v1057 = vpop.permute.xlu0 %1056
        %v1059 = vsel %vm723, %v1055, 0
        %v1062 = vsel %vm723, %v1057, 0
        %1064 = vmatprep.subr.bf16.mxu0 0
        %1065 = vmatpush1.bf16.xpose.msra.mxu0 %v1062
        %1066 = vmatprep.subr.bf16.mxu0 0
        %1067 = vmatpush1.bf16.xpose.msra.mxu0 0
        %1068 = vmatprep.subr.bf16.mxu0 0
        %1069 = vmatpush1.bf16.xpose.msra.mxu0 0
        %1070 = vmatprep.subr.bf16.mxu0 0
        %1071 = vmatpush1.bf16.xpose.msra.mxu0 0
        %1072 = vmatprep.subr.bf16.mxu0 0
        %1073 = vmatpush1.bf16.xpose.msra.mxu0 0
        %1074 = vmatprep.subr.bf16.mxu0 0
        %1075 = vmatpush1.bf16.xpose.msra.mxu0 0
        %1076 = vmatprep.subr.bf16.mxu0 0
        %1077 = vmatpush1.bf16.xpose.msra.mxu0 0
        %1078 = vmatprep.subr.bf16.mxu0 0
        %1079 = vmatpush1.bf16.xpose.msra.mxu0 0
        %1080 = vmatprep.subr.bf16.mxu0 0
        %1081 = vmatpush1.bf16.xpose.msra.mxu0 0
        %1082 = vmatprep.subr.bf16.mxu0 0
        %1083 = vmatpush1.bf16.xpose.msra.mxu0 0
        %1084 = vmatprep.subr.bf16.mxu0 0
        %1085 = vmatpush1.bf16.xpose.msra.mxu0 0
        %1086 = vmatprep.subr.bf16.mxu0 0
        %1087 = vmatpush1.bf16.xpose.msra.mxu0 0
        %1088 = vmatprep.subr.bf16.mxu0 0
        %1089 = vmatpush1.bf16.xpose.msra.mxu0 0
        %1090 = vmatprep.subr.bf16.mxu0 0
        %1091 = vmatpush1.bf16.xpose.msra.mxu0 0
        %1092 = vmatprep.subr.bf16.mxu0 0
        %1093 = vmatpush1.bf16.xpose.msra.mxu0 0
        %1094 = vmatprep.subr.bf16.mxu0 0
        %1095 = vmatpush1.bf16.xpose.msra.mxu0 0
        %1096 = vmatprep.mubr.bf16.mxu0 0
        %1097 = vmatmul.mubr.bf16.gmra.mrb[0].mxu0 %v1059
        %v1098 = vpop.f32.mrb[0].mxu0
        %v1099 = vadd.f32 0.0, %v1098
        %v1100 = vpop.f32.mrb[0].mxu0
        %v1101 = vpop.f32.mrb[0].mxu0
        %v1102 = vpop.f32.mrb[0].mxu0
        %1103 = vdwg.mxu0
        %v1104 = vsel %vm723, %v1099, -inf
        %1105 = vmax.xlane.f32.xlu0 %v1104
        %v1106 = vpop.xlane.xlu0 %1105
        %v1107 = vsub.f32 %v1099, %v1106
        %v1108 = vmul.f32 %v1107, 1.442695
        %v1109 = vpow.pop %v1108
        %v1110 = vsel %vm723, %v1109, 0.0
        %1111 = vadd.xlane.f32.xlu0 %v1110
        %v1112 = vpop.xlane.xlu0 %1111
        %v1113 = vrcp.pop %v1112
        %v1114 = vmul.f32 %v1109, %v1113
        %v1115 = vpack.c.bf16 %v1114, %v1114
        %1116 = vrot.lane.b32.xlu0 %v720, 40
        %v1117 = vpop.permute.xlu0 %1116
        %v1119 = vsel %vm723, %v1115, 0
        %v1122 = vsel %vm787, %v1117, 0
        %1124 = vmatprep.subr.bf16.mxu0 0
        %1125 = vmatpush1.bf16.msra.mxu0 %v1122
        %1126 = vmatprep.subr.bf16.mxu0 0
        %1127 = vmatpush1.bf16.msra.mxu0 0
        %1128 = vmatprep.subr.bf16.mxu0 0
        %1129 = vmatpush1.bf16.msra.mxu0 0
        %1130 = vmatprep.subr.bf16.mxu0 0
        %1131 = vmatpush1.bf16.msra.mxu0 0
        %1132 = vmatprep.subr.bf16.mxu0 0
        %1133 = vmatpush1.bf16.msra.mxu0 0
        %1134 = vmatprep.subr.bf16.mxu0 0
        %1135 = vmatpush1.bf16.msra.mxu0 0
        %1136 = vmatprep.subr.bf16.mxu0 0
        %1137 = vmatpush1.bf16.msra.mxu0 0
        %1138 = vmatprep.subr.bf16.mxu0 0
        %1139 = vmatpush1.bf16.msra.mxu0 0
        %1140 = vmatprep.subr.bf16.mxu0 0
        %1141 = vmatpush1.bf16.msra.mxu0 0
        %1142 = vmatprep.subr.bf16.mxu0 0
        %1143 = vmatpush1.bf16.msra.mxu0 0
        %1144 = vmatprep.subr.bf16.mxu0 0
        %1145 = vmatpush1.bf16.msra.mxu0 0
        %1146 = vmatprep.subr.bf16.mxu0 0
        %1147 = vmatpush1.bf16.msra.mxu0 0
        %1148 = vmatprep.subr.bf16.mxu0 0
        %1149 = vmatpush1.bf16.msra.mxu0 0
        %1150 = vmatprep.subr.bf16.mxu0 0
        %1151 = vmatpush1.bf16.msra.mxu0 0
        %1152 = vmatprep.subr.bf16.mxu0 0
        %1153 = vmatpush1.bf16.msra.mxu0 0
        %1154 = vmatprep.subr.bf16.mxu0 0
        %1155 = vmatpush1.bf16.msra.mxu0 0
        %1156 = vmatprep.mubr.bf16.mxu0 0
        %1157 = vmatmul.mubr.bf16.gmra.mrb[0].mxu0 %v1119
        %v1158 = vpop.f32.mrb[0].mxu0
        %v1159 = vadd.f32 0.0, %v1158
        %v1160 = vpop.f32.mrb[0].mxu0
        %v1161 = vpop.f32.mrb[0].mxu0
        %v1162 = vpop.f32.mrb[0].mxu0
        %1163 = vdwg.mxu0
        %v1164 = vpack.c.bf16 %v1159, %v1159
        %1166 = vrot.lane.b32.xlu0 %v942, 8
        %v1167 = vpop.permute.xlu0 %1166
        %1169 = vrot.lane.b32.xlu0 %v1053, 16
        %v1170 = vpop.permute.xlu0 %1169
        %1172 = vrot.lane.b32.xlu0 %v1164, 24
        %v1173 = vpop.permute.xlu0 %1172
        %v1176 = vsel %vm723, %v831, %v1167
        %vm1177 = vcmask 130048
        %v1179 = vsel %vm1177, %v1176, %v1170
        %vm1180 = vcmask 195584
        %v1182 = vsel %vm1180, %v1179, %v1173
        %vm1184 = vcmask 257024
        %1185 = vst.msk [vmem:[#allocation3] sm:$0xf] %vm1184, %v1182
        %v1186 = vld [vmem:[#allocation3] sm:$0xf]
        %v1187 = vld [vmem:[#allocation13] sm:$0xf]
        %v1188 = vld [vmem:[#allocation13 + $0x4] sm:$0xf]
        %v1189 = vld [vmem:[#allocation13 + $0x8] sm:$0xf]
        %v1190 = vld [vmem:[#allocation13 + $0xc] sm:$0xf]
        %v1191 = vld [vmem:[#allocation15] sm:$0x1]
        %v1193 = vlaneseq
        %v1194 = vshrl.u32 %v1193, 7
        %v1195 = vsub.s32 0, %v1194
        %v1196 = vrot.slane %v1191, %v1195
        %v1202 = vunpack.c.l.b16 %v1187
        %v1203 = vunpack.c.l.b16 %v1188
        %v1204 = vunpack.c.l.b16 %v1189
        %v1205 = vunpack.c.l.b16 %v1190
        %v1206 = vpack.c.b16 %v1203, %v1202
        %v1207 = vpack.c.b16 %v1205, %v1204
        %v1211 = vsel %vm618, %v1186, 0
        %1213 = vmatprep.subr.bf16.mxu0 0
        %1214 = vmatpush1.bf16.msra.mxu0 %v1206
        %1215 = vmatprep.subr.bf16.mxu0 0
        %1216 = vmatpush1.bf16.msra.mxu0 %v1207
        %1217 = vmatprep.subr.bf16.mxu0 0
        %1218 = vmatpush1.bf16.msra.mxu0 0
        %1219 = vmatprep.subr.bf16.mxu0 0
        %1220 = vmatpush1.bf16.msra.mxu0 0
        %1221 = vmatprep.subr.bf16.mxu0 0
        %1222 = vmatpush1.bf16.msra.mxu0 0
        %1223 = vmatprep.subr.bf16.mxu0 0
        %1224 = vmatpush1.bf16.msra.mxu0 0
        %1225 = vmatprep.subr.bf16.mxu0 0
        %1226 = vmatpush1.bf16.msra.mxu0 0
        %1227 = vmatprep.subr.bf16.mxu0 0
        %1228 = vmatpush1.bf16.msra.mxu0 0
        %1229 = vmatprep.subr.bf16.mxu0 0
        %1230 = vmatpush1.bf16.msra.mxu0 0
        %1231 = vmatprep.subr.bf16.mxu0 0
        %1232 = vmatpush1.bf16.msra.mxu0 0
        %1233 = vmatprep.subr.bf16.mxu0 0
        %1234 = vmatpush1.bf16.msra.mxu0 0
        %1235 = vmatprep.subr.bf16.mxu0 0
        %1236 = vmatpush1.bf16.msra.mxu0 0
        %1237 = vmatprep.subr.bf16.mxu0 0
        %1238 = vmatpush1.bf16.msra.mxu0 0
        %1239 = vmatprep.subr.bf16.mxu0 0
        %1240 = vmatpush1.bf16.msra.mxu0 0
        %1241 = vmatprep.subr.bf16.mxu0 0
        %1242 = vmatpush1.bf16.msra.mxu0 0
        %1243 = vmatprep.subr.bf16.mxu0 0
        %1244 = vmatpush1.bf16.msra.mxu0 0
        %1245 = vmatprep.mubr.bf16.mxu0 0
        %1246 = vmatmul.mubr.bf16.gmra.mrb[0].mxu0 %v1211
        %v1247 = vpop.f32.mrb[0].mxu0
        %v1248 = vadd.f32 %v1196, %v1247
        %v1249 = vpop.f32.mrb[0].mxu0
        %v1250 = vpop.f32.mrb[0].mxu0
        %v1251 = vpop.f32.mrb[0].mxu0
        %1252 = vdwg.mxu0
        %v1253 = vadd.f32 %v615, %v1248
        %v1254 = vld [vmem:[#allocation16] sm:$0x1]
        %v1255 = vld [vmem:[#allocation18] sm:$0x1]
        %v1256 = vsel %vm618, %v1253, 0.0
        %1257 = vadd.xlane.f32.xlu0 %v1256
        %v1258 = vpop.xlane.xlu0 %1257
        %v1259 = vmul.f32 %v1258, %v622
        %v1260 = vsub.f32 %v1253, %v1259
        %v1261 = vmul.f32 %v1260, %v1260
        %v1262 = vsel %vm618, %v1261, 0.0
        %1263 = vadd.xlane.f32.xlu0 %v1262
        %v1264 = vpop.xlane.xlu0 %1263
        %v1265 = vmul.f32 %v1264, %v622
        %v1266 = vadd.f32 %v1265, 1e-05
        %v1267 = vrsqrt.pop %v1266
        %v1268 = vmul.f32 %v1260, %v1267
        %v1270 = vlaneseq
        %v1271 = vshrl.u32 %v1270, 7
        %v1272 = vsub.s32 0, %v1271
        %v1273 = vrot.slane %v1254, %v1272
        %v1275 = vmul.f32 %v1268, %v1273
        %v1277 = vlaneseq
        %v1278 = vshrl.u32 %v1277, 7
        %v1279 = vsub.s32 0, %v1278
        %v1280 = vrot.slane %v1255, %v1279
        %v1282 = vadd.f32 %v1275, %v1280
        %v1283 = vpack.c.bf16 %v1282, %v1282
        %v1284 = vld [vmem:[#allocation19] sm:$0xf]
        %v1285 = vld [vmem:[#allocation19 + $0x4] sm:$0xf]
        %v1286 = vld [vmem:[#allocation19 + $0x8] sm:$0xf]
        %v1287 = vld [vmem:[#allocation19 + $0xc] sm:$0xf]
        %v1288 = vld [vmem:[#allocation21] sm:$0x1]
        %v1290 = vlaneseq
        %v1291 = vshrl.u32 %v1290, 7
        %v1292 = vsub.s32 0, %v1291
        %v1293 = vrot.slane %v1288, %v1292
        %v1299 = vunpack.c.l.b16 %v1284
        %v1300 = vunpack.c.l.b16 %v1285
        %v1301 = vunpack.c.l.b16 %v1286
        %v1302 = vunpack.c.l.b16 %v1287
        %v1303 = vpack.c.b16 %v1300, %v1299
        %v1304 = vpack.c.b16 %v1302, %v1301
        %v1308 = vsel %vm618, %v1283, 0
        %1310 = vmatprep.subr.bf16.mxu0 0
        %1311 = vmatpush1.bf16.msra.mxu0 %v1303
        %1312 = vmatprep.subr.bf16.mxu0 0
        %1313 = vmatpush1.bf16.msra.mxu0 %v1304
        %1314 = vmatprep.subr.bf16.mxu0 0
        %1315 = vmatpush1.bf16.msra.mxu0 0
        %1316 = vmatprep.subr.bf16.mxu0 0
        %1317 = vmatpush1.bf16.msra.mxu0 0
        %1318 = vmatprep.subr.bf16.mxu0 0
        %1319 = vmatpush1.bf16.msra.mxu0 0
        %1320 = vmatprep.subr.bf16.mxu0 0
        %1321 = vmatpush1.bf16.msra.mxu0 0
        %1322 = vmatprep.subr.bf16.mxu0 0
        %1323 = vmatpush1.bf16.msra.mxu0 0
        %1324 = vmatprep.subr.bf16.mxu0 0
        %1325 = vmatpush1.bf16.msra.mxu0 0
        %1326 = vmatprep.subr.bf16.mxu0 0
        %1327 = vmatpush1.bf16.msra.mxu0 0
        %1328 = vmatprep.subr.bf16.mxu0 0
        %1329 = vmatpush1.bf16.msra.mxu0 0
        %1330 = vmatprep.subr.bf16.mxu0 0
        %1331 = vmatpush1.bf16.msra.mxu0 0
        %1332 = vmatprep.subr.bf16.mxu0 0
        %1333 = vmatpush1.bf16.msra.mxu0 0
        %1334 = vmatprep.subr.bf16.mxu0 0
        %1335 = vmatpush1.bf16.msra.mxu0 0
        %1336 = vmatprep.subr.bf16.mxu0 0
        %1337 = vmatpush1.bf16.msra.mxu0 0
        %1338 = vmatprep.subr.bf16.mxu0 0
        %1339 = vmatpush1.bf16.msra.mxu0 0
        %1340 = vmatprep.subr.bf16.mxu0 0
        %1341 = vmatpush1.bf16.msra.mxu0 0
        %1342 = vmatprep.mubr.bf16.mxu0 0
        %1343 = vmatmul.mubr.bf16.gmra.mrb[0].mxu0 %v1308
        %v1344 = vpop.f32.mrb[0].mxu0
        %v1345 = vadd.f32 %v1293, %v1344
        %v1346 = vpop.f32.mrb[0].mxu0
        %v1347 = vpop.f32.mrb[0].mxu0
        %v1348 = vpop.f32.mrb[0].mxu0
        %1349 = vdwg.mxu0
        %v1350 = vmul.f32 %v1345, 0.5
        %v1351 = vmul.f32 %v1345, 0.70710677
        %vm1352 = vcmp.ge.f32.partialorder %v1351, 0.0
        %v1353 = vsel %vm1352, 1.0, -1.0
        %v1354 = vand.u32 2147483647, %v1351
        %v1355 = vmul.f32 %v1354, 0.3275911
        %v1356 = vadd.f32 %v1355, 1.0
        %v1357 = vrcp.pop %v1356
        %v1358 = vmul.f32 %v1357, 1.0614054
        %v1359 = vadd.f32 %v1358, -1.4531521
        %v1360 = vmul.f32 %v1359, %v1357
        %v1361 = vadd.f32 %v1360, 1.4214138
        %v1362 = vmul.f32 %v1361, %v1357
        %v1363 = vadd.f32 %v1362, -0.28449672
        %v1364 = vmul.f32 %v1363, %v1357
        %v1365 = vadd.f32 %v1364, 0.2548296
        %v1366 = vmul.f32 %v1365, %v1357
        %v1367 = vsub.f32 0.0, %v1354
        %v1368 = vmul.f32 %v1367, %v1354
        %v1369 = vmul.f32 %v1368, 1.442695
        %v1370 = vpow.pop %v1369
        %v1371 = vmul.f32 %v1366, %v1370
        %v1372 = vsub.f32 1.0, %v1371
        %v1373 = vmul.f32 %v1353, %v1372
        %v1374 = vadd.f32 %v1373, 1.0
        %v1375 = vmul.f32 %v1350, %v1374
        %v1376 = vpack.c.bf16 %v1375, %v1375
        %v1377 = vld [vmem:[#allocation22] sm:$0xf]
        %v1378 = vld [vmem:[#allocation22 + $0x4] sm:$0xf]
        %v1379 = vld [vmem:[#allocation22 + $0x8] sm:$0xf]
        %v1380 = vld [vmem:[#allocation22 + $0xc] sm:$0xf]
        %v1381 = vld [vmem:[#allocation22 + $0x10] sm:$0xf]
        %v1382 = vld [vmem:[#allocation22 + $0x14] sm:$0xf]
        %v1383 = vld [vmem:[#allocation22 + $0x18] sm:$0xf]
        %v1384 = vld [vmem:[#allocation22 + $0x1c] sm:$0xf]
        %v1393 = vunpack.c.l.b16 %v1377
        %v1394 = vunpack.c.l.b16 %v1378
        %v1395 = vunpack.c.l.b16 %v1379
        %v1396 = vunpack.c.l.b16 %v1380
        %v1397 = vunpack.c.l.b16 %v1381
        %v1398 = vunpack.c.l.b16 %v1382
        %v1399 = vunpack.c.l.b16 %v1383
        %v1400 = vunpack.c.l.b16 %v1384
        %v1401 = vpack.c.b16 %v1394, %v1393
        %v1402 = vpack.c.b16 %v1396, %v1395
        %v1403 = vpack.c.b16 %v1398, %v1397
        %v1404 = vpack.c.b16 %v1400, %v1399
        %vm1409 = vcmask 523264
        %v1411 = vsel %vm1409, %v1376, 0
        %1413 = vmatprep.subr.bf16.mxu0 0
        %1414 = vmatpush1.bf16.msra.mxu0 %v1401
        %1415 = vmatprep.subr.bf16.mxu0 0
        %1416 = vmatpush1.bf16.msra.mxu0 %v1402
        %1417 = vmatprep.subr.bf16.mxu0 0
        %1418 = vmatpush1.bf16.msra.mxu0 %v1403
        %1419 = vmatprep.subr.bf16.mxu0 0
        %1420 = vmatpush1.bf16.msra.mxu0 %v1404
        %1421 = vmatprep.subr.bf16.mxu0 0
        %1422 = vmatpush1.bf16.msra.mxu0 0
        %1423 = vmatprep.subr.bf16.mxu0 0
        %1424 = vmatpush1.bf16.msra.mxu0 0
        %1425 = vmatprep.subr.bf16.mxu0 0
        %1426 = vmatpush1.bf16.msra.mxu0 0
        %1427 = vmatprep.subr.bf16.mxu0 0
        %1428 = vmatpush1.bf16.msra.mxu0 0
        %1429 = vmatprep.subr.bf16.mxu0 0
        %1430 = vmatpush1.bf16.msra.mxu0 0
        %1431 = vmatprep.subr.bf16.mxu0 0
        %1432 = vmatpush1.bf16.msra.mxu0 0
        %1433 = vmatprep.subr.bf16.mxu0 0
        %1434 = vmatpush1.bf16.msra.mxu0 0
        %1435 = vmatprep.subr.bf16.mxu0 0
        %1436 = vmatpush1.bf16.msra.mxu0 0
        %1437 = vmatprep.subr.bf16.mxu0 0
        %1438 = vmatpush1.bf16.msra.mxu0 0
        %1439 = vmatprep.subr.bf16.mxu0 0
        %1440 = vmatpush1.bf16.msra.mxu0 0
        %1441 = vmatprep.subr.bf16.mxu0 0
        %1442 = vmatpush1.bf16.msra.mxu0 0
        %1443 = vmatprep.subr.bf16.mxu0 0
        %1444 = vmatpush1.bf16.msra.mxu0 0
        %1445 = vmatprep.mubr.bf16.mxu0 0
        %1446 = vmatmul.mubr.bf16.gmra.mrb[0].mxu0 %v1411
        %v1447 = vpop.f32.mrb[0].mxu0
        %v1448 = vadd.f32 0.0, %v1447
        %v1449 = vpop.f32.mrb[0].mxu0
        %v1450 = vpop.f32.mrb[0].mxu0
        %v1451 = vpop.f32.mrb[0].mxu0
        %1452 = vdwg.mxu0
        %v1453 = vadd.f32 %v1253, %v1448
        %v1454 = vld [vmem:[#allocation24] sm:$0x1]
        %v1456 = vlaneseq
        %v1457 = vshrl.u32 %v1456, 7
        %v1458 = vsub.s32 0, %v1457
        %v1459 = vrot.slane %v1454, %v1458
        %v1461 = vadd.f32 %v1453, %v1459
        %1462 = vst.msk [vmem:[%s613] sm:$0xff] %vm618, %v1461
        %s1463 = sand.u32 %s322, 1
        %s1464 = scalar_lea.sflag [#allocation6], %s1463
        %s1465 = sand.u32 %s322, 1
        %s1466 = smul.addr %s1465, 8
        %s1467 = scalar_lea.vmem [#allocation25], %s1466
        // Predicated region
        $region125: #{tpu_custom_call.1} parent=71 // pred_check
          %p1468 = pneg %p332
        $region126: #{tpu_custom_call.1} parent=71 // pred_check_branch
          %1470 = sbr.rel (%p1468) target = $region128
        $region127: #{tpu_custom_call.1} parent=71 // pred_region
          %s1472 = ssub.s32 128, 128
          %1473 = vsyncadd %s1464, %s1472
          %s1474 = smul.addr %s36, 128
          %s1475 = scalar_lea.hbm %s13, %s1474
          %s1477 = sshll.u32 %s1467, 4
          %s1478 = int_to_ptr.vmem [resolvable:$true] %s1477
          %1480 = dma.vmem_to_hbm [thread:$0]  %s1478, 128, %s1475, %s1464
        $region128: #{tpu_custom_call.1} parent=71 // pred_fallthru
          _
      $region72: #{tpu_custom_call.1} parent=5 // pred_fallthru
        _
      %p1481 = scmp.le.s32.totalorder 2, %s31
      // Predicated region
      $region129: #{tpu_custom_call.1} parent=5 // pred_check
        %p1482 = pneg %p1481
      $region130: #{tpu_custom_call.1} parent=5 // pred_check_branch
        %1484 = sbr.rel (%p1482) target = $region132
      $region131: #{tpu_custom_call.1} parent=5 // pred_region
        %s1485 = ssub.s32 %s31, 2
        // Predicated region
        $region133: #{tpu_custom_call.1} parent=131 // pred_check
          %p1486 = pneg %p338
        $region134: #{tpu_custom_call.1} parent=131 // pred_check_branch
          %1488 = sbr.rel (%p1486) target = $region136
        $region135: #{tpu_custom_call.1} parent=131 // pred_region
          %s1489 = sand.u32 %s323, 1
          %s1490 = scalar_lea.sflag [#allocation6], %s1489
          %s1491 = sand.u32 %s323, 1
          %s1492 = smul.addr %s1491, 8
          %s1493 = scalar_lea.vmem [#allocation25], %s1492
          %1494 = dma.done %s1490, 128
        $region136: #{tpu_custom_call.1} parent=131 // pred_fallthru
          _
      $region132: #{tpu_custom_call.1} parent=5 // pred_fallthru
        _
    $region6: #{tpu_custom_call.1} parent=1 // loop_footer
      %s35 = sadd.s32 1, %s31
    $region7: #{tpu_custom_call.1} parent=1 // loop_footer_branch
      %30 = sbr.rel target = $region3
    $region8: #{tpu_custom_call.1} parent=1 // loop_exit
      _
    %1495 = vsyncpa [#allocation5], 1
    %s1496 = scalar_lea.sflag [#allocation5], 1
    %1497 = vsyncpa %s1496, 1
    %1498 = vsyncpa [#allocation8], 1
    %1499 = vsyncpa [#allocation11], 1
    %1500 = vsyncpa [#allocation14], 1
    %1501 = vsyncpa [#allocation17], 1
    %1502 = vsyncpa [#allocation20], 1
    %1503 = vsyncpa [#allocation23], 1
    %1504 = vsyncpa [#allocation6], 1
    %s1505 = scalar_lea.sflag [#allocation6], 1
    %1506 = vsyncpa %s1505, 1

</llo_original>
